<compile_context>
chip_gen: v7x
topology: tpu7x:2x2x1
jax: 0.10.0
libtpu: 0.0.40
codegen_flags: <defaults>
</compile_context>

<pallas_src>
import functools

import jax
import jax.numpy as jnp
from jax.experimental import pallas as pl
from jax.experimental.pallas import tpu as pltpu

LANE = 128


def _round_up(x, m):
    return ((x + m - 1) // m) * m


def _pad2d(x, rows, cols):
    r, c = x.shape
    return jnp.pad(x, ((0, rows - r), (0, cols - c)))


# ----------------------------------------------------------------------------
# Fused kernel: whole forward in one pallas_call
# ----------------------------------------------------------------------------

def fused_gin_kernel(num_layers, eps_ref, pair_ids_ref, adj_hbm, h0_ref,
                     vecs_ref, *args):
    """args = (2*num_layers + 4) weight refs, out_ref, 4 scratch refs."""
    n_w = 2 * num_layers + 4
    w_refs = args[:n_w]
    out_ref, h_a, h_b, adj_buf, dma_sem = args[n_w:]

    n_row_tiles, tm, n_pad = adj_hbm.shape
    h_pad = h_a.shape[1]
    n_pairs_pad, out_pad = out_ref.shape

    vecs = vecs_ref[...]                          # (rows_pad, vec_w) f32, tiny

    def vrow(r, width):                           # (1, width) bias/scale row
        return vecs[r:r + 1, :width]

    def slab_copy(r, slot):
        return pltpu.make_async_copy(adj_hbm.at[r], adj_buf.at[slot],
                                     dma_sem.at[slot])

    cur = h0_ref                                  # current h (bf16 VMEM ref)
    dsts = (h_a, h_b)
    for li in range(num_layers):
        w1 = w_refs[2 * li][...]
        w2 = w_refs[2 * li + 1][...]
        b1 = vrow(4 * li + 0, h_pad)
        b2 = vrow(4 * li + 1, h_pad)
        bns = vrow(4 * li + 2, h_pad)
        bnb = vrow(4 * li + 3, h_pad)
        one_plus_eps = 1.0 + eps_ref[li]
        dst = dsts[li % 2]

        # Stream adjacency row slabs HBM->VMEM, double-buffered.
        slab_copy(0, 0).start()
        # TODO(synk): for very large graphs convert this static unroll to
        # pl.loop and add a column-tile loop so a row slab need not span all
        # n_pad columns; also stream per-layer weights from HBM (2-slot
        # prefetch) for deep models.
        for r in range(n_row_tiles):
            slot = r % 2
            slab_copy(r, slot).wait()
            if r + 1 < n_row_tiles:
                slab_copy(r + 1, 1 - slot).start()
            a_slab = adj_buf[slot]                         # (tm, n_pad) bf16
            # GINConv (sum agg, learn_eps): A_slab @ h + (1+eps) * h[rows]
            agg = jnp.dot(a_slab, cur[...], preferred_element_type=jnp.float32)
            agg = agg + one_plus_eps * cur[pl.ds(r * tm, tm), :].astype(jnp.float32)
            # apply_func MLP: Linear -> ReLU -> Linear -> ReLU.
            z = jnp.maximum(
                jnp.dot(agg.astype(jnp.bfloat16), w1,
                        preferred_element_type=jnp.float32) + b1, 0.0)
            z = jnp.maximum(
                jnp.dot(z.astype(jnp.bfloat16), w2,
                        preferred_element_type=jnp.float32) + b2, 0.0)
            # BatchNorm1d (eval, folded) -> ReLU; Dropout = identity.
            dst[pl.ds(r * tm, tm), :] = jnp.maximum(
                z * bns + bnb, 0.0).astype(jnp.bfloat16)
        cur = dst

    # --- pair gather: one compare + one stacked one-hot selection matmul ----
    # (padded node rows hold finite bias garbage but are never selected:
    #  valid pair ids are < n_nodes and padded adjacency columns are zero)
    rows = 2 * n_pairs_pad
    lane_node = jax.lax.broadcasted_iota(jnp.int32, (rows, n_pad), 1)
    ids = pair_ids_ref[...]                                # (rows, 128) int32
    sel = (lane_node == ids[:, 0:1]).astype(jnp.bfloat16)  # one-hot rows
    hs = jnp.dot(sel, cur[...], preferred_element_type=jnp.float32)

    lin_w = w_refs[2 * num_layers + 0][...]
    iw1a = w_refs[2 * num_layers + 1][...]
    iw1b = w_refs[2 * num_layers + 2][...]
    iw2 = w_refs[2 * num_layers + 3][...]
    lin_b = vrow(4 * num_layers + 0, h_pad)
    ib1 = vrow(4 * num_layers + 1, h_pad)
    ib2 = vrow(4 * num_layers + 2, out_pad)

    # h = relu(self.linear(h)) applied post-gather (row-wise op commutes with
    # the row gather); gin_final_dropout is identity in eval mode.
    g = jnp.maximum(
        jnp.dot(hs.astype(jnp.bfloat16), lin_w,
                preferred_element_type=jnp.float32) + lin_b, 0.0)
    h1 = g[:n_pairs_pad]
    h2 = g[n_pairs_pad:]

    # 'mlp' interaction head: Linear(2H->H) -> ReLU -> (Dropout=id) ->
    # Linear(H->out); the 2H concat is replaced by two half-weight matmuls.
    z = jnp.maximum(
        jnp.dot(h1.astype(jnp.bfloat16), iw1a, preferred_element_type=jnp.float32)
        + jnp.dot(h2.astype(jnp.bfloat16), iw1b, preferred_element_type=jnp.float32)
        + ib1, 0.0)
    out_ref[...] = (
        jnp.dot(z.astype(jnp.bfloat16), iw2, preferred_element_type=jnp.float32)
        + ib2)
    # TODO(synk): training-mode BatchNorm (batch statistics) and dropout masks
    # are not implemented; this kernel covers eval-mode semantics.


# ----------------------------------------------------------------------------
# Wrapper: pad to lane-dense shapes, single pallas_call, slice output
# ----------------------------------------------------------------------------

@functools.partial(jax.jit, static_argnames=("adj_row_tile",))
def gin_forward(params, adj, feat, node_id_pairs, *, adj_row_tile=256):
    """Equivalent of GIN.forward(g, ppi_list, idx) in eval mode.

    node_id_pairs = ppi_array[idx] (the host-side numpy indexing / validation
    glue of the torch code happens outside the kernel).
    """
    num_layers = len(params["layers"])
    n_nodes, d_in = feat.shape
    hidden = params["lin_w"].shape[1]
    out_dim = params["int_w2"].shape[1]
    n_pairs = node_id_pairs.shape[0]

    # Lane-dense padded sizes (all matmul dims multiples of 128, pairs of 8).
    n_pad = _round_up(max(n_nodes, LANE), LANE)
    din_pad = _round_up(d_in, LANE)
    h_pad = _round_up(hidden, LANE)
    out_pad = _round_up(out_dim, LANE)
    n_pairs_pad = _round_up(max(n_pairs, 8), 8)

    # Adjacency row-slab tile (streamed HBM->VMEM, double-buffered).
    tm = min(adj_row_tile, n_pad)
    while n_pad % tm != 0:
        tm //= 2
    tm = max(tm, 16)
    n_row_tiles = n_pad // tm

    # bf16 operands (0/1 adjacency exact in bf16); f32 accumulation in-kernel.
    adj_p = _pad2d(adj.astype(jnp.float32), n_pad, n_pad).astype(jnp.bfloat16)
    adj_p = adj_p.reshape(n_row_tiles, tm, n_pad)
    feat_p = _pad2d(feat.astype(jnp.float32), n_pad, din_pad).astype(jnp.bfloat16)
    eps = jnp.concatenate([lp["eps"] for lp in params["layers"]]).astype(jnp.float32)

    # Pair ids: pad to a multiple of 8 with dummy (valid) id 0, stack column-0
    # ids above column-1 ids, broadcast across 128 lanes for the in-kernel
    # single-compare one-hot construction.
    pairs = jnp.zeros((n_pairs_pad, 2), jnp.int32).at[:n_pairs].set(
        node_id_pairs.astype(jnp.int32))
    ids_stacked = jnp.concatenate([pairs[:, 0], pairs[:, 1]], axis=0)
    pair_ids = jnp.broadcast_to(ids_stacked[:, None],
                                (2 * n_pairs_pad, LANE)).astype(jnp.int32)

    # Pack all per-layer / head vectors into ONE stacked f32 VMEM array.
    vec_w = max(h_pad, out_pad)
    vec_rows = []
    for lp in params["layers"]:
        vec_rows += [_pad2d(lp["b1"], 1, vec_w), _pad2d(lp["b2"], 1, vec_w),
                     _pad2d(lp["bn_scale"], 1, vec_w),
                     _pad2d(lp["bn_shift"], 1, vec_w)]
    vec_rows += [_pad2d(params["lin_b"], 1, vec_w),
                 _pad2d(params["int_b1"], 1, vec_w),
                 _pad2d(params["int_b2"], 1, vec_w)]
    vecs = jnp.concatenate(vec_rows, axis=0).astype(jnp.float32)
    vecs = _pad2d(vecs, _round_up(vecs.shape[0], 8), vec_w)

    # Weight matrices (bf16, lane-dense padded).
    w_args = []
    in_w = din_pad
    for lp in params["layers"]:
        w_args += [_pad2d(lp["w1"], in_w, h_pad).astype(jnp.bfloat16),
                   _pad2d(lp["w2"], h_pad, h_pad).astype(jnp.bfloat16)]
        in_w = h_pad
    w_args += [
        _pad2d(params["lin_w"], h_pad, h_pad).astype(jnp.bfloat16),
        _pad2d(params["int_w1"][:hidden, :], h_pad, h_pad).astype(jnp.bfloat16),
        _pad2d(params["int_w1"][hidden:, :], h_pad, h_pad).astype(jnp.bfloat16),
        _pad2d(params["int_w2"], h_pad, out_pad).astype(jnp.bfloat16),
    ]

    smem_spec = pl.BlockSpec(memory_space=pltpu.MemorySpace.SMEM)
    vmem_spec = pl.BlockSpec(memory_space=pltpu.MemorySpace.VMEM)
    hbm_spec = pl.BlockSpec(memory_space=pl.ANY)      # adjacency stays in HBM

    scratch_shapes = [
        pltpu.VMEM((n_pad, h_pad), jnp.bfloat16),     # h ping
        pltpu.VMEM((n_pad, h_pad), jnp.bfloat16),     # h pong
        pltpu.VMEM((2, tm, n_pad), jnp.bfloat16),     # adjacency slab 2-slot
        pltpu.SemaphoreType.DMA((2,)),
    ]

    vmem_need = (2 * n_pad * h_pad * 2 + 2 * tm * n_pad * 2
                 + feat_p.size * 2 + vecs.size * 4 + pair_ids.size * 4
                 + n_pairs_pad * out_pad * 4
                 + sum(w.size * 2 for w in w_args))
    # Explicit scoped-VMEM budget; capped at 64 MiB so it also holds on v7x.
    vmem_limit = int(min(max(2 * vmem_need, 32 * 1024 * 1024),
                         64 * 1024 * 1024))

    out = pl.pallas_call(
        functools.partial(fused_gin_kernel, num_layers),
        out_shape=jax.ShapeDtypeStruct((n_pairs_pad, out_pad), jnp.float32),
        in_specs=[smem_spec, vmem_spec, hbm_spec, vmem_spec, vmem_spec]
                 + [vmem_spec] * len(w_args),
        out_specs=vmem_spec,
        scratch_shapes=scratch_shapes,
        compiler_params=pltpu.CompilerParams(vmem_limit_bytes=vmem_limit),
    )(eps, pair_ids, adj_p, feat_p, vecs, *w_args)

    return out[:n_pairs, :out_dim]


# ----------------------------------------------------------------------------
# Pure-JAX f32 reference (same eval-mode math) for a correctness self-check
# ----------------------------------------------------------------------------

def gin_forward_ref(params, adj, feat, node_id_pairs):
    h = feat
    for lp in params["layers"]:
        agg = adj @ h + (1.0 + lp["eps"][0]) * h
        z = jnp.maximum(agg @ lp["w1"] + lp["b1"], 0.0)
        z = jnp.maximum(z @ lp["w2"] + lp["b2"], 0.0)
        h = jnp.maximum(z * lp["bn_scale"] + lp["bn_shift"], 0.0)
    h = jnp.maximum(h @ params["lin_w"] + params["lin_b"], 0.0)
    h1 = h[node_id_pairs[:, 0]]
    h2 = h[node_id_pairs[:, 1]]
    x = jnp.concatenate([h1, h2], axis=1)
    z = jnp.maximum(x @ params["int_w1"] + params["int_b1"], 0.0)
    return z @ params["int_w2"] + params["int_b2"]


# ----------------------------------------------------------------------------
# Deterministic parameter initialization (synthetic, matches __init__ shapes)
# ----------------------------------------------------------------------------

def init_params(key, gin_input_dim, hidden_dim, output_dim, num_layers):
    def dense(k, fan_in, fan_out):
        kw, kb = jax.random.split(k)
        scale = 1.0 / jnp.sqrt(fan_in)
        w = jax.random.uniform(kw, (fan_in, fan_out), jnp.float32, -scale, scale)
        b = jax.random.uniform(kb, (1, fan_out), jnp.float32, -scale, scale)
        return w, b

    keys = jax.random.split(key, num_layers + 2)
    layers = []
    d_in = gin_input_dim
    for li in range(num_layers):
        k1, k2, k3 = jax.random.split(keys[li], 3)
        w1, b1 = dense(k1, d_in, hidden_dim)
        w2, b2 = dense(k2, hidden_dim, hidden_dim)
        # BatchNorm1d eval-mode running stats / affine params (deterministic)
        gamma = 1.0 + 0.05 * jax.random.normal(k3, (1, hidden_dim), jnp.float32)
        beta = jnp.zeros((1, hidden_dim), jnp.float32)
        run_mean = jnp.zeros((1, hidden_dim), jnp.float32)
        run_var = jnp.ones((1, hidden_dim), jnp.float32)
        bn_scale = gamma / jnp.sqrt(run_var + 1e-5)
        bn_shift = beta - run_mean * bn_scale
        layers.append(dict(
            eps=jnp.zeros((1,), jnp.float32),   # GINConv learn_eps init = 0
            w1=w1, b1=b1, w2=w2, b2=b2,
            bn_scale=bn_scale, bn_shift=bn_shift,
        ))
        d_in = hidden_dim

    lin_w, lin_b = dense(keys[num_layers], hidden_dim, hidden_dim)
    ki1, ki2 = jax.random.split(keys[num_layers + 1])
    int_w1, int_b1 = dense(ki1, hidden_dim * 2, hidden_dim)
    int_w2, int_b2 = dense(ki2, hidden_dim, output_dim)
    return dict(layers=layers, lin_w=lin_w, lin_b=lin_b,
                int_w1=int_w1, int_b1=int_b1, int_w2=int_w2, int_b2=int_b2)


# ----------------------------------------------------------------------------
# Main
# ----------------------------------------------------------------------------

if __name__ == "__main__":
    key = jax.random.PRNGKey(0)

    NUM_LAYERS = 2          # ppi_num_layers
    HIDDEN = 32             # ppi_hidden_dim
    OUTPUT_DIM = 7          # output_dim
    GIN_INPUT_DIM = 64      # protein_embedding_dim
    N_NODES = 16

    k_feat, k_param = jax.random.split(key)
    feat = jax.random.normal(k_feat, (N_NODES, GIN_INPUT_DIM), jnp.float32)

    # Deterministic small graph: ring + a couple of chords, symmetric edges.
    adj = jnp.zeros((N_NODES, N_NODES), jnp.float32)
    for i in range(N_NODES):
        j = (i + 1) % N_NODES
        adj = adj.at[i, j].set(1.0)
        adj = adj.at[j, i].set(1.0)
    adj = adj.at[0, 8].set(1.0)
    adj = adj.at[8, 0].set(1.0)
    adj = adj.at[3, 11].set(1.0)
    adj = adj.at[11, 3].set(1.0)

    # ppi_list (node id pairs) and idx selecting which interactions to score.
    ppi_list = jnp.array([[0, 1], [2, 3], [4, 5], [6, 7],
                          [8, 9], [10, 11], [12, 13], [14, 15]], jnp.int32)
    idx = jnp.array([0, 2, 3, 5, 6, 7], jnp.int32)   # len 6: exercises pad-to-8
    node_id_pairs = ppi_list[idx]   # host-side numpy indexing glue in torch code

    params = init_params(k_param, GIN_INPUT_DIM, HIDDEN, OUTPUT_DIM, NUM_LAYERS)

    # adj_row_tile=64 -> 2 row slabs at n_pad=128: exercises DMA double-buffer.
    out = gin_forward(params, adj, feat, node_id_pairs, adj_row_tile=64)
    out = jax.block_until_ready(out)
    assert out.shape == (idx.shape[0], OUTPUT_DIM), out.shape
    assert bool(jnp.all(jnp.isfinite(out)))

    with jax.default_matmul_precision("highest"):
        ref = gin_forward_ref(params, adj, feat, node_id_pairs)
    # Kernel feeds the MXU bf16 operands (f32 accumulation); vs the f32
    # reference the expected deviation is ~1e-2 relative.
    max_err = float(jnp.max(jnp.abs(out - ref)))
    assert bool(jnp.allclose(out, ref, rtol=5e-2, atol=5e-2)), max_err

    print("KERNEL_OK")
</pallas_src>

<mosaic_0001>
module attributes {stable_mosaic.version = 11 : i64} {
  func.func @fused_gin_kernel(%arg0: memref<2xf32, #tpu.memory_space<smem>>, %arg1: memref<16x128xi32, #tpu.memory_space<vmem>>, %arg2: memref<2x64x128xbf16, #tpu.memory_space<any>>, %arg3: memref<128x128xbf16, #tpu.memory_space<vmem>>, %arg4: memref<16x128xf32, #tpu.memory_space<vmem>>, %arg5: memref<128x128xbf16, #tpu.memory_space<vmem>>, %arg6: memref<128x128xbf16, #tpu.memory_space<vmem>>, %arg7: memref<128x128xbf16, #tpu.memory_space<vmem>>, %arg8: memref<128x128xbf16, #tpu.memory_space<vmem>>, %arg9: memref<128x128xbf16, #tpu.memory_space<vmem>>, %arg10: memref<128x128xbf16, #tpu.memory_space<vmem>>, %arg11: memref<128x128xbf16, #tpu.memory_space<vmem>>, %arg12: memref<128x128xbf16, #tpu.memory_space<vmem>>, %arg13: memref<8x128xf32, #tpu.memory_space<vmem>>, %arg14: memref<128x128xbf16, #tpu.memory_space<vmem>>, %arg15: memref<128x128xbf16, #tpu.memory_space<vmem>>, %arg16: memref<2x64x128xbf16, #tpu.memory_space<vmem>>, %arg17: memref<2x!tpu.dma_semaphore, #tpu.memory_space<semaphore_mem>>) attributes {dimension_semantics = [], scalar_prefetch = 0 : i64, scratch_operands = 4 : i64, tpu.core_type = #tpu.core_type<tc>} {
    %c0 = arith.constant 0 : index
    %c0_0 = arith.constant 0 : index
    %0 = vector.load %arg4[%c0, %c0_0] : memref<16x128xf32, #tpu.memory_space<vmem>>, vector<16x128xf32>
    %c0_1 = arith.constant 0 : index
    %c0_2 = arith.constant 0 : index
    %1 = vector.load %arg5[%c0_1, %c0_2] : memref<128x128xbf16, #tpu.memory_space<vmem>>, vector<128x128xbf16>
    %c0_3 = arith.constant 0 : index
    %c0_4 = arith.constant 0 : index
    %2 = vector.load %arg6[%c0_3, %c0_4] : memref<128x128xbf16, #tpu.memory_space<vmem>>, vector<128x128xbf16>
    %3 = vector.extract_strided_slice %0 {offsets = [0, 0], sizes = [1, 128], strides = [1, 1]} : vector<16x128xf32> to vector<1x128xf32>
    %4 = vector.extract_strided_slice %0 {offsets = [1, 0], sizes = [1, 128], strides = [1, 1]} : vector<16x128xf32> to vector<1x128xf32>
    %5 = vector.extract_strided_slice %0 {offsets = [2, 0], sizes = [1, 128], strides = [1, 1]} : vector<16x128xf32> to vector<1x128xf32>
    %6 = vector.extract_strided_slice %0 {offsets = [3, 0], sizes = [1, 128], strides = [1, 1]} : vector<16x128xf32> to vector<1x128xf32>
    %c0_5 = arith.constant 0 : index
    %7 = memref.load %arg0[%c0_5] : memref<2xf32, #tpu.memory_space<smem>>
    %cst = arith.constant 1.000000e+00 : f32
    %8 = arith.addf %cst, %7 : f32
    %c0_i32 = arith.constant 0 : i32
    %c0_i32_6 = arith.constant 0 : i32
    %c0_i32_7 = arith.constant 0 : i32
    %c0_i32_8 = arith.constant 0 : i32
    %c0_i32_9 = arith.constant 0 : i32
    %9 = tpu.memref_slice %arg2[%c0_i32, %c0_i32_8, %c0_i32_9] : memref<2x64x128xbf16, #tpu.memory_space<any>> -> memref<1x64x128xbf16, #tpu.memory_space<any>>
    %10 = tpu.memref_squeeze %9 : memref<1x64x128xbf16, #tpu.memory_space<any>> -> memref<64x128xbf16, #tpu.memory_space<any>>
    %c0_i32_10 = arith.constant 0 : i32
    %c0_i32_11 = arith.constant 0 : i32
    %11 = tpu.memref_slice %arg16[%c0_i32_6, %c0_i32_10, %c0_i32_11] : memref<2x64x128xbf16, #tpu.memory_space<vmem>> -> memref<1x64x128xbf16, #tpu.memory_space<vmem>>
    %12 = tpu.memref_squeeze %11 : memref<1x64x128xbf16, #tpu.memory_space<vmem>> -> memref<64x128xbf16, #tpu.memory_space<vmem>>
    %13 = tpu.memref_slice %arg17[%c0_i32_7] : memref<2x!tpu.dma_semaphore, #tpu.memory_space<semaphore_mem>> -> memref<1x!tpu.dma_semaphore, #tpu.memory_space<semaphore_mem>>
    %14 = tpu.memref_squeeze %13 : memref<1x!tpu.dma_semaphore, #tpu.memory_space<semaphore_mem>> -> memref<!tpu.dma_semaphore, #tpu.memory_space<semaphore_mem>>
    tpu.enqueue_dma source(%10 : memref<64x128xbf16, #tpu.memory_space<any>>) target(%12 : memref<64x128xbf16, #tpu.memory_space<vmem>>) target_semaphore(%14 : memref<!tpu.dma_semaphore, #tpu.memory_space<semaphore_mem>>)
    %c0_i32_12 = arith.constant 0 : i32
    %c0_i32_13 = arith.constant 0 : i32
    %c0_i32_14 = arith.constant 0 : i32
    %c0_i32_15 = arith.constant 0 : i32
    %c0_i32_16 = arith.constant 0 : i32
    %15 = tpu.memref_slice %arg2[%c0_i32_12, %c0_i32_15, %c0_i32_16] : memref<2x64x128xbf16, #tpu.memory_space<any>> -> memref<1x64x128xbf16, #tpu.memory_space<any>>
    %16 = tpu.memref_squeeze %15 : memref<1x64x128xbf16, #tpu.memory_space<any>> -> memref<64x128xbf16, #tpu.memory_space<any>>
    %c0_i32_17 = arith.constant 0 : i32
    %c0_i32_18 = arith.constant 0 : i32
    %17 = tpu.memref_slice %arg16[%c0_i32_13, %c0_i32_17, %c0_i32_18] : memref<2x64x128xbf16, #tpu.memory_space<vmem>> -> memref<1x64x128xbf16, #tpu.memory_space<vmem>>
    %18 = tpu.memref_squeeze %17 : memref<1x64x128xbf16, #tpu.memory_space<vmem>> -> memref<64x128xbf16, #tpu.memory_space<vmem>>
    %19 = tpu.memref_slice %arg17[%c0_i32_14] : memref<2x!tpu.dma_semaphore, #tpu.memory_space<semaphore_mem>> -> memref<1x!tpu.dma_semaphore, #tpu.memory_space<semaphore_mem>>
    %20 = tpu.memref_squeeze %19 : memref<1x!tpu.dma_semaphore, #tpu.memory_space<semaphore_mem>> -> memref<!tpu.dma_semaphore, #tpu.memory_space<semaphore_mem>>
    tpu.wait_dma2 semaphore(%20 : memref<!tpu.dma_semaphore, #tpu.memory_space<semaphore_mem>>) src(%16 : memref<64x128xbf16, #tpu.memory_space<any>>) dst(%18 : memref<64x128xbf16, #tpu.memory_space<vmem>>)
    %c1_i32 = arith.constant 1 : i32
    %c1_i32_19 = arith.constant 1 : i32
    %c1_i32_20 = arith.constant 1 : i32
    %c0_i32_21 = arith.constant 0 : i32
    %c0_i32_22 = arith.constant 0 : i32
    %21 = tpu.memref_slice %arg2[%c1_i32, %c0_i32_21, %c0_i32_22] : memref<2x64x128xbf16, #tpu.memory_space<any>> -> memref<1x64x128xbf16, #tpu.memory_space<any>>
    %22 = tpu.memref_squeeze %21 : memref<1x64x128xbf16, #tpu.memory_space<any>> -> memref<64x128xbf16, #tpu.memory_space<any>>
    %c0_i32_23 = arith.constant 0 : i32
    %c0_i32_24 = arith.constant 0 : i32
    %23 = tpu.memref_slice %arg16[%c1_i32_19, %c0_i32_23, %c0_i32_24] : memref<2x64x128xbf16, #tpu.memory_space<vmem>> -> memref<1x64x128xbf16, #tpu.memory_space<vmem>>
    %24 = tpu.memref_squeeze %23 : memref<1x64x128xbf16, #tpu.memory_space<vmem>> -> memref<64x128xbf16, #tpu.memory_space<vmem>>
    %25 = tpu.memref_slice %arg17[%c1_i32_20] : memref<2x!tpu.dma_semaphore, #tpu.memory_space<semaphore_mem>> -> memref<1x!tpu.dma_semaphore, #tpu.memory_space<semaphore_mem>>
    %26 = tpu.memref_squeeze %25 : memref<1x!tpu.dma_semaphore, #tpu.memory_space<semaphore_mem>> -> memref<!tpu.dma_semaphore, #tpu.memory_space<semaphore_mem>>
    tpu.enqueue_dma source(%22 : memref<64x128xbf16, #tpu.memory_space<any>>) target(%24 : memref<64x128xbf16, #tpu.memory_space<vmem>>) target_semaphore(%26 : memref<!tpu.dma_semaphore, #tpu.memory_space<semaphore_mem>>)
    %c0_25 = arith.constant 0 : index
    %c0_26 = arith.constant 0 : index
    %c0_27 = arith.constant 0 : index
    %27 = vector.load %arg16[%c0_25, %c0_26, %c0_27] : memref<2x64x128xbf16, #tpu.memory_space<vmem>>, vector<1x64x128xbf16>
    %28 = vector.shape_cast %27 : vector<1x64x128xbf16> to vector<64x128xbf16>
    %c0_28 = arith.constant 0 : index
    %c0_29 = arith.constant 0 : index
    %29 = vector.load %arg3[%c0_28, %c0_29] : memref<128x128xbf16, #tpu.memory_space<vmem>>, vector<128x128xbf16>
    %cst_30 = arith.constant dense<0.000000e+00> : vector<64x128xf32>
    %30 = tpu.matmul %28, %29, %cst_30 {dimension_numbers = #tpu.dot_dimension_numbers<[1], [0], [0], [1], [0, 0, 1, 1], [], []>} : vector<64x128xbf16>, vector<128x128xbf16>, vector<64x128xf32> -> vector<64x128xf32>
    %c0_31 = arith.constant 0 : index
    %c0_32 = arith.constant 0 : index
    %31 = vector.load %arg3[%c0_31, %c0_32] : memref<128x128xbf16, #tpu.memory_space<vmem>>, vector<64x128xbf16>
    %32 = arith.extf %31 : vector<64x128xbf16> to vector<64x128xf32>
    %33 = vector.broadcast %8 : f32 to vector<64x128xf32>
    %34 = arith.mulf %33, %32 : vector<64x128xf32>
    %35 = arith.addf %30, %34 : vector<64x128xf32>
    %36 = arith.truncf %35 : vector<64x128xf32> to vector<64x128xbf16>
    %cst_33 = arith.constant dense<0.000000e+00> : vector<64x128xf32>
    %37 = tpu.matmul %36, %1, %cst_33 {dimension_numbers = #tpu.dot_dimension_numbers<[1], [0], [0], [1], [0, 0, 1, 1], [], []>} : vector<64x128xbf16>, vector<128x128xbf16>, vector<64x128xf32> -> vector<64x128xf32>
    %38 = vector.broadcast %3 : vector<1x128xf32> to vector<64x128xf32>
    %39 = arith.addf %37, %38 : vector<64x128xf32>
    %cst_34 = arith.constant 0.000000e+00 : f32
    %40 = vector.broadcast %cst_34 : f32 to vector<64x128xf32>
    %41 = arith.maximumf %39, %40 : vector<64x128xf32>
    %42 = arith.truncf %41 : vector<64x128xf32> to vector<64x128xbf16>
    %cst_35 = arith.constant dense<0.000000e+00> : vector<64x128xf32>
    %43 = tpu.matmul %42, %2, %cst_35 {dimension_numbers = #tpu.dot_dimension_numbers<[1], [0], [0], [1], [0, 0, 1, 1], [], []>} : vector<64x128xbf16>, vector<128x128xbf16>, vector<64x128xf32> -> vector<64x128xf32>
    %44 = vector.broadcast %4 : vector<1x128xf32> to vector<64x128xf32>
    %45 = arith.addf %43, %44 : vector<64x128xf32>
    %cst_36 = arith.constant 0.000000e+00 : f32
    %46 = vector.broadcast %cst_36 : f32 to vector<64x128xf32>
    %47 = arith.maximumf %45, %46 : vector<64x128xf32>
    %48 = vector.broadcast %5 : vector<1x128xf32> to vector<64x128xf32>
    %49 = arith.mulf %47, %48 : vector<64x128xf32>
    %50 = vector.broadcast %6 : vector<1x128xf32> to vector<64x128xf32>
    %51 = arith.addf %49, %50 : vector<64x128xf32>
    %cst_37 = arith.constant 0.000000e+00 : f32
    %52 = vector.broadcast %cst_37 : f32 to vector<64x128xf32>
    %53 = arith.maximumf %51, %52 : vector<64x128xf32>
    %54 = arith.truncf %53 : vector<64x128xf32> to vector<64x128xbf16>
    %c0_38 = arith.constant 0 : index
    %c0_39 = arith.constant 0 : index
    %55 = vector.load %arg14[%c0_38, %c0_39] : memref<128x128xbf16, #tpu.memory_space<vmem>>, vector<64x128xbf16>
    tpu.vector_store %arg14[%c0_38, %c0_39], %54 {strides = array<i32>} : memref<128x128xbf16, #tpu.memory_space<vmem>>, vector<64x128xbf16>,
    %c1_i32_40 = arith.constant 1 : i32
    %c1_i32_41 = arith.constant 1 : i32
    %c1_i32_42 = arith.constant 1 : i32
    %c0_i32_43 = arith.constant 0 : i32
    %c0_i32_44 = arith.constant 0 : i32
    %56 = tpu.memref_slice %arg2[%c1_i32_40, %c0_i32_43, %c0_i32_44] : memref<2x64x128xbf16, #tpu.memory_space<any>> -> memref<1x64x128xbf16, #tpu.memory_space<any>>
    %57 = tpu.memref_squeeze %56 : memref<1x64x128xbf16, #tpu.memory_space<any>> -> memref<64x128xbf16, #tpu.memory_space<any>>
    %c0_i32_45 = arith.constant 0 : i32
    %c0_i32_46 = arith.constant 0 : i32
    %58 = tpu.memref_slice %arg16[%c1_i32_41, %c0_i32_45, %c0_i32_46] : memref<2x64x128xbf16, #tpu.memory_space<vmem>> -> memref<1x64x128xbf16, #tpu.memory_space<vmem>>
    %59 = tpu.memref_squeeze %58 : memref<1x64x128xbf16, #tpu.memory_space<vmem>> -> memref<64x128xbf16, #tpu.memory_space<vmem>>
    %60 = tpu.memref_slice %arg17[%c1_i32_42] : memref<2x!tpu.dma_semaphore, #tpu.memory_space<semaphore_mem>> -> memref<1x!tpu.dma_semaphore, #tpu.memory_space<semaphore_mem>>
    %61 = tpu.memref_squeeze %60 : memref<1x!tpu.dma_semaphore, #tpu.memory_space<semaphore_mem>> -> memref<!tpu.dma_semaphore, #tpu.memory_space<semaphore_mem>>
    tpu.wait_dma2 semaphore(%61 : memref<!tpu.dma_semaphore, #tpu.memory_space<semaphore_mem>>) src(%57 : memref<64x128xbf16, #tpu.memory_space<any>>) dst(%59 : memref<64x128xbf16, #tpu.memory_space<vmem>>)
    %c1 = arith.constant 1 : index
    %c0_47 = arith.constant 0 : index
    %c0_48 = arith.constant 0 : index
    %62 = vector.load %arg16[%c1, %c0_47, %c0_48] : memref<2x64x128xbf16, #tpu.memory_space<vmem>>, vector<1x64x128xbf16>
    %63 = vector.shape_cast %62 : vector<1x64x128xbf16> to vector<64x128xbf16>
    %c0_49 = arith.constant 0 : index
    %c0_50 = arith.constant 0 : index
    %64 = vector.load %arg3[%c0_49, %c0_50] : memref<128x128xbf16, #tpu.memory_space<vmem>>, vector<128x128xbf16>
    %cst_51 = arith.constant dense<0.000000e+00> : vector<64x128xf32>
    %65 = tpu.matmul %63, %64, %cst_51 {dimension_numbers = #tpu.dot_dimension_numbers<[1], [0], [0], [1], [0, 0, 1, 1], [], []>} : vector<64x128xbf16>, vector<128x128xbf16>, vector<64x128xf32> -> vector<64x128xf32>
    %c64 = arith.constant 64 : index
    %c0_52 = arith.constant 0 : index
    %66 = vector.load %arg3[%c64, %c0_52] : memref<128x128xbf16, #tpu.memory_space<vmem>>, vector<64x128xbf16>
    %67 = arith.extf %66 : vector<64x128xbf16> to vector<64x128xf32>
    %68 = vector.broadcast %8 : f32 to vector<64x128xf32>
    %69 = arith.mulf %68, %67 : vector<64x128xf32>
    %70 = arith.addf %65, %69 : vector<64x128xf32>
    %71 = arith.truncf %70 : vector<64x128xf32> to vector<64x128xbf16>
    %cst_53 = arith.constant dense<0.000000e+00> : vector<64x128xf32>
    %72 = tpu.matmul %71, %1, %cst_53 {dimension_numbers = #tpu.dot_dimension_numbers<[1], [0], [0], [1], [0, 0, 1, 1], [], []>} : vector<64x128xbf16>, vector<128x128xbf16>, vector<64x128xf32> -> vector<64x128xf32>
    %73 = vector.broadcast %3 : vector<1x128xf32> to vector<64x128xf32>
    %74 = arith.addf %72, %73 : vector<64x128xf32>
    %cst_54 = arith.constant 0.000000e+00 : f32
    %75 = vector.broadcast %cst_54 : f32 to vector<64x128xf32>
    %76 = arith.maximumf %74, %75 : vector<64x128xf32>
    %77 = arith.truncf %76 : vector<64x128xf32> to vector<64x128xbf16>
    %cst_55 = arith.constant dense<0.000000e+00> : vector<64x128xf32>
    %78 = tpu.matmul %77, %2, %cst_55 {dimension_numbers = #tpu.dot_dimension_numbers<[1], [0], [0], [1], [0, 0, 1, 1], [], []>} : vector<64x128xbf16>, vector<128x128xbf16>, vector<64x128xf32> -> vector<64x128xf32>
    %79 = vector.broadcast %4 : vector<1x128xf32> to vector<64x128xf32>
    %80 = arith.addf %78, %79 : vector<64x128xf32>
    %cst_56 = arith.constant 0.000000e+00 : f32
    %81 = vector.broadcast %cst_56 : f32 to vector<64x128xf32>
    %82 = arith.maximumf %80, %81 : vector<64x128xf32>
    %83 = vector.broadcast %5 : vector<1x128xf32> to vector<64x128xf32>
    %84 = arith.mulf %82, %83 : vector<64x128xf32>
    %85 = vector.broadcast %6 : vector<1x128xf32> to vector<64x128xf32>
    %86 = arith.addf %84, %85 : vector<64x128xf32>
    %cst_57 = arith.constant 0.000000e+00 : f32
    %87 = vector.broadcast %cst_57 : f32 to vector<64x128xf32>
    %88 = arith.maximumf %86, %87 : vector<64x128xf32>
    %89 = arith.truncf %88 : vector<64x128xf32> to vector<64x128xbf16>
    %c64_58 = arith.constant 64 : index
    %c0_59 = arith.constant 0 : index
    %90 = vector.load %arg14[%c64_58, %c0_59] : memref<128x128xbf16, #tpu.memory_space<vmem>>, vector<64x128xbf16>
    tpu.vector_store %arg14[%c64_58, %c0_59], %89 {strides = array<i32>} : memref<128x128xbf16, #tpu.memory_space<vmem>>, vector<64x128xbf16>,
    %c0_60 = arith.constant 0 : index
    %c0_61 = arith.constant 0 : index
    %91 = vector.load %arg7[%c0_60, %c0_61] : memref<128x128xbf16, #tpu.memory_space<vmem>>, vector<128x128xbf16>
    %c0_62 = arith.constant 0 : index
    %c0_63 = arith.constant 0 : index
    %92 = vector.load %arg8[%c0_62, %c0_63] : memref<128x128xbf16, #tpu.memory_space<vmem>>, vector<128x128xbf16>
    %93 = vector.extract_strided_slice %0 {offsets = [4, 0], sizes = [1, 128], strides = [1, 1]} : vector<16x128xf32> to vector<1x128xf32>
    %94 = vector.extract_strided_slice %0 {offsets = [5, 0], sizes = [1, 128], strides = [1, 1]} : vector<16x128xf32> to vector<1x128xf32>
    %95 = vector.extract_strided_slice %0 {offsets = [6, 0], sizes = [1, 128], strides = [1, 1]} : vector<16x128xf32> to vector<1x128xf32>
    %96 = vector.extract_strided_slice %0 {offsets = [7, 0], sizes = [1, 128], strides = [1, 1]} : vector<16x128xf32> to vector<1x128xf32>
    %c1_64 = arith.constant 1 : index
    %97 = memref.load %arg0[%c1_64] : memref<2xf32, #tpu.memory_space<smem>>
    %cst_65 = arith.constant 1.000000e+00 : f32
    %98 = arith.addf %cst_65, %97 : f32
    %c0_i32_66 = arith.constant 0 : i32
    %c0_i32_67 = arith.constant 0 : i32
    %c0_i32_68 = arith.constant 0 : i32
    %c0_i32_69 = arith.constant 0 : i32
    %c0_i32_70 = arith.constant 0 : i32
    %99 = tpu.memref_slice %arg2[%c0_i32_66, %c0_i32_69, %c0_i32_70] : memref<2x64x128xbf16, #tpu.memory_space<any>> -> memref<1x64x128xbf16, #tpu.memory_space<any>>
    %100 = tpu.memref_squeeze %99 : memref<1x64x128xbf16, #tpu.memory_space<any>> -> memref<64x128xbf16, #tpu.memory_space<any>>
    %c0_i32_71 = arith.constant 0 : i32
    %c0_i32_72 = arith.constant 0 : i32
    %101 = tpu.memref_slice %arg16[%c0_i32_67, %c0_i32_71, %c0_i32_72] : memref<2x64x128xbf16, #tpu.memory_space<vmem>> -> memref<1x64x128xbf16, #tpu.memory_space<vmem>>
    %102 = tpu.memref_squeeze %101 : memref<1x64x128xbf16, #tpu.memory_space<vmem>> -> memref<64x128xbf16, #tpu.memory_space<vmem>>
    %103 = tpu.memref_slice %arg17[%c0_i32_68] : memref<2x!tpu.dma_semaphore, #tpu.memory_space<semaphore_mem>> -> memref<1x!tpu.dma_semaphore, #tpu.memory_space<semaphore_mem>>
    %104 = tpu.memref_squeeze %103 : memref<1x!tpu.dma_semaphore, #tpu.memory_space<semaphore_mem>> -> memref<!tpu.dma_semaphore, #tpu.memory_space<semaphore_mem>>
    tpu.enqueue_dma source(%100 : memref<64x128xbf16, #tpu.memory_space<any>>) target(%102 : memref<64x128xbf16, #tpu.memory_space<vmem>>) target_semaphore(%104 : memref<!tpu.dma_semaphore, #tpu.memory_space<semaphore_mem>>)
    %c0_i32_73 = arith.constant 0 : i32
    %c0_i32_74 = arith.constant 0 : i32
    %c0_i32_75 = arith.constant 0 : i32
    %c0_i32_76 = arith.constant 0 : i32
    %c0_i32_77 = arith.constant 0 : i32
    %105 = tpu.memref_slice %arg2[%c0_i32_73, %c0_i32_76, %c0_i32_77] : memref<2x64x128xbf16, #tpu.memory_space<any>> -> memref<1x64x128xbf16, #tpu.memory_space<any>>
    %106 = tpu.memref_squeeze %105 : memref<1x64x128xbf16, #tpu.memory_space<any>> -> memref<64x128xbf16, #tpu.memory_space<any>>
    %c0_i32_78 = arith.constant 0 : i32
    %c0_i32_79 = arith.constant 0 : i32
    %107 = tpu.memref_slice %arg16[%c0_i32_74, %c0_i32_78, %c0_i32_79] : memref<2x64x128xbf16, #tpu.memory_space<vmem>> -> memref<1x64x128xbf16, #tpu.memory_space<vmem>>
    %108 = tpu.memref_squeeze %107 : memref<1x64x128xbf16, #tpu.memory_space<vmem>> -> memref<64x128xbf16, #tpu.memory_space<vmem>>
    %109 = tpu.memref_slice %arg17[%c0_i32_75] : memref<2x!tpu.dma_semaphore, #tpu.memory_space<semaphore_mem>> -> memref<1x!tpu.dma_semaphore, #tpu.memory_space<semaphore_mem>>
    %110 = tpu.memref_squeeze %109 : memref<1x!tpu.dma_semaphore, #tpu.memory_space<semaphore_mem>> -> memref<!tpu.dma_semaphore, #tpu.memory_space<semaphore_mem>>
    tpu.wait_dma2 semaphore(%110 : memref<!tpu.dma_semaphore, #tpu.memory_space<semaphore_mem>>) src(%106 : memref<64x128xbf16, #tpu.memory_space<any>>) dst(%108 : memref<64x128xbf16, #tpu.memory_space<vmem>>)
    %c1_i32_80 = arith.constant 1 : i32
    %c1_i32_81 = arith.constant 1 : i32
    %c1_i32_82 = arith.constant 1 : i32
    %c0_i32_83 = arith.constant 0 : i32
    %c0_i32_84 = arith.constant 0 : i32
    %111 = tpu.memref_slice %arg2[%c1_i32_80, %c0_i32_83, %c0_i32_84] : memref<2x64x128xbf16, #tpu.memory_space<any>> -> memref<1x64x128xbf16, #tpu.memory_space<any>>
    %112 = tpu.memref_squeeze %111 : memref<1x64x128xbf16, #tpu.memory_space<any>> -> memref<64x128xbf16, #tpu.memory_space<any>>
    %c0_i32_85 = arith.constant 0 : i32
    %c0_i32_86 = arith.constant 0 : i32
    %113 = tpu.memref_slice %arg16[%c1_i32_81, %c0_i32_85, %c0_i32_86] : memref<2x64x128xbf16, #tpu.memory_space<vmem>> -> memref<1x64x128xbf16, #tpu.memory_space<vmem>>
    %114 = tpu.memref_squeeze %113 : memref<1x64x128xbf16, #tpu.memory_space<vmem>> -> memref<64x128xbf16, #tpu.memory_space<vmem>>
    %115 = tpu.memref_slice %arg17[%c1_i32_82] : memref<2x!tpu.dma_semaphore, #tpu.memory_space<semaphore_mem>> -> memref<1x!tpu.dma_semaphore, #tpu.memory_space<semaphore_mem>>
    %116 = tpu.memref_squeeze %115 : memref<1x!tpu.dma_semaphore, #tpu.memory_space<semaphore_mem>> -> memref<!tpu.dma_semaphore, #tpu.memory_space<semaphore_mem>>
    tpu.enqueue_dma source(%112 : memref<64x128xbf16, #tpu.memory_space<any>>) target(%114 : memref<64x128xbf16, #tpu.memory_space<vmem>>) target_semaphore(%116 : memref<!tpu.dma_semaphore, #tpu.memory_space<semaphore_mem>>)
    %c0_87 = arith.constant 0 : index
    %c0_88 = arith.constant 0 : index
    %c0_89 = arith.constant 0 : index
    %117 = vector.load %arg16[%c0_87, %c0_88, %c0_89] : memref<2x64x128xbf16, #tpu.memory_space<vmem>>, vector<1x64x128xbf16>
    %118 = vector.shape_cast %117 : vector<1x64x128xbf16> to vector<64x128xbf16>
    %c0_90 = arith.constant 0 : index
    %c0_91 = arith.constant 0 : index
    %119 = vector.load %arg14[%c0_90, %c0_91] : memref<128x128xbf16, #tpu.memory_space<vmem>>, vector<128x128xbf16>
    %cst_92 = arith.constant dense<0.000000e+00> : vector<64x128xf32>
    %120 = tpu.matmul %118, %119, %cst_92 {dimension_numbers = #tpu.dot_dimension_numbers<[1], [0], [0], [1], [0, 0, 1, 1], [], []>} : vector<64x128xbf16>, vector<128x128xbf16>, vector<64x128xf32> -> vector<64x128xf32>
    %c0_93 = arith.constant 0 : index
    %c0_94 = arith.constant 0 : index
    %121 = vector.load %arg14[%c0_93, %c0_94] : memref<128x128xbf16, #tpu.memory_space<vmem>>, vector<64x128xbf16>
    %122 = arith.extf %121 : vector<64x128xbf16> to vector<64x128xf32>
    %123 = vector.broadcast %98 : f32 to vector<64x128xf32>
    %124 = arith.mulf %123, %122 : vector<64x128xf32>
    %125 = arith.addf %120, %124 : vector<64x128xf32>
    %126 = arith.truncf %125 : vector<64x128xf32> to vector<64x128xbf16>
    %cst_95 = arith.constant dense<0.000000e+00> : vector<64x128xf32>
    %127 = tpu.matmul %126, %91, %cst_95 {dimension_numbers = #tpu.dot_dimension_numbers<[1], [0], [0], [1], [0, 0, 1, 1], [], []>} : vector<64x128xbf16>, vector<128x128xbf16>, vector<64x128xf32> -> vector<64x128xf32>
    %128 = vector.broadcast %93 : vector<1x128xf32> to vector<64x128xf32>
    %129 = arith.addf %127, %128 : vector<64x128xf32>
    %cst_96 = arith.constant 0.000000e+00 : f32
    %130 = vector.broadcast %cst_96 : f32 to vector<64x128xf32>
    %131 = arith.maximumf %129, %130 : vector<64x128xf32>
    %132 = arith.truncf %131 : vector<64x128xf32> to vector<64x128xbf16>
    %cst_97 = arith.constant dense<0.000000e+00> : vector<64x128xf32>
    %133 = tpu.matmul %132, %92, %cst_97 {dimension_numbers = #tpu.dot_dimension_numbers<[1], [0], [0], [1], [0, 0, 1, 1], [], []>} : vector<64x128xbf16>, vector<128x128xbf16>, vector<64x128xf32> -> vector<64x128xf32>
    %134 = vector.broadcast %94 : vector<1x128xf32> to vector<64x128xf32>
    %135 = arith.addf %133, %134 : vector<64x128xf32>
    %cst_98 = arith.constant 0.000000e+00 : f32
    %136 = vector.broadcast %cst_98 : f32 to vector<64x128xf32>
    %137 = arith.maximumf %135, %136 : vector<64x128xf32>
    %138 = vector.broadcast %95 : vector<1x128xf32> to vector<64x128xf32>
    %139 = arith.mulf %137, %138 : vector<64x128xf32>
    %140 = vector.broadcast %96 : vector<1x128xf32> to vector<64x128xf32>
    %141 = arith.addf %139, %140 : vector<64x128xf32>
    %cst_99 = arith.constant 0.000000e+00 : f32
    %142 = vector.broadcast %cst_99 : f32 to vector<64x128xf32>
    %143 = arith.maximumf %141, %142 : vector<64x128xf32>
    %144 = arith.truncf %143 : vector<64x128xf32> to vector<64x128xbf16>
    %c0_100 = arith.constant 0 : index
    %c0_101 = arith.constant 0 : index
    %145 = vector.load %arg15[%c0_100, %c0_101] : memref<128x128xbf16, #tpu.memory_space<vmem>>, vector<64x128xbf16>
    tpu.vector_store %arg15[%c0_100, %c0_101], %144 {strides = array<i32>} : memref<128x128xbf16, #tpu.memory_space<vmem>>, vector<64x128xbf16>,
    %c1_i32_102 = arith.constant 1 : i32
    %c1_i32_103 = arith.constant 1 : i32
    %c1_i32_104 = arith.constant 1 : i32
    %c0_i32_105 = arith.constant 0 : i32
    %c0_i32_106 = arith.constant 0 : i32
    %146 = tpu.memref_slice %arg2[%c1_i32_102, %c0_i32_105, %c0_i32_106] : memref<2x64x128xbf16, #tpu.memory_space<any>> -> memref<1x64x128xbf16, #tpu.memory_space<any>>
    %147 = tpu.memref_squeeze %146 : memref<1x64x128xbf16, #tpu.memory_space<any>> -> memref<64x128xbf16, #tpu.memory_space<any>>
    %c0_i32_107 = arith.constant 0 : i32
    %c0_i32_108 = arith.constant 0 : i32
    %148 = tpu.memref_slice %arg16[%c1_i32_103, %c0_i32_107, %c0_i32_108] : memref<2x64x128xbf16, #tpu.memory_space<vmem>> -> memref<1x64x128xbf16, #tpu.memory_space<vmem>>
    %149 = tpu.memref_squeeze %148 : memref<1x64x128xbf16, #tpu.memory_space<vmem>> -> memref<64x128xbf16, #tpu.memory_space<vmem>>
    %150 = tpu.memref_slice %arg17[%c1_i32_104] : memref<2x!tpu.dma_semaphore, #tpu.memory_space<semaphore_mem>> -> memref<1x!tpu.dma_semaphore, #tpu.memory_space<semaphore_mem>>
    %151 = tpu.memref_squeeze %150 : memref<1x!tpu.dma_semaphore, #tpu.memory_space<semaphore_mem>> -> memref<!tpu.dma_semaphore, #tpu.memory_space<semaphore_mem>>
    tpu.wait_dma2 semaphore(%151 : memref<!tpu.dma_semaphore, #tpu.memory_space<semaphore_mem>>) src(%147 : memref<64x128xbf16, #tpu.memory_space<any>>) dst(%149 : memref<64x128xbf16, #tpu.memory_space<vmem>>)
    %c1_109 = arith.constant 1 : index
    %c0_110 = arith.constant 0 : index
    %c0_111 = arith.constant 0 : index
    %152 = vector.load %arg16[%c1_109, %c0_110, %c0_111] : memref<2x64x128xbf16, #tpu.memory_space<vmem>>, vector<1x64x128xbf16>
    %153 = vector.shape_cast %152 : vector<1x64x128xbf16> to vector<64x128xbf16>
    %c0_112 = arith.constant 0 : index
    %c0_113 = arith.constant 0 : index
    %154 = vector.load %arg14[%c0_112, %c0_113] : memref<128x128xbf16, #tpu.memory_space<vmem>>, vector<128x128xbf16>
    %cst_114 = arith.constant dense<0.000000e+00> : vector<64x128xf32>
    %155 = tpu.matmul %153, %154, %cst_114 {dimension_numbers = #tpu.dot_dimension_numbers<[1], [0], [0], [1], [0, 0, 1, 1], [], []>} : vector<64x128xbf16>, vector<128x128xbf16>, vector<64x128xf32> -> vector<64x128xf32>
    %c64_115 = arith.constant 64 : index
    %c0_116 = arith.constant 0 : index
    %156 = vector.load %arg14[%c64_115, %c0_116] : memref<128x128xbf16, #tpu.memory_space<vmem>>, vector<64x128xbf16>
    %157 = arith.extf %156 : vector<64x128xbf16> to vector<64x128xf32>
    %158 = vector.broadcast %98 : f32 to vector<64x128xf32>
    %159 = arith.mulf %158, %157 : vector<64x128xf32>
    %160 = arith.addf %155, %159 : vector<64x128xf32>
    %161 = arith.truncf %160 : vector<64x128xf32> to vector<64x128xbf16>
    %cst_117 = arith.constant dense<0.000000e+00> : vector<64x128xf32>
    %162 = tpu.matmul %161, %91, %cst_117 {dimension_numbers = #tpu.dot_dimension_numbers<[1], [0], [0], [1], [0, 0, 1, 1], [], []>} : vector<64x128xbf16>, vector<128x128xbf16>, vector<64x128xf32> -> vector<64x128xf32>
    %163 = vector.broadcast %93 : vector<1x128xf32> to vector<64x128xf32>
    %164 = arith.addf %162, %163 : vector<64x128xf32>
    %cst_118 = arith.constant 0.000000e+00 : f32
    %165 = vector.broadcast %cst_118 : f32 to vector<64x128xf32>
    %166 = arith.maximumf %164, %165 : vector<64x128xf32>
    %167 = arith.truncf %166 : vector<64x128xf32> to vector<64x128xbf16>
    %cst_119 = arith.constant dense<0.000000e+00> : vector<64x128xf32>
    %168 = tpu.matmul %167, %92, %cst_119 {dimension_numbers = #tpu.dot_dimension_numbers<[1], [0], [0], [1], [0, 0, 1, 1], [], []>} : vector<64x128xbf16>, vector<128x128xbf16>, vector<64x128xf32> -> vector<64x128xf32>
    %169 = vector.broadcast %94 : vector<1x128xf32> to vector<64x128xf32>
    %170 = arith.addf %168, %169 : vector<64x128xf32>
    %cst_120 = arith.constant 0.000000e+00 : f32
    %171 = vector.broadcast %cst_120 : f32 to vector<64x128xf32>
    %172 = arith.maximumf %170, %171 : vector<64x128xf32>
    %173 = vector.broadcast %95 : vector<1x128xf32> to vector<64x128xf32>
    %174 = arith.mulf %172, %173 : vector<64x128xf32>
    %175 = vector.broadcast %96 : vector<1x128xf32> to vector<64x128xf32>
    %176 = arith.addf %174, %175 : vector<64x128xf32>
    %cst_121 = arith.constant 0.000000e+00 : f32
    %177 = vector.broadcast %cst_121 : f32 to vector<64x128xf32>
    %178 = arith.maximumf %176, %177 : vector<64x128xf32>
    %179 = arith.truncf %178 : vector<64x128xf32> to vector<64x128xbf16>
    %c64_122 = arith.constant 64 : index
    %c0_123 = arith.constant 0 : index
    %180 = vector.load %arg15[%c64_122, %c0_123] : memref<128x128xbf16, #tpu.memory_space<vmem>>, vector<64x128xbf16>
    tpu.vector_store %arg15[%c64_122, %c0_123], %179 {strides = array<i32>} : memref<128x128xbf16, #tpu.memory_space<vmem>>, vector<64x128xbf16>,
    %181 = tpu.iota {dimensions = array<i32: 1>} : vector<16x128xi32>
    %c0_124 = arith.constant 0 : index
    %c0_125 = arith.constant 0 : index
    %182 = vector.load %arg1[%c0_124, %c0_125] : memref<16x128xi32, #tpu.memory_space<vmem>>, vector<16x128xi32>
    %183 = vector.extract_strided_slice %182 {offsets = [0, 0], sizes = [16, 1], strides = [1, 1]} : vector<16x128xi32> to vector<16x1xi32>
    %184 = vector.broadcast %183 : vector<16x1xi32> to vector<16x128xi32>
    %185 = arith.cmpi eq, %181, %184 : vector<16x128xi32>
    %186 = arith.extui %185 : vector<16x128xi1> to vector<16x128xi32>
    %187 = arith.sitofp %186 : vector<16x128xi32> to vector<16x128xf32>
    %188 = arith.truncf %187 : vector<16x128xf32> to vector<16x128xbf16>
    %c0_126 = arith.constant 0 : index
    %c0_127 = arith.constant 0 : index
    %189 = vector.load %arg15[%c0_126, %c0_127] : memref<128x128xbf16, #tpu.memory_space<vmem>>, vector<128x128xbf16>
    %cst_128 = arith.constant dense<0.000000e+00> : vector<16x128xf32>
    %190 = tpu.matmul %188, %189, %cst_128 {dimension_numbers = #tpu.dot_dimension_numbers<[1], [0], [0], [1], [0, 0, 1, 1], [], []>} : vector<16x128xbf16>, vector<128x128xbf16>, vector<16x128xf32> -> vector<16x128xf32>
    %c0_129 = arith.constant 0 : index
    %c0_130 = arith.constant 0 : index
    %191 = vector.load %arg9[%c0_129, %c0_130] : memref<128x128xbf16, #tpu.memory_space<vmem>>, vector<128x128xbf16>
    %c0_131 = arith.constant 0 : index
    %c0_132 = arith.constant 0 : index
    %192 = vector.load %arg10[%c0_131, %c0_132] : memref<128x128xbf16, #tpu.memory_space<vmem>>, vector<128x128xbf16>
    %c0_133 = arith.constant 0 : index
    %c0_134 = arith.constant 0 : index
    %193 = vector.load %arg11[%c0_133, %c0_134] : memref<128x128xbf16, #tpu.memory_space<vmem>>, vector<128x128xbf16>
    %c0_135 = arith.constant 0 : index
    %c0_136 = arith.constant 0 : index
    %194 = vector.load %arg12[%c0_135, %c0_136] : memref<128x128xbf16, #tpu.memory_space<vmem>>, vector<128x128xbf16>
    %195 = vector.extract_strided_slice %0 {offsets = [8, 0], sizes = [1, 128], strides = [1, 1]} : vector<16x128xf32> to vector<1x128xf32>
    %196 = vector.extract_strided_slice %0 {offsets = [9, 0], sizes = [1, 128], strides = [1, 1]} : vector<16x128xf32> to vector<1x128xf32>
    %197 = vector.extract_strided_slice %0 {offsets = [10, 0], sizes = [1, 128], strides = [1, 1]} : vector<16x128xf32> to vector<1x128xf32>
    %198 = arith.truncf %190 : vector<16x128xf32> to vector<16x128xbf16>
    %cst_137 = arith.constant dense<0.000000e+00> : vector<16x128xf32>
    %199 = tpu.matmul %198, %191, %cst_137 {dimension_numbers = #tpu.dot_dimension_numbers<[1], [0], [0], [1], [0, 0, 1, 1], [], []>} : vector<16x128xbf16>, vector<128x128xbf16>, vector<16x128xf32> -> vector<16x128xf32>
    %200 = vector.broadcast %195 : vector<1x128xf32> to vector<16x128xf32>
    %201 = arith.addf %199, %200 : vector<16x128xf32>
    %cst_138 = arith.constant 0.000000e+00 : f32
    %202 = vector.broadcast %cst_138 : f32 to vector<16x128xf32>
    %203 = arith.maximumf %201, %202 : vector<16x128xf32>
    %204 = vector.extract_strided_slice %203 {offsets = [0, 0], sizes = [8, 128], strides = [1, 1]} : vector<16x128xf32> to vector<8x128xf32>
    %205 = vector.extract_strided_slice %203 {offsets = [8, 0], sizes = [8, 128], strides = [1, 1]} : vector<16x128xf32> to vector<8x128xf32>
    %206 = arith.truncf %204 : vector<8x128xf32> to vector<8x128xbf16>
    %cst_139 = arith.constant dense<0.000000e+00> : vector<8x128xf32>
    %207 = tpu.matmul %206, %192, %cst_139 {dimension_numbers = #tpu.dot_dimension_numbers<[1], [0], [0], [1], [0, 0, 1, 1], [], []>} : vector<8x128xbf16>, vector<128x128xbf16>, vector<8x128xf32> -> vector<8x128xf32>
    %208 = arith.truncf %205 : vector<8x128xf32> to vector<8x128xbf16>
    %cst_140 = arith.constant dense<0.000000e+00> : vector<8x128xf32>
    %209 = tpu.matmul %208, %193, %cst_140 {dimension_numbers = #tpu.dot_dimension_numbers<[1], [0], [0], [1], [0, 0, 1, 1], [], []>} : vector<8x128xbf16>, vector<128x128xbf16>, vector<8x128xf32> -> vector<8x128xf32>
    %210 = arith.addf %207, %209 : vector<8x128xf32>
    %211 = vector.broadcast %196 : vector<1x128xf32> to vector<8x128xf32>
    %212 = arith.addf %210, %211 : vector<8x128xf32>
    %cst_141 = arith.constant 0.000000e+00 : f32
    %213 = vector.broadcast %cst_141 : f32 to vector<8x128xf32>
    %214 = arith.maximumf %212, %213 : vector<8x128xf32>
    %215 = arith.truncf %214 : vector<8x128xf32> to vector<8x128xbf16>
    %cst_142 = arith.constant dense<0.000000e+00> : vector<8x128xf32>
    %216 = tpu.matmul %215, %194, %cst_142 {dimension_numbers = #tpu.dot_dimension_numbers<[1], [0], [0], [1], [0, 0, 1, 1], [], []>} : vector<8x128xbf16>, vector<128x128xbf16>, vector<8x128xf32> -> vector<8x128xf32>
    %217 = vector.broadcast %197 : vector<1x128xf32> to vector<8x128xf32>
    %218 = arith.addf %216, %217 : vector<8x128xf32>
    %c0_143 = arith.constant 0 : index
    %c0_144 = arith.constant 0 : index
    %219 = vector.load %arg13[%c0_143, %c0_144] : memref<8x128xf32, #tpu.memory_space<vmem>>, vector<8x128xf32>
    tpu.vector_store %arg13[%c0_143, %c0_144], %218 {strides = array<i32>} : memref<8x128xf32, #tpu.memory_space<vmem>>, vector<8x128xf32>,
    return
  }
}

</mosaic_0001>

<llo_original>
// kernel: gin_forward.1
$region0: #{gin_forward.1}
  #allocation0 [shape = 'u32[]', space=smem, size = 0x4, offset = 0x4, fixed_abs, tag = 'smem constant byte address 0x4 - core index']
  #allocation1 [shape = 'u32[144,128]{1,0:T(1,128)}', space=vmem, size = 0x12000, scoped, tag = 'internal scratch']
  #allocation2 [shape = 'bf16[128,128]{1,0:T(16,128)(2,1)}', space=vmem, size = 0x8000, scoped, tag = 'scratch operand']
  #allocation3 [shape = 'bf16[128,128]{1,0:T(16,128)(2,1)}', space=vmem, size = 0x8000, scoped, tag = 'scratch operand']
  #allocation4 [shape = 'bf16[2,64,128]{2,1,0:T(16,128)(2,1)}', space=vmem, size = 0x8000, scoped, tag = 'scratch operand']
  #allocation5 [shape = 's32[2]{0}', space=sflag, size = 0x8, scoped, tag = 'scratch operand']
  #allocation10 [shape = 's32[]', space=sflag, size = 0x4, offset = 0, fixed_abs, tag = 'sflag constant byte address 0x0 - dummy sync flag']
  #allocation11 [shape = 's32[]', space=sflag, size = 0x4, offset = 0, fixed_abs, tag = 'sflag constant byte address 0x0 - dummy sync flag']
  #allocation12 [shape = 's32[]', space=sflag, size = 0x4, offset = 0, fixed_abs, tag = 'sflag constant byte address 0x0 - dummy sync flag']
  #allocation13 [shape = 's32[]', space=sflag, size = 0x4, offset = 0, fixed_abs, tag = 'sflag constant byte address 0x0 - dummy sync flag']
  %s0 = inlined_call_operand.vmem [shape: f32[2], index: 0, kind: input, shape index: {}]
  %s1 = inlined_call_operand.vmem [shape: s32[16,128], index: 1, kind: input, shape index: {}]
  %s2 = inlined_call_operand.vmem [shape: bf16[2,64,128], index: 2, kind: input, shape index: {}]
  %s3 = inlined_call_operand.vmem [shape: bf16[128,128], index: 3, kind: input, shape index: {}]
  %s4 = inlined_call_operand.vmem [shape: f32[16,128], index: 4, kind: input, shape index: {}]
  %s5 = inlined_call_operand.vmem [shape: bf16[128,128], index: 5, kind: input, shape index: {}]
  %s6 = inlined_call_operand.vmem [shape: bf16[128,128], index: 6, kind: input, shape index: {}]
  %s7 = inlined_call_operand.vmem [shape: bf16[128,128], index: 7, kind: input, shape index: {}]
  %s8 = inlined_call_operand.vmem [shape: bf16[128,128], index: 8, kind: input, shape index: {}]
  %s9 = inlined_call_operand.vmem [shape: bf16[128,128], index: 9, kind: input, shape index: {}]
  %s10 = inlined_call_operand.vmem [shape: bf16[128,128], index: 10, kind: input, shape index: {}]
  %s11 = inlined_call_operand.vmem [shape: bf16[128,128], index: 11, kind: input, shape index: {}]
  %s12 = inlined_call_operand.vmem [shape: bf16[128,128], index: 12, kind: input, shape index: {}]
  %s13 = inlined_call_operand.hbm [shape: f32[8,128], index: 13, kind: output, shape index: {}]
  %s14 = sld [smem:[#allocation0]]
  $region198: #{gin_forward.1} parent=0
    _
  %s16 = ssub.s32 1, %s14
  %s17 = scalar_select 0, %s16, %s14
  $region1: #{gin_forward.1} parent=0
    #allocation6 [shape = 'u8[512]{0}', space=smem, size = 0x200, scoped, tag = 'input window, operand 0, single buffered']
    #allocation7 [shape = 's32[1]{0}', space=sflag, size = 0x4, scoped, tag = 'scoped memory for gin_forward.1']
    #allocation8 [shape = 's32[1]{0}', space=sflag, size = 0x4, scoped, tag = 'scoped memory for gin_forward.1']
    #allocation9 [shape = 'u8[4096]{0}', space=vmem, size = 0x1000, scoped, tag = 'output window, operand 0, single buffered']
    %18 = vsyncpa [#allocation8], 0
    %19 = vsyncpa [#allocation7], 0
    // Predicated region
    $region2: #{gin_forward.1} parent=1 // pred_check
      _
    $region3: #{gin_forward.1} parent=1 // pred_check_branch
      %21 = sbr.rel (0) target = $region5
    $region4: #{gin_forward.1} parent=1 // pred_region
      %s23 = ssub.s32 16, 16
      %24 = vsyncadd [#allocation8], %s23
      %s26 = sshll.u32 %s0, 4
      %s27 = int_to_ptr.vmem [resolvable:$true] %s26
      %29 = dma.vmem_to_smem %s27, 16, [#allocation6], [#allocation8]
    $region5: #{gin_forward.1} parent=1 // pred_fallthru
      _
    // Predicated region
    $region6: #{gin_forward.1} parent=1 // pred_check
      _
    $region7: #{gin_forward.1} parent=1 // pred_check_branch
      %31 = sbr.rel (0) target = $region9
    $region8: #{gin_forward.1} parent=1 // pred_region
      _
    $region9: #{gin_forward.1} parent=1 // pred_fallthru
      _
    // Predicated region
    $region10: #{gin_forward.1} parent=1 // pred_check
      _
    $region11: #{gin_forward.1} parent=1 // pred_check_branch
      %33 = sbr.rel (0) target = $region13
    $region12: #{gin_forward.1} parent=1 // pred_region
      _
    $region13: #{gin_forward.1} parent=1 // pred_fallthru
      _
    // Predicated region
    $region14: #{gin_forward.1} parent=1 // pred_check
      _
    $region15: #{gin_forward.1} parent=1 // pred_check_branch
      %35 = sbr.rel (0) target = $region17
    $region16: #{gin_forward.1} parent=1 // pred_region
      _
    $region17: #{gin_forward.1} parent=1 // pred_fallthru
      _
    // Predicated region
    $region18: #{gin_forward.1} parent=1 // pred_check
      _
    $region19: #{gin_forward.1} parent=1 // pred_check_branch
      %37 = sbr.rel (0) target = $region21
    $region20: #{gin_forward.1} parent=1 // pred_region
      _
    $region21: #{gin_forward.1} parent=1 // pred_fallthru
      _
    // Predicated region
    $region22: #{gin_forward.1} parent=1 // pred_check
      _
    $region23: #{gin_forward.1} parent=1 // pred_check_branch
      %39 = sbr.rel (0) target = $region25
    $region24: #{gin_forward.1} parent=1 // pred_region
      _
    $region25: #{gin_forward.1} parent=1 // pred_fallthru
      _
    // Predicated region
    $region26: #{gin_forward.1} parent=1 // pred_check
      _
    $region27: #{gin_forward.1} parent=1 // pred_check_branch
      %41 = sbr.rel (0) target = $region29
    $region28: #{gin_forward.1} parent=1 // pred_region
      _
    $region29: #{gin_forward.1} parent=1 // pred_fallthru
      _
    // Predicated region
    $region30: #{gin_forward.1} parent=1 // pred_check
      _
    $region31: #{gin_forward.1} parent=1 // pred_check_branch
      %43 = sbr.rel (0) target = $region33
    $region32: #{gin_forward.1} parent=1 // pred_region
      _
    $region33: #{gin_forward.1} parent=1 // pred_fallthru
      _
    // Predicated region
    $region34: #{gin_forward.1} parent=1 // pred_check
      _
    $region35: #{gin_forward.1} parent=1 // pred_check_branch
      %45 = sbr.rel (0) target = $region37
    $region36: #{gin_forward.1} parent=1 // pred_region
      _
    $region37: #{gin_forward.1} parent=1 // pred_fallthru
      _
    // Predicated region
    $region38: #{gin_forward.1} parent=1 // pred_check
      _
    $region39: #{gin_forward.1} parent=1 // pred_check_branch
      %47 = sbr.rel (0) target = $region41
    $region40: #{gin_forward.1} parent=1 // pred_region
      _
    $region41: #{gin_forward.1} parent=1 // pred_fallthru
      _
    // Predicated region
    $region42: #{gin_forward.1} parent=1 // pred_check
      _
    $region43: #{gin_forward.1} parent=1 // pred_check_branch
      %49 = sbr.rel (0) target = $region45
    $region44: #{gin_forward.1} parent=1 // pred_region
      _
    $region45: #{gin_forward.1} parent=1 // pred_fallthru
      _
    // Predicated region
    $region46: #{gin_forward.1} parent=1 // pred_check
      _
    $region47: #{gin_forward.1} parent=1 // pred_check_branch
      %51 = sbr.rel (0) target = $region49
    $region48: #{gin_forward.1} parent=1 // pred_region
      _
    $region49: #{gin_forward.1} parent=1 // pred_fallthru
      _
    // Predicated region
    $region50: #{gin_forward.1} parent=1 // pred_check
      _
    $region51: #{gin_forward.1} parent=1 // pred_check_branch
      %53 = sbr.rel (0) target = $region53
    $region52: #{gin_forward.1} parent=1 // pred_region
      %54 = dma.done [#allocation8], 16
    $region53: #{gin_forward.1} parent=1 // pred_fallthru
      _
    %55 = sfence
    %v57 = vld [vmem:[%s4] sm:$0xff]
    %v58 = vld [vmem:[%s4 + $0x8] sm:$0xff]
    %v59 = vld [vmem:[%s5] sm:$0xf]
    %v60 = vld [vmem:[%s5 + $0x4] sm:$0xf]
    %v61 = vld [vmem:[%s5 + $0x8] sm:$0xf]
    %v62 = vld [vmem:[%s5 + $0xc] sm:$0xf]
    %v63 = vld [vmem:[%s5 + $0x10] sm:$0xf]
    %v64 = vld [vmem:[%s5 + $0x14] sm:$0xf]
    %v65 = vld [vmem:[%s5 + $0x18] sm:$0xf]
    %v66 = vld [vmem:[%s5 + $0x1c] sm:$0xf]
    %v67 = vld [vmem:[%s5 + $0x20] sm:$0xf]
    %v68 = vld [vmem:[%s5 + $0x24] sm:$0xf]
    %v69 = vld [vmem:[%s5 + $0x28] sm:$0xf]
    %v70 = vld [vmem:[%s5 + $0x2c] sm:$0xf]
    %v71 = vld [vmem:[%s5 + $0x30] sm:$0xf]
    %v72 = vld [vmem:[%s5 + $0x34] sm:$0xf]
    %v73 = vld [vmem:[%s5 + $0x38] sm:$0xf]
    %v74 = vld [vmem:[%s5 + $0x3c] sm:$0xf]
    %v75 = vld [vmem:[%s6] sm:$0xf]
    %v76 = vld [vmem:[%s6 + $0x4] sm:$0xf]
    %v77 = vld [vmem:[%s6 + $0x8] sm:$0xf]
    %v78 = vld [vmem:[%s6 + $0xc] sm:$0xf]
    %v79 = vld [vmem:[%s6 + $0x10] sm:$0xf]
    %v80 = vld [vmem:[%s6 + $0x14] sm:$0xf]
    %v81 = vld [vmem:[%s6 + $0x18] sm:$0xf]
    %v82 = vld [vmem:[%s6 + $0x1c] sm:$0xf]
    %v83 = vld [vmem:[%s6 + $0x20] sm:$0xf]
    %v84 = vld [vmem:[%s6 + $0x24] sm:$0xf]
    %v85 = vld [vmem:[%s6 + $0x28] sm:$0xf]
    %v86 = vld [vmem:[%s6 + $0x2c] sm:$0xf]
    %v87 = vld [vmem:[%s6 + $0x30] sm:$0xf]
    %v88 = vld [vmem:[%s6 + $0x34] sm:$0xf]
    %v89 = vld [vmem:[%s6 + $0x38] sm:$0xf]
    %v90 = vld [vmem:[%s6 + $0x3c] sm:$0xf]
    %s91 = sld [smem:[#allocation6]]
    %s92 = sadd.f32 %s91, 1.0
    %p94 = scmp.lt.u32.totalorder 32, 8
    %p95 = pneg %p94
    // Predicated region
    $region54: #{gin_forward.1} parent=1 // pred_check
      _
    $region55: #{gin_forward.1} parent=1 // pred_check_branch
      %97 = sbr.rel (%p94) target = $region57
    $region56: #{gin_forward.1} parent=1 // pred_region
      %s112 = sand.u32 32, 7
      %p113 = scmp.eq.s32.totalorder %s112, 0
      // Predicated region
      $region69: #{gin_forward.1} parent=56 // pred_check
        %p114 = pneg %p113
      $region70: #{gin_forward.1} parent=56 // pred_check_branch
        %116 = sbr.rel (%p114) target = $region72
      $region71: #{gin_forward.1} parent=56 // pred_region
        loop: start=0, step=1, limit=1
        $region73: #{gin_forward.1} parent=71 // loop_pre_header
          _
        $region74: #{gin_forward.1} parent=71 // loop_header
          %s118 = sphi 0, %s122
          %p119 = scmp.ge.s32.totalorder %s118, 1
          %s123 = sphi %s2, %s2
          %s124 = sphi [#allocation4], [#allocation4]
        $region75: #{gin_forward.1} parent=71 // loop_header_branch
          %121 = sbr.rel (%p119) target = $region79
        $region76: #{gin_forward.1} parent=71 // loop_body
          %v125 = vld [vmem:[%s123] sm:$0xff]
          %126 = vst [vmem:[%s124] sm:$0xff] %v125
          %v127 = vld [vmem:[%s123 + $0x8] sm:$0xff]
          %128 = vst [vmem:[%s124 + $0x8] sm:$0xff] %v127
          %v129 = vld [vmem:[%s123 + $0x10] sm:$0xff]
          %130 = vst [vmem:[%s124 + $0x10] sm:$0xff] %v129
          %v131 = vld [vmem:[%s123 + $0x18] sm:$0xff]
          %132 = vst [vmem:[%s124 + $0x18] sm:$0xff] %v131
        $region77: #{gin_forward.1} parent=71 // loop_footer
          %s122 = sadd.s32 1, %s118
        $region78: #{gin_forward.1} parent=71 // loop_footer_branch
          %117 = sbr.rel target = $region74
        $region79: #{gin_forward.1} parent=71 // loop_exit
          _
      $region72: #{gin_forward.1} parent=56 // pred_fallthru
        _
      %p133 = pneg %p113
      // Predicated region
      $region80: #{gin_forward.1} parent=56 // pred_check
        _
      $region81: #{gin_forward.1} parent=56 // pred_check_branch
        %135 = sbr.rel (%p113) target = $region83
      $region82: #{gin_forward.1} parent=56 // pred_region
        %s136 = sand.u32 32, 7
      $region83: #{gin_forward.1} parent=56 // pred_fallthru
        _
    $region57: #{gin_forward.1} parent=1 // pred_fallthru
      _
    // Predicated region
    $region58: #{gin_forward.1} parent=1 // pred_check
      %p98 = pneg %p94
    $region59: #{gin_forward.1} parent=1 // pred_check_branch
      %100 = sbr.rel (%p98) target = $region61
    $region60: #{gin_forward.1} parent=1 // pred_region
      %s101 = sshllo.u32 0, 32
      loop: start=0, step=1, limit=1
      $region62: #{gin_forward.1} parent=60 // loop_pre_header
        _
      $region63: #{gin_forward.1} parent=60 // loop_header
        %s103 = sphi 0, %s107
        %p104 = scmp.ge.s32.totalorder %s103, 1
        %s108 = sphi %s2, %s2
        %s109 = sphi [#allocation4], [#allocation4]
      $region64: #{gin_forward.1} parent=60 // loop_header_branch
        %106 = sbr.rel (%p104) target = $region68
      $region65: #{gin_forward.1} parent=60 // loop_body
        %v110 = vld [vmem:[%s108] sm:%s101]
        %111 = vst [vmem:[%s109] sm:%s101] %v110
      $region66: #{gin_forward.1} parent=60 // loop_footer
        %s107 = sadd.s32 1, %s103
      $region67: #{gin_forward.1} parent=60 // loop_footer_branch
        %102 = sbr.rel target = $region63
      $region68: #{gin_forward.1} parent=60 // loop_exit
        _
    $region61: #{gin_forward.1} parent=1 // pred_fallthru
      _
    // Predicated region
    $region84: #{gin_forward.1} parent=1 // pred_check
      _
    $region85: #{gin_forward.1} parent=1 // pred_check_branch
      %139 = sbr.rel (0) target = $region87
    $region86: #{gin_forward.1} parent=1 // pred_region
      %140 = vsyncadd [#allocation5], 512
    $region87: #{gin_forward.1} parent=1 // pred_fallthru
      _
    %s141 = smul.u32 4, 8
    %s142 = smul.u32 %s141, 1
    %s143 = sshll.u32 %s142, 4
    %144 = dma.done [#allocation5], %s143
    %s145 = scalar_lea.vmem %s2, 32
    %s146 = scalar_lea.vmem [#allocation4], 32
    %s147 = scalar_lea.sflag [#allocation5], 1
    %p149 = scmp.lt.u32.totalorder 32, 8
    %p150 = pneg %p149
    // Predicated region
    $region88: #{gin_forward.1} parent=1 // pred_check
      _
    $region89: #{gin_forward.1} parent=1 // pred_check_branch
      %152 = sbr.rel (%p149) target = $region91
    $region90: #{gin_forward.1} parent=1 // pred_region
      %s167 = sand.u32 32, 7
      %p168 = scmp.eq.s32.totalorder %s167, 0
      // Predicated region
      $region103: #{gin_forward.1} parent=90 // pred_check
        %p169 = pneg %p168
      $region104: #{gin_forward.1} parent=90 // pred_check_branch
        %171 = sbr.rel (%p169) target = $region106
      $region105: #{gin_forward.1} parent=90 // pred_region
        loop: start=0, step=1, limit=1
        $region107: #{gin_forward.1} parent=105 // loop_pre_header
          _
        $region108: #{gin_forward.1} parent=105 // loop_header
          %s173 = sphi 0, %s177
          %p174 = scmp.ge.s32.totalorder %s173, 1
          %s178 = sphi %s145, %s145
          %s179 = sphi %s146, %s146
        $region109: #{gin_forward.1} parent=105 // loop_header_branch
          %176 = sbr.rel (%p174) target = $region113
        $region110: #{gin_forward.1} parent=105 // loop_body
          %v180 = vld [vmem:[%s178] sm:$0xff]
          %181 = vst [vmem:[%s179] sm:$0xff] %v180
          %v182 = vld [vmem:[%s178 + $0x8] sm:$0xff]
          %183 = vst [vmem:[%s179 + $0x8] sm:$0xff] %v182
          %v184 = vld [vmem:[%s178 + $0x10] sm:$0xff]
          %185 = vst [vmem:[%s179 + $0x10] sm:$0xff] %v184
          %v186 = vld [vmem:[%s178 + $0x18] sm:$0xff]
          %187 = vst [vmem:[%s179 + $0x18] sm:$0xff] %v186
        $region111: #{gin_forward.1} parent=105 // loop_footer
          %s177 = sadd.s32 1, %s173
        $region112: #{gin_forward.1} parent=105 // loop_footer_branch
          %172 = sbr.rel target = $region108
        $region113: #{gin_forward.1} parent=105 // loop_exit
          _
      $region106: #{gin_forward.1} parent=90 // pred_fallthru
        _
      %p188 = pneg %p168
      // Predicated region
      $region114: #{gin_forward.1} parent=90 // pred_check
        _
      $region115: #{gin_forward.1} parent=90 // pred_check_branch
        %190 = sbr.rel (%p168) target = $region117
      $region116: #{gin_forward.1} parent=90 // pred_region
        %s191 = sand.u32 32, 7
      $region117: #{gin_forward.1} parent=90 // pred_fallthru
        _
    $region91: #{gin_forward.1} parent=1 // pred_fallthru
      _
    // Predicated region
    $region92: #{gin_forward.1} parent=1 // pred_check
      %p153 = pneg %p149
    $region93: #{gin_forward.1} parent=1 // pred_check_branch
      %155 = sbr.rel (%p153) target = $region95
    $region94: #{gin_forward.1} parent=1 // pred_region
      %s156 = sshllo.u32 0, 32
      loop: start=0, step=1, limit=1
      $region96: #{gin_forward.1} parent=94 // loop_pre_header
        _
      $region97: #{gin_forward.1} parent=94 // loop_header
        %s158 = sphi 0, %s162
        %p159 = scmp.ge.s32.totalorder %s158, 1
        %s163 = sphi %s145, %s145
        %s164 = sphi %s146, %s146
      $region98: #{gin_forward.1} parent=94 // loop_header_branch
        %161 = sbr.rel (%p159) target = $region102
      $region99: #{gin_forward.1} parent=94 // loop_body
        %v165 = vld [vmem:[%s163] sm:%s156]
        %166 = vst [vmem:[%s164] sm:%s156] %v165
      $region100: #{gin_forward.1} parent=94 // loop_footer
        %s162 = sadd.s32 1, %s158
      $region101: #{gin_forward.1} parent=94 // loop_footer_branch
        %157 = sbr.rel target = $region97
      $region102: #{gin_forward.1} parent=94 // loop_exit
        _
    $region95: #{gin_forward.1} parent=1 // pred_fallthru
      _
    // Predicated region
    $region118: #{gin_forward.1} parent=1 // pred_check
      _
    $region119: #{gin_forward.1} parent=1 // pred_check_branch
      %194 = sbr.rel (0) target = $region121
    $region120: #{gin_forward.1} parent=1 // pred_region
      %195 = vsyncadd %s147, 512
    $region121: #{gin_forward.1} parent=1 // pred_fallthru
      _
    %v196 = vld [vmem:[#allocation4] sm:$0xff]
    %v197 = vld [vmem:[#allocation4 + $0x8] sm:$0xff]
    %v198 = vld [vmem:[#allocation4 + $0x10] sm:$0xff]
    %v199 = vld [vmem:[#allocation4 + $0x18] sm:$0xff]
    %v200 = vld [vmem:[%s3] sm:$0xf]
    %v201 = vld [vmem:[%s3 + $0x4] sm:$0xf]
    %v202 = vld [vmem:[%s3 + $0x8] sm:$0xf]
    %v203 = vld [vmem:[%s3 + $0xc] sm:$0xf]
    %v204 = vld [vmem:[%s3 + $0x10] sm:$0xf]
    %v205 = vld [vmem:[%s3 + $0x14] sm:$0xf]
    %v206 = vld [vmem:[%s3 + $0x18] sm:$0xf]
    %v207 = vld [vmem:[%s3 + $0x1c] sm:$0xf]
    %v208 = vld [vmem:[%s3 + $0x20] sm:$0xf]
    %v209 = vld [vmem:[%s3 + $0x24] sm:$0xf]
    %v210 = vld [vmem:[%s3 + $0x28] sm:$0xf]
    %v211 = vld [vmem:[%s3 + $0x2c] sm:$0xf]
    %v212 = vld [vmem:[%s3 + $0x30] sm:$0xf]
    %v213 = vld [vmem:[%s3 + $0x34] sm:$0xf]
    %v214 = vld [vmem:[%s3 + $0x38] sm:$0xf]
    %v215 = vld [vmem:[%s3 + $0x3c] sm:$0xf]
    %v216 = vld [vmem:[%s3] sm:$0xf]
    %v217 = vld [vmem:[%s3 + $0x4] sm:$0xf]
    %v218 = vld [vmem:[%s3 + $0x8] sm:$0xf]
    %v219 = vld [vmem:[%s3 + $0xc] sm:$0xf]
    %v220 = vld [vmem:[%s3 + $0x10] sm:$0xf]
    %v221 = vld [vmem:[%s3 + $0x14] sm:$0xf]
    %v222 = vld [vmem:[%s3 + $0x18] sm:$0xf]
    %v223 = vld [vmem:[%s3 + $0x1c] sm:$0xf]
    %v224 = vunpack.c.l.bf16 %v216
    %v225 = vunpack.c.l.bf16 %v217
    %v226 = vunpack.c.l.bf16 %v218
    %v227 = vunpack.c.l.bf16 %v219
    %v228 = vunpack.c.l.bf16 %v220
    %v229 = vunpack.c.l.bf16 %v221
    %v230 = vunpack.c.l.bf16 %v222
    %v231 = vunpack.c.l.bf16 %v223
    %v232 = vstv %s92
    %v233 = vmul.f32 %v232, %v224
    %v234 = vmul.f32 %v232, %v225
    %v235 = vmul.f32 %v232, %v226
    %v236 = vmul.f32 %v232, %v227
    %v237 = vmul.f32 %v232, %v228
    %v238 = vmul.f32 %v232, %v229
    %v239 = vmul.f32 %v232, %v230
    %v240 = vmul.f32 %v232, %v231
    %v257 = vunpack.c.l.b16 %v200
    %v258 = vunpack.c.l.b16 %v201
    %v259 = vunpack.c.l.b16 %v202
    %v260 = vunpack.c.l.b16 %v203
    %v261 = vunpack.c.l.b16 %v204
    %v262 = vunpack.c.l.b16 %v205
    %v263 = vunpack.c.l.b16 %v206
    %v264 = vunpack.c.l.b16 %v207
    %v265 = vunpack.c.l.b16 %v208
    %v266 = vunpack.c.l.b16 %v209
    %v267 = vunpack.c.l.b16 %v210
    %v268 = vunpack.c.l.b16 %v211
    %v269 = vunpack.c.l.b16 %v212
    %v270 = vunpack.c.l.b16 %v213
    %v271 = vunpack.c.l.b16 %v214
    %v272 = vunpack.c.l.b16 %v215
    %v273 = vpack.c.b16 %v258, %v257
    %v274 = vpack.c.b16 %v260, %v259
    %v275 = vpack.c.b16 %v262, %v261
    %v276 = vpack.c.b16 %v264, %v263
    %v277 = vpack.c.b16 %v266, %v265
    %v278 = vpack.c.b16 %v268, %v267
    %v279 = vpack.c.b16 %v270, %v269
    %v280 = vpack.c.b16 %v272, %v271
    %289 = vmatprep.subr.bf16.mxu0 0
    %290 = vmatpush1.bf16.msra.mxu0 %v273
    %291 = vmatprep.subr.bf16.mxu0 0
    %292 = vmatpush1.bf16.msra.mxu0 %v274
    %293 = vmatprep.subr.bf16.mxu0 0
    %294 = vmatpush1.bf16.msra.mxu0 %v275
    %295 = vmatprep.subr.bf16.mxu0 0
    %296 = vmatpush1.bf16.msra.mxu0 %v276
    %297 = vmatprep.subr.bf16.mxu0 0
    %298 = vmatpush1.bf16.msra.mxu0 %v277
    %299 = vmatprep.subr.bf16.mxu0 0
    %300 = vmatpush1.bf16.msra.mxu0 %v278
    %301 = vmatprep.subr.bf16.mxu0 0
    %302 = vmatpush1.bf16.msra.mxu0 %v279
    %303 = vmatprep.subr.bf16.mxu0 0
    %304 = vmatpush1.bf16.msra.mxu0 %v280
    %305 = vmatprep.subr.bf16.mxu0 0
    %306 = vmatpush1.bf16.msra.mxu0 0
    %307 = vmatprep.subr.bf16.mxu0 0
    %308 = vmatpush1.bf16.msra.mxu0 0
    %309 = vmatprep.subr.bf16.mxu0 0
    %310 = vmatpush1.bf16.msra.mxu0 0
    %311 = vmatprep.subr.bf16.mxu0 0
    %312 = vmatpush1.bf16.msra.mxu0 0
    %313 = vmatprep.subr.bf16.mxu0 0
    %314 = vmatpush1.bf16.msra.mxu0 0
    %315 = vmatprep.subr.bf16.mxu0 0
    %316 = vmatpush1.bf16.msra.mxu0 0
    %317 = vmatprep.subr.bf16.mxu0 0
    %318 = vmatpush1.bf16.msra.mxu0 0
    %319 = vmatprep.subr.bf16.mxu0 0
    %320 = vmatpush1.bf16.msra.mxu0 0
    %321 = vmatprep.mubr.bf16.mxu0 0
    %322 = vmatmul.mubr.bf16.gmra.mrb[0].mxu0 %v196
    %v323 = vpop.f32.mrb[0].mxu0
    %v324 = vadd.f32 %v233, %v323
    %v325 = vpop.f32.mrb[0].mxu0
    %v326 = vpop.f32.mrb[0].mxu0
    %v327 = vadd.f32 %v234, %v326
    %v328 = vpop.f32.mrb[0].mxu0
    %329 = vmatprep.mubr.bf16.mxu0 0
    %330 = vmatmul.mubr.bf16.gmra.mrb[0].mxu0 %v197
    %v331 = vpop.f32.mrb[0].mxu0
    %v332 = vadd.f32 %v235, %v331
    %v333 = vpop.f32.mrb[0].mxu0
    %v334 = vpop.f32.mrb[0].mxu0
    %v335 = vadd.f32 %v236, %v334
    %v336 = vpop.f32.mrb[0].mxu0
    %337 = vmatprep.mubr.bf16.mxu0 0
    %338 = vmatmul.mubr.bf16.gmra.mrb[0].mxu0 %v198
    %v339 = vpop.f32.mrb[0].mxu0
    %v340 = vadd.f32 %v237, %v339
    %v341 = vpop.f32.mrb[0].mxu0
    %v342 = vpop.f32.mrb[0].mxu0
    %v343 = vadd.f32 %v238, %v342
    %v344 = vpop.f32.mrb[0].mxu0
    %345 = vmatprep.mubr.bf16.mxu0 0
    %346 = vmatmul.mubr.bf16.gmra.mrb[0].mxu0 %v199
    %v347 = vpop.f32.mrb[0].mxu0
    %v348 = vadd.f32 %v239, %v347
    %v349 = vpop.f32.mrb[0].mxu0
    %v350 = vpop.f32.mrb[0].mxu0
    %v351 = vadd.f32 %v240, %v350
    %v352 = vpop.f32.mrb[0].mxu0
    %353 = vdwg.mxu0
    %v354 = vpack.c.bf16 %v327, %v324
    %v355 = vpack.c.bf16 %v335, %v332
    %v356 = vpack.c.bf16 %v343, %v340
    %v357 = vpack.c.bf16 %v351, %v348
    %v358 = vlaneseq
    %v359 = vshrl.u32 %v358, 7
    %v360 = vsub.s32 0, %v359
    %v361 = vrot.slane %v57, %v360
    %v378 = vunpack.c.l.b16 %v59
    %v379 = vunpack.c.l.b16 %v60
    %v380 = vunpack.c.l.b16 %v61
    %v381 = vunpack.c.l.b16 %v62
    %v382 = vunpack.c.l.b16 %v63
    %v383 = vunpack.c.l.b16 %v64
    %v384 = vunpack.c.l.b16 %v65
    %v385 = vunpack.c.l.b16 %v66
    %v386 = vunpack.c.l.b16 %v67
    %v387 = vunpack.c.l.b16 %v68
    %v388 = vunpack.c.l.b16 %v69
    %v389 = vunpack.c.l.b16 %v70
    %v390 = vunpack.c.l.b16 %v71
    %v391 = vunpack.c.l.b16 %v72
    %v392 = vunpack.c.l.b16 %v73
    %v393 = vunpack.c.l.b16 %v74
    %v394 = vpack.c.b16 %v379, %v378
    %v395 = vpack.c.b16 %v381, %v380
    %v396 = vpack.c.b16 %v383, %v382
    %v397 = vpack.c.b16 %v385, %v384
    %v398 = vpack.c.b16 %v387, %v386
    %v399 = vpack.c.b16 %v389, %v388
    %v400 = vpack.c.b16 %v391, %v390
    %v401 = vpack.c.b16 %v393, %v392
    %410 = vmatprep.subr.bf16.mxu0 0
    %411 = vmatpush1.bf16.msra.mxu0 %v394
    %412 = vmatprep.subr.bf16.mxu0 0
    %413 = vmatpush1.bf16.msra.mxu0 %v395
    %414 = vmatprep.subr.bf16.mxu0 0
    %415 = vmatpush1.bf16.msra.mxu0 %v396
    %416 = vmatprep.subr.bf16.mxu0 0
    %417 = vmatpush1.bf16.msra.mxu0 %v397
    %418 = vmatprep.subr.bf16.mxu0 0
    %419 = vmatpush1.bf16.msra.mxu0 %v398
    %420 = vmatprep.subr.bf16.mxu0 0
    %421 = vmatpush1.bf16.msra.mxu0 %v399
    %422 = vmatprep.subr.bf16.mxu0 0
    %423 = vmatpush1.bf16.msra.mxu0 %v400
    %424 = vmatprep.subr.bf16.mxu0 0
    %425 = vmatpush1.bf16.msra.mxu0 %v401
    %426 = vmatprep.subr.bf16.mxu0 0
    %427 = vmatpush1.bf16.msra.mxu0 0
    %428 = vmatprep.subr.bf16.mxu0 0
    %429 = vmatpush1.bf16.msra.mxu0 0
    %430 = vmatprep.subr.bf16.mxu0 0
    %431 = vmatpush1.bf16.msra.mxu0 0
    %432 = vmatprep.subr.bf16.mxu0 0
    %433 = vmatpush1.bf16.msra.mxu0 0
    %434 = vmatprep.subr.bf16.mxu0 0
    %435 = vmatpush1.bf16.msra.mxu0 0
    %436 = vmatprep.subr.bf16.mxu0 0
    %437 = vmatpush1.bf16.msra.mxu0 0
    %438 = vmatprep.subr.bf16.mxu0 0
    %439 = vmatpush1.bf16.msra.mxu0 0
    %440 = vmatprep.subr.bf16.mxu0 0
    %441 = vmatpush1.bf16.msra.mxu0 0
    %442 = vmatprep.mubr.bf16.mxu0 0
    %443 = vmatmul.mubr.bf16.gmra.mrb[0].mxu0 %v354
    %v444 = vpop.f32.mrb[0].mxu0
    %v445 = vadd.f32 %v361, %v444
    %v446 = vpop.f32.mrb[0].mxu0
    %v447 = vpop.f32.mrb[0].mxu0
    %v448 = vadd.f32 %v361, %v447
    %v449 = vpop.f32.mrb[0].mxu0
    %450 = vmatprep.mubr.bf16.mxu0 0
    %451 = vmatmul.mubr.bf16.gmra.mrb[0].mxu0 %v355
    %v452 = vpop.f32.mrb[0].mxu0
    %v453 = vadd.f32 %v361, %v452
    %v454 = vpop.f32.mrb[0].mxu0
    %v455 = vpop.f32.mrb[0].mxu0
    %v456 = vadd.f32 %v361, %v455
    %v457 = vpop.f32.mrb[0].mxu0
    %458 = vmatprep.mubr.bf16.mxu0 0
    %459 = vmatmul.mubr.bf16.gmra.mrb[0].mxu0 %v356
    %v460 = vpop.f32.mrb[0].mxu0
    %v461 = vadd.f32 %v361, %v460
    %v462 = vpop.f32.mrb[0].mxu0
    %v463 = vpop.f32.mrb[0].mxu0
    %v464 = vadd.f32 %v361, %v463
    %v465 = vpop.f32.mrb[0].mxu0
    %466 = vmatprep.mubr.bf16.mxu0 0
    %467 = vmatmul.mubr.bf16.gmra.mrb[0].mxu0 %v357
    %v468 = vpop.f32.mrb[0].mxu0
    %v469 = vadd.f32 %v361, %v468
    %v470 = vpop.f32.mrb[0].mxu0
    %v471 = vpop.f32.mrb[0].mxu0
    %v472 = vadd.f32 %v361, %v471
    %v473 = vpop.f32.mrb[0].mxu0
    %474 = vdwg.mxu0
    %v475 = vmax.f32 %v445, 0.0
    %v476 = vmax.f32 %v448, 0.0
    %v477 = vmax.f32 %v453, 0.0
    %v478 = vmax.f32 %v456, 0.0
    %v479 = vmax.f32 %v461, 0.0
    %v480 = vmax.f32 %v464, 0.0
    %v481 = vmax.f32 %v469, 0.0
    %v482 = vmax.f32 %v472, 0.0
    %v483 = vpack.c.bf16 %v476, %v475
    %v484 = vpack.c.bf16 %v478, %v477
    %v485 = vpack.c.bf16 %v480, %v479
    %v486 = vpack.c.bf16 %v482, %v481
    %v487 = vlaneseq
    %v488 = vshrl.u32 %v487, 7
    %v489 = vsub.s32 1, %v488
    %v490 = vrot.slane %v57, %v489
    %v507 = vunpack.c.l.b16 %v75
    %v508 = vunpack.c.l.b16 %v76
    %v509 = vunpack.c.l.b16 %v77
    %v510 = vunpack.c.l.b16 %v78
    %v511 = vunpack.c.l.b16 %v79
    %v512 = vunpack.c.l.b16 %v80
    %v513 = vunpack.c.l.b16 %v81
    %v514 = vunpack.c.l.b16 %v82
    %v515 = vunpack.c.l.b16 %v83
    %v516 = vunpack.c.l.b16 %v84
    %v517 = vunpack.c.l.b16 %v85
    %v518 = vunpack.c.l.b16 %v86
    %v519 = vunpack.c.l.b16 %v87
    %v520 = vunpack.c.l.b16 %v88
    %v521 = vunpack.c.l.b16 %v89
    %v522 = vunpack.c.l.b16 %v90
    %v523 = vpack.c.b16 %v508, %v507
    %v524 = vpack.c.b16 %v510, %v509
    %v525 = vpack.c.b16 %v512, %v511
    %v526 = vpack.c.b16 %v514, %v513
    %v527 = vpack.c.b16 %v516, %v515
    %v528 = vpack.c.b16 %v518, %v517
    %v529 = vpack.c.b16 %v520, %v519
    %v530 = vpack.c.b16 %v522, %v521
    %539 = vmatprep.subr.bf16.mxu0 0
    %540 = vmatpush1.bf16.msra.mxu0 %v523
    %541 = vmatprep.subr.bf16.mxu0 0
    %542 = vmatpush1.bf16.msra.mxu0 %v524
    %543 = vmatprep.subr.bf16.mxu0 0
    %544 = vmatpush1.bf16.msra.mxu0 %v525
    %545 = vmatprep.subr.bf16.mxu0 0
    %546 = vmatpush1.bf16.msra.mxu0 %v526
    %547 = vmatprep.subr.bf16.mxu0 0
    %548 = vmatpush1.bf16.msra.mxu0 %v527
    %549 = vmatprep.subr.bf16.mxu0 0
    %550 = vmatpush1.bf16.msra.mxu0 %v528
    %551 = vmatprep.subr.bf16.mxu0 0
    %552 = vmatpush1.bf16.msra.mxu0 %v529
    %553 = vmatprep.subr.bf16.mxu0 0
    %554 = vmatpush1.bf16.msra.mxu0 %v530
    %555 = vmatprep.subr.bf16.mxu0 0
    %556 = vmatpush1.bf16.msra.mxu0 0
    %557 = vmatprep.subr.bf16.mxu0 0
    %558 = vmatpush1.bf16.msra.mxu0 0
    %559 = vmatprep.subr.bf16.mxu0 0
    %560 = vmatpush1.bf16.msra.mxu0 0
    %561 = vmatprep.subr.bf16.mxu0 0
    %562 = vmatpush1.bf16.msra.mxu0 0
    %563 = vmatprep.subr.bf16.mxu0 0
    %564 = vmatpush1.bf16.msra.mxu0 0
    %565 = vmatprep.subr.bf16.mxu0 0
    %566 = vmatpush1.bf16.msra.mxu0 0
    %567 = vmatprep.subr.bf16.mxu0 0
    %568 = vmatpush1.bf16.msra.mxu0 0
    %569 = vmatprep.subr.bf16.mxu0 0
    %570 = vmatpush1.bf16.msra.mxu0 0
    %571 = vmatprep.mubr.bf16.mxu0 0
    %572 = vmatmul.mubr.bf16.gmra.mrb[0].mxu0 %v483
    %v573 = vpop.f32.mrb[0].mxu0
    %v574 = vadd.f32 %v490, %v573
    %v575 = vpop.f32.mrb[0].mxu0
    %v576 = vpop.f32.mrb[0].mxu0
    %v577 = vadd.f32 %v490, %v576
    %v578 = vpop.f32.mrb[0].mxu0
    %579 = vmatprep.mubr.bf16.mxu0 0
    %580 = vmatmul.mubr.bf16.gmra.mrb[0].mxu0 %v484
    %v581 = vpop.f32.mrb[0].mxu0
    %v582 = vadd.f32 %v490, %v581
    %v583 = vpop.f32.mrb[0].mxu0
    %v584 = vpop.f32.mrb[0].mxu0
    %v585 = vadd.f32 %v490, %v584
    %v586 = vpop.f32.mrb[0].mxu0
    %587 = vmatprep.mubr.bf16.mxu0 0
    %588 = vmatmul.mubr.bf16.gmra.mrb[0].mxu0 %v485
    %v589 = vpop.f32.mrb[0].mxu0
    %v590 = vadd.f32 %v490, %v589
    %v591 = vpop.f32.mrb[0].mxu0
    %v592 = vpop.f32.mrb[0].mxu0
    %v593 = vadd.f32 %v490, %v592
    %v594 = vpop.f32.mrb[0].mxu0
    %595 = vmatprep.mubr.bf16.mxu0 0
    %596 = vmatmul.mubr.bf16.gmra.mrb[0].mxu0 %v486
    %v597 = vpop.f32.mrb[0].mxu0
    %v598 = vadd.f32 %v490, %v597
    %v599 = vpop.f32.mrb[0].mxu0
    %v600 = vpop.f32.mrb[0].mxu0
    %v601 = vadd.f32 %v490, %v600
    %v602 = vpop.f32.mrb[0].mxu0
    %603 = vdwg.mxu0
    %v604 = vmax.f32 %v574, 0.0
    %v605 = vmax.f32 %v577, 0.0
    %v606 = vmax.f32 %v582, 0.0
    %v607 = vmax.f32 %v585, 0.0
    %v608 = vmax.f32 %v590, 0.0
    %v609 = vmax.f32 %v593, 0.0
    %v610 = vmax.f32 %v598, 0.0
    %v611 = vmax.f32 %v601, 0.0
    %v612 = vlaneseq
    %v613 = vshrl.u32 %v612, 7
    %v614 = vsub.s32 2, %v613
    %v615 = vrot.slane %v57, %v614
    %v616 = vmul.f32 %v604, %v615
    %v617 = vmul.f32 %v605, %v615
    %v618 = vmul.f32 %v606, %v615
    %v619 = vmul.f32 %v607, %v615
    %v620 = vmul.f32 %v608, %v615
    %v621 = vmul.f32 %v609, %v615
    %v622 = vmul.f32 %v610, %v615
    %v623 = vmul.f32 %v611, %v615
    %v624 = vlaneseq
    %v625 = vshrl.u32 %v624, 7
    %v626 = vsub.s32 3, %v625
    %v627 = vrot.slane %v57, %v626
    %v628 = vadd.f32 %v616, %v627
    %v629 = vadd.f32 %v617, %v627
    %v630 = vadd.f32 %v618, %v627
    %v631 = vadd.f32 %v619, %v627
    %v632 = vadd.f32 %v620, %v627
    %v633 = vadd.f32 %v621, %v627
    %v634 = vadd.f32 %v622, %v627
    %v635 = vadd.f32 %v623, %v627
    %v636 = vmax.f32 %v628, 0.0
    %v637 = vmax.f32 %v629, 0.0
    %v638 = vmax.f32 %v630, 0.0
    %v639 = vmax.f32 %v631, 0.0
    %v640 = vmax.f32 %v632, 0.0
    %v641 = vmax.f32 %v633, 0.0
    %v642 = vmax.f32 %v634, 0.0
    %v643 = vmax.f32 %v635, 0.0
    %v644 = vpack.c.bf16 %v637, %v636
    %v645 = vpack.c.bf16 %v639, %v638
    %v646 = vpack.c.bf16 %v641, %v640
    %v647 = vpack.c.bf16 %v643, %v642
    %648 = vst [vmem:[#allocation2] sm:$0xff] %v644
    %649 = vst [vmem:[#allocation2 + $0x8] sm:$0xff] %v645
    %650 = vst [vmem:[#allocation2 + $0x10] sm:$0xff] %v646
    %651 = vst [vmem:[#allocation2 + $0x18] sm:$0xff] %v647
    %s652 = sshll.u32 %s142, 4
    %653 = dma.done %s147, %s652
    %v654 = vld [vmem:[%s146] sm:$0xff]
    %v655 = vld [vmem:[%s146 + $0x8] sm:$0xff]
    %v656 = vld [vmem:[%s146 + $0x10] sm:$0xff]
    %v657 = vld [vmem:[%s146 + $0x18] sm:$0xff]
    %v658 = vld [vmem:[%s3] sm:$0xf]
    %v659 = vld [vmem:[%s3 + $0x4] sm:$0xf]
    %v660 = vld [vmem:[%s3 + $0x8] sm:$0xf]
    %v661 = vld [vmem:[%s3 + $0xc] sm:$0xf]
    %v662 = vld [vmem:[%s3 + $0x10] sm:$0xf]
    %v663 = vld [vmem:[%s3 + $0x14] sm:$0xf]
    %v664 = vld [vmem:[%s3 + $0x18] sm:$0xf]
    %v665 = vld [vmem:[%s3 + $0x1c] sm:$0xf]
    %v666 = vld [vmem:[%s3 + $0x20] sm:$0xf]
    %v667 = vld [vmem:[%s3 + $0x24] sm:$0xf]
    %v668 = vld [vmem:[%s3 + $0x28] sm:$0xf]
    %v669 = vld [vmem:[%s3 + $0x2c] sm:$0xf]
    %v670 = vld [vmem:[%s3 + $0x30] sm:$0xf]
    %v671 = vld [vmem:[%s3 + $0x34] sm:$0xf]
    %v672 = vld [vmem:[%s3 + $0x38] sm:$0xf]
    %v673 = vld [vmem:[%s3 + $0x3c] sm:$0xf]
    %v674 = vunpack.c.l.bf16 %v666
    %v675 = vunpack.c.l.bf16 %v667
    %v676 = vunpack.c.l.bf16 %v668
    %v677 = vunpack.c.l.bf16 %v669
    %v678 = vunpack.c.l.bf16 %v670
    %v679 = vunpack.c.l.bf16 %v671
    %v680 = vunpack.c.l.bf16 %v672
    %v681 = vunpack.c.l.bf16 %v673
    %v682 = vmul.f32 %v232, %v674
    %v683 = vmul.f32 %v232, %v675
    %v684 = vmul.f32 %v232, %v676
    %v685 = vmul.f32 %v232, %v677
    %v686 = vmul.f32 %v232, %v678
    %v687 = vmul.f32 %v232, %v679
    %v688 = vmul.f32 %v232, %v680
    %v689 = vmul.f32 %v232, %v681
    %v706 = vunpack.c.l.b16 %v658
    %v707 = vunpack.c.l.b16 %v659
    %v708 = vunpack.c.l.b16 %v660
    %v709 = vunpack.c.l.b16 %v661
    %v710 = vunpack.c.l.b16 %v662
    %v711 = vunpack.c.l.b16 %v663
    %v712 = vunpack.c.l.b16 %v664
    %v713 = vunpack.c.l.b16 %v665
    %v714 = vunpack.c.l.b16 %v666
    %v715 = vunpack.c.l.b16 %v667
    %v716 = vunpack.c.l.b16 %v668
    %v717 = vunpack.c.l.b16 %v669
    %v718 = vunpack.c.l.b16 %v670
    %v719 = vunpack.c.l.b16 %v671
    %v720 = vunpack.c.l.b16 %v672
    %v721 = vunpack.c.l.b16 %v673
    %v722 = vpack.c.b16 %v707, %v706
    %v723 = vpack.c.b16 %v709, %v708
    %v724 = vpack.c.b16 %v711, %v710
    %v725 = vpack.c.b16 %v713, %v712
    %v726 = vpack.c.b16 %v715, %v714
    %v727 = vpack.c.b16 %v717, %v716
    %v728 = vpack.c.b16 %v719, %v718
    %v729 = vpack.c.b16 %v721, %v720
    %738 = vmatprep.subr.bf16.mxu0 0
    %739 = vmatpush1.bf16.msra.mxu0 %v722
    %740 = vmatprep.subr.bf16.mxu0 0
    %741 = vmatpush1.bf16.msra.mxu0 %v723
    %742 = vmatprep.subr.bf16.mxu0 0
    %743 = vmatpush1.bf16.msra.mxu0 %v724
    %744 = vmatprep.subr.bf16.mxu0 0
    %745 = vmatpush1.bf16.msra.mxu0 %v725
    %746 = vmatprep.subr.bf16.mxu0 0
    %747 = vmatpush1.bf16.msra.mxu0 %v726
    %748 = vmatprep.subr.bf16.mxu0 0
    %749 = vmatpush1.bf16.msra.mxu0 %v727
    %750 = vmatprep.subr.bf16.mxu0 0
    %751 = vmatpush1.bf16.msra.mxu0 %v728
    %752 = vmatprep.subr.bf16.mxu0 0
    %753 = vmatpush1.bf16.msra.mxu0 %v729
    %754 = vmatprep.subr.bf16.mxu0 0
    %755 = vmatpush1.bf16.msra.mxu0 0
    %756 = vmatprep.subr.bf16.mxu0 0
    %757 = vmatpush1.bf16.msra.mxu0 0
    %758 = vmatprep.subr.bf16.mxu0 0
    %759 = vmatpush1.bf16.msra.mxu0 0
    %760 = vmatprep.subr.bf16.mxu0 0
    %761 = vmatpush1.bf16.msra.mxu0 0
    %762 = vmatprep.subr.bf16.mxu0 0
    %763 = vmatpush1.bf16.msra.mxu0 0
    %764 = vmatprep.subr.bf16.mxu0 0
    %765 = vmatpush1.bf16.msra.mxu0 0
    %766 = vmatprep.subr.bf16.mxu0 0
    %767 = vmatpush1.bf16.msra.mxu0 0
    %768 = vmatprep.subr.bf16.mxu0 0
    %769 = vmatpush1.bf16.msra.mxu0 0
    %770 = vmatprep.mubr.bf16.mxu0 0
    %771 = vmatmul.mubr.bf16.gmra.mrb[0].mxu0 %v654
    %v772 = vpop.f32.mrb[0].mxu0
    %v773 = vadd.f32 %v682, %v772
    %v774 = vpop.f32.mrb[0].mxu0
    %v775 = vpop.f32.mrb[0].mxu0
    %v776 = vadd.f32 %v683, %v775
    %v777 = vpop.f32.mrb[0].mxu0
    %778 = vmatprep.mubr.bf16.mxu0 0
    %779 = vmatmul.mubr.bf16.gmra.mrb[0].mxu0 %v655
    %v780 = vpop.f32.mrb[0].mxu0
    %v781 = vadd.f32 %v684, %v780
    %v782 = vpop.f32.mrb[0].mxu0
    %v783 = vpop.f32.mrb[0].mxu0
    %v784 = vadd.f32 %v685, %v783
    %v785 = vpop.f32.mrb[0].mxu0
    %786 = vmatprep.mubr.bf16.mxu0 0
    %787 = vmatmul.mubr.bf16.gmra.mrb[0].mxu0 %v656
    %v788 = vpop.f32.mrb[0].mxu0
    %v789 = vadd.f32 %v686, %v788
    %v790 = vpop.f32.mrb[0].mxu0
    %v791 = vpop.f32.mrb[0].mxu0
    %v792 = vadd.f32 %v687, %v791
    %v793 = vpop.f32.mrb[0].mxu0
    %794 = vmatprep.mubr.bf16.mxu0 0
    %795 = vmatmul.mubr.bf16.gmra.mrb[0].mxu0 %v657
    %v796 = vpop.f32.mrb[0].mxu0
    %v797 = vadd.f32 %v688, %v796
    %v798 = vpop.f32.mrb[0].mxu0
    %v799 = vpop.f32.mrb[0].mxu0
    %v800 = vadd.f32 %v689, %v799
    %v801 = vpop.f32.mrb[0].mxu0
    %802 = vdwg.mxu0
    %v803 = vpack.c.bf16 %v776, %v773
    %v804 = vpack.c.bf16 %v784, %v781
    %v805 = vpack.c.bf16 %v792, %v789
    %v806 = vpack.c.bf16 %v800, %v797
    %807 = vmatprep.subr.bf16.mxu0 0
    %808 = vmatpush1.bf16.msra.mxu0 %v394
    %809 = vmatprep.subr.bf16.mxu0 0
    %810 = vmatpush1.bf16.msra.mxu0 %v395
    %811 = vmatprep.subr.bf16.mxu0 0
    %812 = vmatpush1.bf16.msra.mxu0 %v396
    %813 = vmatprep.subr.bf16.mxu0 0
    %814 = vmatpush1.bf16.msra.mxu0 %v397
    %815 = vmatprep.subr.bf16.mxu0 0
    %816 = vmatpush1.bf16.msra.mxu0 %v398
    %817 = vmatprep.subr.bf16.mxu0 0
    %818 = vmatpush1.bf16.msra.mxu0 %v399
    %819 = vmatprep.subr.bf16.mxu0 0
    %820 = vmatpush1.bf16.msra.mxu0 %v400
    %821 = vmatprep.subr.bf16.mxu0 0
    %822 = vmatpush1.bf16.msra.mxu0 %v401
    %823 = vmatprep.subr.bf16.mxu0 0
    %824 = vmatpush1.bf16.msra.mxu0 0
    %825 = vmatprep.subr.bf16.mxu0 0
    %826 = vmatpush1.bf16.msra.mxu0 0
    %827 = vmatprep.subr.bf16.mxu0 0
    %828 = vmatpush1.bf16.msra.mxu0 0
    %829 = vmatprep.subr.bf16.mxu0 0
    %830 = vmatpush1.bf16.msra.mxu0 0
    %831 = vmatprep.subr.bf16.mxu0 0
    %832 = vmatpush1.bf16.msra.mxu0 0
    %833 = vmatprep.subr.bf16.mxu0 0
    %834 = vmatpush1.bf16.msra.mxu0 0
    %835 = vmatprep.subr.bf16.mxu0 0
    %836 = vmatpush1.bf16.msra.mxu0 0
    %837 = vmatprep.subr.bf16.mxu0 0
    %838 = vmatpush1.bf16.msra.mxu0 0
    %839 = vmatprep.mubr.bf16.mxu0 0
    %840 = vmatmul.mubr.bf16.gmra.mrb[0].mxu0 %v803
    %v841 = vpop.f32.mrb[0].mxu0
    %v842 = vadd.f32 %v361, %v841
    %v843 = vpop.f32.mrb[0].mxu0
    %v844 = vpop.f32.mrb[0].mxu0
    %v845 = vadd.f32 %v361, %v844
    %v846 = vpop.f32.mrb[0].mxu0
    %847 = vmatprep.mubr.bf16.mxu0 0
    %848 = vmatmul.mubr.bf16.gmra.mrb[0].mxu0 %v804
    %v849 = vpop.f32.mrb[0].mxu0
    %v850 = vadd.f32 %v361, %v849
    %v851 = vpop.f32.mrb[0].mxu0
    %v852 = vpop.f32.mrb[0].mxu0
    %v853 = vadd.f32 %v361, %v852
    %v854 = vpop.f32.mrb[0].mxu0
    %855 = vmatprep.mubr.bf16.mxu0 0
    %856 = vmatmul.mubr.bf16.gmra.mrb[0].mxu0 %v805
    %v857 = vpop.f32.mrb[0].mxu0
    %v858 = vadd.f32 %v361, %v857
    %v859 = vpop.f32.mrb[0].mxu0
    %v860 = vpop.f32.mrb[0].mxu0
    %v861 = vadd.f32 %v361, %v860
    %v862 = vpop.f32.mrb[0].mxu0
    %863 = vmatprep.mubr.bf16.mxu0 0
    %864 = vmatmul.mubr.bf16.gmra.mrb[0].mxu0 %v806
    %v865 = vpop.f32.mrb[0].mxu0
    %v866 = vadd.f32 %v361, %v865
    %v867 = vpop.f32.mrb[0].mxu0
    %v868 = vpop.f32.mrb[0].mxu0
    %v869 = vadd.f32 %v361, %v868
    %v870 = vpop.f32.mrb[0].mxu0
    %871 = vdwg.mxu0
    %v872 = vmax.f32 %v842, 0.0
    %v873 = vmax.f32 %v845, 0.0
    %v874 = vmax.f32 %v850, 0.0
    %v875 = vmax.f32 %v853, 0.0
    %v876 = vmax.f32 %v858, 0.0
    %v877 = vmax.f32 %v861, 0.0
    %v878 = vmax.f32 %v866, 0.0
    %v879 = vmax.f32 %v869, 0.0
    %v880 = vpack.c.bf16 %v873, %v872
    %v881 = vpack.c.bf16 %v875, %v874
    %v882 = vpack.c.bf16 %v877, %v876
    %v883 = vpack.c.bf16 %v879, %v878
    %884 = vmatprep.subr.bf16.mxu0 0
    %885 = vmatpush1.bf16.msra.mxu0 %v523
    %886 = vmatprep.subr.bf16.mxu0 0
    %887 = vmatpush1.bf16.msra.mxu0 %v524
    %888 = vmatprep.subr.bf16.mxu0 0
    %889 = vmatpush1.bf16.msra.mxu0 %v525
    %890 = vmatprep.subr.bf16.mxu0 0
    %891 = vmatpush1.bf16.msra.mxu0 %v526
    %892 = vmatprep.subr.bf16.mxu0 0
    %893 = vmatpush1.bf16.msra.mxu0 %v527
    %894 = vmatprep.subr.bf16.mxu0 0
    %895 = vmatpush1.bf16.msra.mxu0 %v528
    %896 = vmatprep.subr.bf16.mxu0 0
    %897 = vmatpush1.bf16.msra.mxu0 %v529
    %898 = vmatprep.subr.bf16.mxu0 0
    %899 = vmatpush1.bf16.msra.mxu0 %v530
    %900 = vmatprep.subr.bf16.mxu0 0
    %901 = vmatpush1.bf16.msra.mxu0 0
    %902 = vmatprep.subr.bf16.mxu0 0
    %903 = vmatpush1.bf16.msra.mxu0 0
    %904 = vmatprep.subr.bf16.mxu0 0
    %905 = vmatpush1.bf16.msra.mxu0 0
    %906 = vmatprep.subr.bf16.mxu0 0
    %907 = vmatpush1.bf16.msra.mxu0 0
    %908 = vmatprep.subr.bf16.mxu0 0
    %909 = vmatpush1.bf16.msra.mxu0 0
    %910 = vmatprep.subr.bf16.mxu0 0
    %911 = vmatpush1.bf16.msra.mxu0 0
    %912 = vmatprep.subr.bf16.mxu0 0
    %913 = vmatpush1.bf16.msra.mxu0 0
    %914 = vmatprep.subr.bf16.mxu0 0
    %915 = vmatpush1.bf16.msra.mxu0 0
    %916 = vmatprep.mubr.bf16.mxu0 0
    %917 = vmatmul.mubr.bf16.gmra.mrb[0].mxu0 %v880
    %v918 = vpop.f32.mrb[0].mxu0
    %v919 = vadd.f32 %v490, %v918
    %v920 = vpop.f32.mrb[0].mxu0
    %v921 = vpop.f32.mrb[0].mxu0
    %v922 = vadd.f32 %v490, %v921
    %v923 = vpop.f32.mrb[0].mxu0
    %924 = vmatprep.mubr.bf16.mxu0 0
    %925 = vmatmul.mubr.bf16.gmra.mrb[0].mxu0 %v881
    %v926 = vpop.f32.mrb[0].mxu0
    %v927 = vadd.f32 %v490, %v926
    %v928 = vpop.f32.mrb[0].mxu0
    %v929 = vpop.f32.mrb[0].mxu0
    %v930 = vadd.f32 %v490, %v929
    %v931 = vpop.f32.mrb[0].mxu0
    %932 = vmatprep.mubr.bf16.mxu0 0
    %933 = vmatmul.mubr.bf16.gmra.mrb[0].mxu0 %v882
    %v934 = vpop.f32.mrb[0].mxu0
    %v935 = vadd.f32 %v490, %v934
    %v936 = vpop.f32.mrb[0].mxu0
    %v937 = vpop.f32.mrb[0].mxu0
    %v938 = vadd.f32 %v490, %v937
    %v939 = vpop.f32.mrb[0].mxu0
    %940 = vmatprep.mubr.bf16.mxu0 0
    %941 = vmatmul.mubr.bf16.gmra.mrb[0].mxu0 %v883
    %v942 = vpop.f32.mrb[0].mxu0
    %v943 = vadd.f32 %v490, %v942
    %v944 = vpop.f32.mrb[0].mxu0
    %v945 = vpop.f32.mrb[0].mxu0
    %v946 = vadd.f32 %v490, %v945
    %v947 = vpop.f32.mrb[0].mxu0
    %948 = vdwg.mxu0
    %v949 = vmax.f32 %v919, 0.0
    %v950 = vmax.f32 %v922, 0.0
    %v951 = vmax.f32 %v927, 0.0
    %v952 = vmax.f32 %v930, 0.0
    %v953 = vmax.f32 %v935, 0.0
    %v954 = vmax.f32 %v938, 0.0
    %v955 = vmax.f32 %v943, 0.0
    %v956 = vmax.f32 %v946, 0.0
    %v957 = vmul.f32 %v949, %v615
    %v958 = vmul.f32 %v950, %v615
    %v959 = vmul.f32 %v951, %v615
    %v960 = vmul.f32 %v952, %v615
    %v961 = vmul.f32 %v953, %v615
    %v962 = vmul.f32 %v954, %v615
    %v963 = vmul.f32 %v955, %v615
    %v964 = vmul.f32 %v956, %v615
    %v965 = vadd.f32 %v957, %v627
    %v966 = vadd.f32 %v958, %v627
    %v967 = vadd.f32 %v959, %v627
    %v968 = vadd.f32 %v960, %v627
    %v969 = vadd.f32 %v961, %v627
    %v970 = vadd.f32 %v962, %v627
    %v971 = vadd.f32 %v963, %v627
    %v972 = vadd.f32 %v964, %v627
    %v973 = vmax.f32 %v965, 0.0
    %v974 = vmax.f32 %v966, 0.0
    %v975 = vmax.f32 %v967, 0.0
    %v976 = vmax.f32 %v968, 0.0
    %v977 = vmax.f32 %v969, 0.0
    %v978 = vmax.f32 %v970, 0.0
    %v979 = vmax.f32 %v971, 0.0
    %v980 = vmax.f32 %v972, 0.0
    %v981 = vpack.c.bf16 %v974, %v973
    %v982 = vpack.c.bf16 %v976, %v975
    %v983 = vpack.c.bf16 %v978, %v977
    %v984 = vpack.c.bf16 %v980, %v979
    %985 = vst [vmem:[#allocation2 + $0x20] sm:$0xff] %v981
    %986 = vst [vmem:[#allocation2 + $0x28] sm:$0xff] %v982
    %987 = vst [vmem:[#allocation2 + $0x30] sm:$0xff] %v983
    %988 = vst [vmem:[#allocation2 + $0x38] sm:$0xff] %v984
    %v989 = vld [vmem:[%s7] sm:$0xf]
    %v990 = vld [vmem:[%s7 + $0x4] sm:$0xf]
    %v991 = vld [vmem:[%s7 + $0x8] sm:$0xf]
    %v992 = vld [vmem:[%s7 + $0xc] sm:$0xf]
    %v993 = vld [vmem:[%s7 + $0x10] sm:$0xf]
    %v994 = vld [vmem:[%s7 + $0x14] sm:$0xf]
    %v995 = vld [vmem:[%s7 + $0x18] sm:$0xf]
    %v996 = vld [vmem:[%s7 + $0x1c] sm:$0xf]
    %v997 = vld [vmem:[%s7 + $0x20] sm:$0xf]
    %v998 = vld [vmem:[%s7 + $0x24] sm:$0xf]
    %v999 = vld [vmem:[%s7 + $0x28] sm:$0xf]
    %v1000 = vld [vmem:[%s7 + $0x2c] sm:$0xf]
    %v1001 = vld [vmem:[%s7 + $0x30] sm:$0xf]
    %v1002 = vld [vmem:[%s7 + $0x34] sm:$0xf]
    %v1003 = vld [vmem:[%s7 + $0x38] sm:$0xf]
    %v1004 = vld [vmem:[%s7 + $0x3c] sm:$0xf]
    %v1005 = vld [vmem:[%s8] sm:$0xf]
    %v1006 = vld [vmem:[%s8 + $0x4] sm:$0xf]
    %v1007 = vld [vmem:[%s8 + $0x8] sm:$0xf]
    %v1008 = vld [vmem:[%s8 + $0xc] sm:$0xf]
    %v1009 = vld [vmem:[%s8 + $0x10] sm:$0xf]
    %v1010 = vld [vmem:[%s8 + $0x14] sm:$0xf]
    %v1011 = vld [vmem:[%s8 + $0x18] sm:$0xf]
    %v1012 = vld [vmem:[%s8 + $0x1c] sm:$0xf]
    %v1013 = vld [vmem:[%s8 + $0x20] sm:$0xf]
    %v1014 = vld [vmem:[%s8 + $0x24] sm:$0xf]
    %v1015 = vld [vmem:[%s8 + $0x28] sm:$0xf]
    %v1016 = vld [vmem:[%s8 + $0x2c] sm:$0xf]
    %v1017 = vld [vmem:[%s8 + $0x30] sm:$0xf]
    %v1018 = vld [vmem:[%s8 + $0x34] sm:$0xf]
    %v1019 = vld [vmem:[%s8 + $0x38] sm:$0xf]
    %v1020 = vld [vmem:[%s8 + $0x3c] sm:$0xf]
    %s1021 = sld [smem:[#allocation6 + $0x1]]
    %s1022 = sadd.f32 %s1021, 1.0
    %p1024 = scmp.lt.u32.totalorder 32, 8
    %p1025 = pneg %p1024
    // Predicated region
    $region122: #{gin_forward.1} parent=1 // pred_check
      _
    $region123: #{gin_forward.1} parent=1 // pred_check_branch
      %1027 = sbr.rel (%p1024) target = $region125
    $region124: #{gin_forward.1} parent=1 // pred_region
      %s1042 = sand.u32 32, 7
      %p1043 = scmp.eq.s32.totalorder %s1042, 0
      // Predicated region
      $region137: #{gin_forward.1} parent=124 // pred_check
        %p1044 = pneg %p1043
      $region138: #{gin_forward.1} parent=124 // pred_check_branch
        %1046 = sbr.rel (%p1044) target = $region140
      $region139: #{gin_forward.1} parent=124 // pred_region
        loop: start=0, step=1, limit=1
        $region141: #{gin_forward.1} parent=139 // loop_pre_header
          _
        $region142: #{gin_forward.1} parent=139 // loop_header
          %s1048 = sphi 0, %s1052
          %p1049 = scmp.ge.s32.totalorder %s1048, 1
          %s1053 = sphi %s2, %s2
          %s1054 = sphi [#allocation4], [#allocation4]
        $region143: #{gin_forward.1} parent=139 // loop_header_branch
          %1051 = sbr.rel (%p1049) target = $region147
        $region144: #{gin_forward.1} parent=139 // loop_body
          %v1055 = vld [vmem:[%s1053] sm:$0xff]
          %1056 = vst [vmem:[%s1054] sm:$0xff] %v1055
          %v1057 = vld [vmem:[%s1053 + $0x8] sm:$0xff]
          %1058 = vst [vmem:[%s1054 + $0x8] sm:$0xff] %v1057
          %v1059 = vld [vmem:[%s1053 + $0x10] sm:$0xff]
          %1060 = vst [vmem:[%s1054 + $0x10] sm:$0xff] %v1059
          %v1061 = vld [vmem:[%s1053 + $0x18] sm:$0xff]
          %1062 = vst [vmem:[%s1054 + $0x18] sm:$0xff] %v1061
        $region145: #{gin_forward.1} parent=139 // loop_footer
          %s1052 = sadd.s32 1, %s1048
        $region146: #{gin_forward.1} parent=139 // loop_footer_branch
          %1047 = sbr.rel target = $region142
        $region147: #{gin_forward.1} parent=139 // loop_exit
          _
      $region140: #{gin_forward.1} parent=124 // pred_fallthru
        _
      %p1063 = pneg %p1043
      // Predicated region
      $region148: #{gin_forward.1} parent=124 // pred_check
        _
      $region149: #{gin_forward.1} parent=124 // pred_check_branch
        %1065 = sbr.rel (%p1043) target = $region151
      $region150: #{gin_forward.1} parent=124 // pred_region
        %s1066 = sand.u32 32, 7
      $region151: #{gin_forward.1} parent=124 // pred_fallthru
        _
    $region125: #{gin_forward.1} parent=1 // pred_fallthru
      _
    // Predicated region
    $region126: #{gin_forward.1} parent=1 // pred_check
      %p1028 = pneg %p1024
    $region127: #{gin_forward.1} parent=1 // pred_check_branch
      %1030 = sbr.rel (%p1028) target = $region129
    $region128: #{gin_forward.1} parent=1 // pred_region
      %s1031 = sshllo.u32 0, 32
      loop: start=0, step=1, limit=1
      $region130: #{gin_forward.1} parent=128 // loop_pre_header
        _
      $region131: #{gin_forward.1} parent=128 // loop_header
        %s1033 = sphi 0, %s1037
        %p1034 = scmp.ge.s32.totalorder %s1033, 1
        %s1038 = sphi %s2, %s2
        %s1039 = sphi [#allocation4], [#allocation4]
      $region132: #{gin_forward.1} parent=128 // loop_header_branch
        %1036 = sbr.rel (%p1034) target = $region136
      $region133: #{gin_forward.1} parent=128 // loop_body
        %v1040 = vld [vmem:[%s1038] sm:%s1031]
        %1041 = vst [vmem:[%s1039] sm:%s1031] %v1040
      $region134: #{gin_forward.1} parent=128 // loop_footer
        %s1037 = sadd.s32 1, %s1033
      $region135: #{gin_forward.1} parent=128 // loop_footer_branch
        %1032 = sbr.rel target = $region131
      $region136: #{gin_forward.1} parent=128 // loop_exit
        _
    $region129: #{gin_forward.1} parent=1 // pred_fallthru
      _
    // Predicated region
    $region152: #{gin_forward.1} parent=1 // pred_check
      _
    $region153: #{gin_forward.1} parent=1 // pred_check_branch
      %1069 = sbr.rel (0) target = $region155
    $region154: #{gin_forward.1} parent=1 // pred_region
      %1070 = vsyncadd [#allocation5], 512
    $region155: #{gin_forward.1} parent=1 // pred_fallthru
      _
    %s1071 = sshll.u32 %s142, 4
    %1072 = dma.done [#allocation5], %s1071
    %p1074 = scmp.lt.u32.totalorder 32, 8
    %p1075 = pneg %p1074
    // Predicated region
    $region156: #{gin_forward.1} parent=1 // pred_check
      _
    $region157: #{gin_forward.1} parent=1 // pred_check_branch
      %1077 = sbr.rel (%p1074) target = $region159
    $region158: #{gin_forward.1} parent=1 // pred_region
      %s1092 = sand.u32 32, 7
      %p1093 = scmp.eq.s32.totalorder %s1092, 0
      // Predicated region
      $region171: #{gin_forward.1} parent=158 // pred_check
        %p1094 = pneg %p1093
      $region172: #{gin_forward.1} parent=158 // pred_check_branch
        %1096 = sbr.rel (%p1094) target = $region174
      $region173: #{gin_forward.1} parent=158 // pred_region
        loop: start=0, step=1, limit=1
        $region175: #{gin_forward.1} parent=173 // loop_pre_header
          _
        $region176: #{gin_forward.1} parent=173 // loop_header
          %s1098 = sphi 0, %s1102
          %p1099 = scmp.ge.s32.totalorder %s1098, 1
          %s1103 = sphi %s145, %s145
          %s1104 = sphi %s146, %s146
        $region177: #{gin_forward.1} parent=173 // loop_header_branch
          %1101 = sbr.rel (%p1099) target = $region181
        $region178: #{gin_forward.1} parent=173 // loop_body
          %v1105 = vld [vmem:[%s1103] sm:$0xff]
          %1106 = vst [vmem:[%s1104] sm:$0xff] %v1105
          %v1107 = vld [vmem:[%s1103 + $0x8] sm:$0xff]
          %1108 = vst [vmem:[%s1104 + $0x8] sm:$0xff] %v1107
          %v1109 = vld [vmem:[%s1103 + $0x10] sm:$0xff]
          %1110 = vst [vmem:[%s1104 + $0x10] sm:$0xff] %v1109
          %v1111 = vld [vmem:[%s1103 + $0x18] sm:$0xff]
          %1112 = vst [vmem:[%s1104 + $0x18] sm:$0xff] %v1111
        $region179: #{gin_forward.1} parent=173 // loop_footer
          %s1102 = sadd.s32 1, %s1098
        $region180: #{gin_forward.1} parent=173 // loop_footer_branch
          %1097 = sbr.rel target = $region176
        $region181: #{gin_forward.1} parent=173 // loop_exit
          _
      $region174: #{gin_forward.1} parent=158 // pred_fallthru
        _
      %p1113 = pneg %p1093
      // Predicated region
      $region182: #{gin_forward.1} parent=158 // pred_check
        _
      $region183: #{gin_forward.1} parent=158 // pred_check_branch
        %1115 = sbr.rel (%p1093) target = $region185
      $region184: #{gin_forward.1} parent=158 // pred_region
        %s1116 = sand.u32 32, 7
      $region185: #{gin_forward.1} parent=158 // pred_fallthru
        _
    $region159: #{gin_forward.1} parent=1 // pred_fallthru
      _
    // Predicated region
    $region160: #{gin_forward.1} parent=1 // pred_check
      %p1078 = pneg %p1074
    $region161: #{gin_forward.1} parent=1 // pred_check_branch
      %1080 = sbr.rel (%p1078) target = $region163
    $region162: #{gin_forward.1} parent=1 // pred_region
      %s1081 = sshllo.u32 0, 32
      loop: start=0, step=1, limit=1
      $region164: #{gin_forward.1} parent=162 // loop_pre_header
        _
      $region165: #{gin_forward.1} parent=162 // loop_header
        %s1083 = sphi 0, %s1087
        %p1084 = scmp.ge.s32.totalorder %s1083, 1
        %s1088 = sphi %s145, %s145
        %s1089 = sphi %s146, %s146
      $region166: #{gin_forward.1} parent=162 // loop_header_branch
        %1086 = sbr.rel (%p1084) target = $region170
      $region167: #{gin_forward.1} parent=162 // loop_body
        %v1090 = vld [vmem:[%s1088] sm:%s1081]
        %1091 = vst [vmem:[%s1089] sm:%s1081] %v1090
      $region168: #{gin_forward.1} parent=162 // loop_footer
        %s1087 = sadd.s32 1, %s1083
      $region169: #{gin_forward.1} parent=162 // loop_footer_branch
        %1082 = sbr.rel target = $region165
      $region170: #{gin_forward.1} parent=162 // loop_exit
        _
    $region163: #{gin_forward.1} parent=1 // pred_fallthru
      _
    // Predicated region
    $region186: #{gin_forward.1} parent=1 // pred_check
      _
    $region187: #{gin_forward.1} parent=1 // pred_check_branch
      %1119 = sbr.rel (0) target = $region189
    $region188: #{gin_forward.1} parent=1 // pred_region
      %1120 = vsyncadd %s147, 512
    $region189: #{gin_forward.1} parent=1 // pred_fallthru
      _
    %v1121 = vld [vmem:[#allocation4] sm:$0xff]
    %v1122 = vld [vmem:[#allocation4 + $0x8] sm:$0xff]
    %v1123 = vld [vmem:[#allocation4 + $0x10] sm:$0xff]
    %v1124 = vld [vmem:[#allocation4 + $0x18] sm:$0xff]
    %v1125 = vld [vmem:[#allocation2] sm:$0xff]
    %v1126 = vld [vmem:[#allocation2 + $0x8] sm:$0xff]
    %v1127 = vld [vmem:[#allocation2 + $0x10] sm:$0xff]
    %v1128 = vld [vmem:[#allocation2 + $0x18] sm:$0xff]
    %v1129 = vld [vmem:[#allocation2 + $0x20] sm:$0xff]
    %v1130 = vld [vmem:[#allocation2 + $0x28] sm:$0xff]
    %v1131 = vld [vmem:[#allocation2 + $0x30] sm:$0xff]
    %v1132 = vld [vmem:[#allocation2 + $0x38] sm:$0xff]
    %v1133 = vld [vmem:[#allocation2] sm:$0xff]
    %v1134 = vld [vmem:[#allocation2 + $0x8] sm:$0xff]
    %v1135 = vld [vmem:[#allocation2 + $0x10] sm:$0xff]
    %v1136 = vld [vmem:[#allocation2 + $0x18] sm:$0xff]
    %v1137 = vunpack.c.l.bf16 %v1133
    %v1138 = vunpack.c.h.bf16 %v1133
    %v1139 = vunpack.c.l.bf16 %v1134
    %v1140 = vunpack.c.h.bf16 %v1134
    %v1141 = vunpack.c.l.bf16 %v1135
    %v1142 = vunpack.c.h.bf16 %v1135
    %v1143 = vunpack.c.l.bf16 %v1136
    %v1144 = vunpack.c.h.bf16 %v1136
    %v1145 = vstv %s1022
    %v1146 = vmul.f32 %v1145, %v1137
    %v1147 = vmul.f32 %v1145, %v1138
    %v1148 = vmul.f32 %v1145, %v1139
    %v1149 = vmul.f32 %v1145, %v1140
    %v1150 = vmul.f32 %v1145, %v1141
    %v1151 = vmul.f32 %v1145, %v1142
    %v1152 = vmul.f32 %v1145, %v1143
    %v1153 = vmul.f32 %v1145, %v1144
    %1154 = vmatprep.subr.bf16.mxu0 0
    %1155 = vmatpush1.bf16.msra.mxu0 %v1125
    %1156 = vmatprep.subr.bf16.mxu0 0
    %1157 = vmatpush1.bf16.msra.mxu0 %v1126
    %1158 = vmatprep.subr.bf16.mxu0 0
    %1159 = vmatpush1.bf16.msra.mxu0 %v1127
    %1160 = vmatprep.subr.bf16.mxu0 0
    %1161 = vmatpush1.bf16.msra.mxu0 %v1128
    %1162 = vmatprep.subr.bf16.mxu0 0
    %1163 = vmatpush1.bf16.msra.mxu0 %v1129
    %1164 = vmatprep.subr.bf16.mxu0 0
    %1165 = vmatpush1.bf16.msra.mxu0 %v1130
    %1166 = vmatprep.subr.bf16.mxu0 0
    %1167 = vmatpush1.bf16.msra.mxu0 %v1131
    %1168 = vmatprep.subr.bf16.mxu0 0
    %1169 = vmatpush1.bf16.msra.mxu0 %v1132
    %1170 = vmatprep.subr.bf16.mxu0 0
    %1171 = vmatpush1.bf16.msra.mxu0 0
    %1172 = vmatprep.subr.bf16.mxu0 0
    %1173 = vmatpush1.bf16.msra.mxu0 0
    %1174 = vmatprep.subr.bf16.mxu0 0
    %1175 = vmatpush1.bf16.msra.mxu0 0
    %1176 = vmatprep.subr.bf16.mxu0 0
    %1177 = vmatpush1.bf16.msra.mxu0 0
    %1178 = vmatprep.subr.bf16.mxu0 0
    %1179 = vmatpush1.bf16.msra.mxu0 0
    %1180 = vmatprep.subr.bf16.mxu0 0
    %1181 = vmatpush1.bf16.msra.mxu0 0
    %1182 = vmatprep.subr.bf16.mxu0 0
    %1183 = vmatpush1.bf16.msra.mxu0 0
    %1184 = vmatprep.subr.bf16.mxu0 0
    %1185 = vmatpush1.bf16.msra.mxu0 0
    %1186 = vmatprep.mubr.bf16.mxu0 0
    %1187 = vmatmul.mubr.bf16.gmra.mrb[0].mxu0 %v1121
    %v1188 = vpop.f32.mrb[0].mxu0
    %v1189 = vadd.f32 %v1146, %v1188
    %v1190 = vpop.f32.mrb[0].mxu0
    %v1191 = vpop.f32.mrb[0].mxu0
    %v1192 = vadd.f32 %v1147, %v1191
    %v1193 = vpop.f32.mrb[0].mxu0
    %1194 = vmatprep.mubr.bf16.mxu0 0
    %1195 = vmatmul.mubr.bf16.gmra.mrb[0].mxu0 %v1122
    %v1196 = vpop.f32.mrb[0].mxu0
    %v1197 = vadd.f32 %v1148, %v1196
    %v1198 = vpop.f32.mrb[0].mxu0
    %v1199 = vpop.f32.mrb[0].mxu0
    %v1200 = vadd.f32 %v1149, %v1199
    %v1201 = vpop.f32.mrb[0].mxu0
    %1202 = vmatprep.mubr.bf16.mxu0 0
    %1203 = vmatmul.mubr.bf16.gmra.mrb[0].mxu0 %v1123
    %v1204 = vpop.f32.mrb[0].mxu0
    %v1205 = vadd.f32 %v1150, %v1204
    %v1206 = vpop.f32.mrb[0].mxu0
    %v1207 = vpop.f32.mrb[0].mxu0
    %v1208 = vadd.f32 %v1151, %v1207
    %v1209 = vpop.f32.mrb[0].mxu0
    %1210 = vmatprep.mubr.bf16.mxu0 0
    %1211 = vmatmul.mubr.bf16.gmra.mrb[0].mxu0 %v1124
    %v1212 = vpop.f32.mrb[0].mxu0
    %v1213 = vadd.f32 %v1152, %v1212
    %v1214 = vpop.f32.mrb[0].mxu0
    %v1215 = vpop.f32.mrb[0].mxu0
    %v1216 = vadd.f32 %v1153, %v1215
    %v1217 = vpop.f32.mrb[0].mxu0
    %1218 = vdwg.mxu0
    %v1219 = vpack.c.bf16 %v1192, %v1189
    %v1220 = vpack.c.bf16 %v1200, %v1197
    %v1221 = vpack.c.bf16 %v1208, %v1205
    %v1222 = vpack.c.bf16 %v1216, %v1213
    %v1223 = vlaneseq
    %v1224 = vshrl.u32 %v1223, 7
    %v1225 = vsub.s32 4, %v1224
    %v1226 = vrot.slane %v57, %v1225
    %v1243 = vunpack.c.l.b16 %v989
    %v1244 = vunpack.c.l.b16 %v990
    %v1245 = vunpack.c.l.b16 %v991
    %v1246 = vunpack.c.l.b16 %v992
    %v1247 = vunpack.c.l.b16 %v993
    %v1248 = vunpack.c.l.b16 %v994
    %v1249 = vunpack.c.l.b16 %v995
    %v1250 = vunpack.c.l.b16 %v996
    %v1251 = vunpack.c.l.b16 %v997
    %v1252 = vunpack.c.l.b16 %v998
    %v1253 = vunpack.c.l.b16 %v999
    %v1254 = vunpack.c.l.b16 %v1000
    %v1255 = vunpack.c.l.b16 %v1001
    %v1256 = vunpack.c.l.b16 %v1002
    %v1257 = vunpack.c.l.b16 %v1003
    %v1258 = vunpack.c.l.b16 %v1004
    %v1259 = vpack.c.b16 %v1244, %v1243
    %v1260 = vpack.c.b16 %v1246, %v1245
    %v1261 = vpack.c.b16 %v1248, %v1247
    %v1262 = vpack.c.b16 %v1250, %v1249
    %v1263 = vpack.c.b16 %v1252, %v1251
    %v1264 = vpack.c.b16 %v1254, %v1253
    %v1265 = vpack.c.b16 %v1256, %v1255
    %v1266 = vpack.c.b16 %v1258, %v1257
    %1275 = vmatprep.subr.bf16.mxu0 0
    %1276 = vmatpush1.bf16.msra.mxu0 %v1259
    %1277 = vmatprep.subr.bf16.mxu0 0
    %1278 = vmatpush1.bf16.msra.mxu0 %v1260
    %1279 = vmatprep.subr.bf16.mxu0 0
    %1280 = vmatpush1.bf16.msra.mxu0 %v1261
    %1281 = vmatprep.subr.bf16.mxu0 0
    %1282 = vmatpush1.bf16.msra.mxu0 %v1262
    %1283 = vmatprep.subr.bf16.mxu0 0
    %1284 = vmatpush1.bf16.msra.mxu0 %v1263
    %1285 = vmatprep.subr.bf16.mxu0 0
    %1286 = vmatpush1.bf16.msra.mxu0 %v1264
    %1287 = vmatprep.subr.bf16.mxu0 0
    %1288 = vmatpush1.bf16.msra.mxu0 %v1265
    %1289 = vmatprep.subr.bf16.mxu0 0
    %1290 = vmatpush1.bf16.msra.mxu0 %v1266
    %1291 = vmatprep.subr.bf16.mxu0 0
    %1292 = vmatpush1.bf16.msra.mxu0 0
    %1293 = vmatprep.subr.bf16.mxu0 0
    %1294 = vmatpush1.bf16.msra.mxu0 0
    %1295 = vmatprep.subr.bf16.mxu0 0
    %1296 = vmatpush1.bf16.msra.mxu0 0
    %1297 = vmatprep.subr.bf16.mxu0 0
    %1298 = vmatpush1.bf16.msra.mxu0 0
    %1299 = vmatprep.subr.bf16.mxu0 0
    %1300 = vmatpush1.bf16.msra.mxu0 0
    %1301 = vmatprep.subr.bf16.mxu0 0
    %1302 = vmatpush1.bf16.msra.mxu0 0
    %1303 = vmatprep.subr.bf16.mxu0 0
    %1304 = vmatpush1.bf16.msra.mxu0 0
    %1305 = vmatprep.subr.bf16.mxu0 0
    %1306 = vmatpush1.bf16.msra.mxu0 0
    %1307 = vmatprep.mubr.bf16.mxu0 0
    %1308 = vmatmul.mubr.bf16.gmra.mrb[0].mxu0 %v1219
    %v1309 = vpop.f32.mrb[0].mxu0
    %v1310 = vadd.f32 %v1226, %v1309
    %v1311 = vpop.f32.mrb[0].mxu0
    %v1312 = vpop.f32.mrb[0].mxu0
    %v1313 = vadd.f32 %v1226, %v1312
    %v1314 = vpop.f32.mrb[0].mxu0
    %1315 = vmatprep.mubr.bf16.mxu0 0
    %1316 = vmatmul.mubr.bf16.gmra.mrb[0].mxu0 %v1220
    %v1317 = vpop.f32.mrb[0].mxu0
    %v1318 = vadd.f32 %v1226, %v1317
    %v1319 = vpop.f32.mrb[0].mxu0
    %v1320 = vpop.f32.mrb[0].mxu0
    %v1321 = vadd.f32 %v1226, %v1320
    %v1322 = vpop.f32.mrb[0].mxu0
    %1323 = vmatprep.mubr.bf16.mxu0 0
    %1324 = vmatmul.mubr.bf16.gmra.mrb[0].mxu0 %v1221
    %v1325 = vpop.f32.mrb[0].mxu0
    %v1326 = vadd.f32 %v1226, %v1325
    %v1327 = vpop.f32.mrb[0].mxu0
    %v1328 = vpop.f32.mrb[0].mxu0
    %v1329 = vadd.f32 %v1226, %v1328
    %v1330 = vpop.f32.mrb[0].mxu0
    %1331 = vmatprep.mubr.bf16.mxu0 0
    %1332 = vmatmul.mubr.bf16.gmra.mrb[0].mxu0 %v1222
    %v1333 = vpop.f32.mrb[0].mxu0
    %v1334 = vadd.f32 %v1226, %v1333
    %v1335 = vpop.f32.mrb[0].mxu0
    %v1336 = vpop.f32.mrb[0].mxu0
    %v1337 = vadd.f32 %v1226, %v1336
    %v1338 = vpop.f32.mrb[0].mxu0
    %1339 = vdwg.mxu0
    %v1340 = vmax.f32 %v1310, 0.0
    %v1341 = vmax.f32 %v1313, 0.0
    %v1342 = vmax.f32 %v1318, 0.0
    %v1343 = vmax.f32 %v1321, 0.0
    %v1344 = vmax.f32 %v1326, 0.0
    %v1345 = vmax.f32 %v1329, 0.0
    %v1346 = vmax.f32 %v1334, 0.0
    %v1347 = vmax.f32 %v1337, 0.0
    %v1348 = vpack.c.bf16 %v1341, %v1340
    %v1349 = vpack.c.bf16 %v1343, %v1342
    %v1350 = vpack.c.bf16 %v1345, %v1344
    %v1351 = vpack.c.bf16 %v1347, %v1346
    %v1352 = vlaneseq
    %v1353 = vshrl.u32 %v1352, 7
    %v1354 = vsub.s32 5, %v1353
    %v1355 = vrot.slane %v57, %v1354
    %v1372 = vunpack.c.l.b16 %v1005
    %v1373 = vunpack.c.l.b16 %v1006
    %v1374 = vunpack.c.l.b16 %v1007
    %v1375 = vunpack.c.l.b16 %v1008
    %v1376 = vunpack.c.l.b16 %v1009
    %v1377 = vunpack.c.l.b16 %v1010
    %v1378 = vunpack.c.l.b16 %v1011
    %v1379 = vunpack.c.l.b16 %v1012
    %v1380 = vunpack.c.l.b16 %v1013
    %v1381 = vunpack.c.l.b16 %v1014
    %v1382 = vunpack.c.l.b16 %v1015
    %v1383 = vunpack.c.l.b16 %v1016
    %v1384 = vunpack.c.l.b16 %v1017
    %v1385 = vunpack.c.l.b16 %v1018
    %v1386 = vunpack.c.l.b16 %v1019
    %v1387 = vunpack.c.l.b16 %v1020
    %v1388 = vpack.c.b16 %v1373, %v1372
    %v1389 = vpack.c.b16 %v1375, %v1374
    %v1390 = vpack.c.b16 %v1377, %v1376
    %v1391 = vpack.c.b16 %v1379, %v1378
    %v1392 = vpack.c.b16 %v1381, %v1380
    %v1393 = vpack.c.b16 %v1383, %v1382
    %v1394 = vpack.c.b16 %v1385, %v1384
    %v1395 = vpack.c.b16 %v1387, %v1386
    %1404 = vmatprep.subr.bf16.mxu0 0
    %1405 = vmatpush1.bf16.msra.mxu0 %v1388
    %1406 = vmatprep.subr.bf16.mxu0 0
    %1407 = vmatpush1.bf16.msra.mxu0 %v1389
    %1408 = vmatprep.subr.bf16.mxu0 0
    %1409 = vmatpush1.bf16.msra.mxu0 %v1390
    %1410 = vmatprep.subr.bf16.mxu0 0
    %1411 = vmatpush1.bf16.msra.mxu0 %v1391
    %1412 = vmatprep.subr.bf16.mxu0 0
    %1413 = vmatpush1.bf16.msra.mxu0 %v1392
    %1414 = vmatprep.subr.bf16.mxu0 0
    %1415 = vmatpush1.bf16.msra.mxu0 %v1393
    %1416 = vmatprep.subr.bf16.mxu0 0
    %1417 = vmatpush1.bf16.msra.mxu0 %v1394
    %1418 = vmatprep.subr.bf16.mxu0 0
    %1419 = vmatpush1.bf16.msra.mxu0 %v1395
    %1420 = vmatprep.subr.bf16.mxu0 0
    %1421 = vmatpush1.bf16.msra.mxu0 0
    %1422 = vmatprep.subr.bf16.mxu0 0
    %1423 = vmatpush1.bf16.msra.mxu0 0
    %1424 = vmatprep.subr.bf16.mxu0 0
    %1425 = vmatpush1.bf16.msra.mxu0 0
    %1426 = vmatprep.subr.bf16.mxu0 0
    %1427 = vmatpush1.bf16.msra.mxu0 0
    %1428 = vmatprep.subr.bf16.mxu0 0
    %1429 = vmatpush1.bf16.msra.mxu0 0
    %1430 = vmatprep.subr.bf16.mxu0 0
    %1431 = vmatpush1.bf16.msra.mxu0 0
    %1432 = vmatprep.subr.bf16.mxu0 0
    %1433 = vmatpush1.bf16.msra.mxu0 0
    %1434 = vmatprep.subr.bf16.mxu0 0
    %1435 = vmatpush1.bf16.msra.mxu0 0
    %1436 = vmatprep.mubr.bf16.mxu0 0
    %1437 = vmatmul.mubr.bf16.gmra.mrb[0].mxu0 %v1348
    %v1438 = vpop.f32.mrb[0].mxu0
    %v1439 = vadd.f32 %v1355, %v1438
    %v1440 = vpop.f32.mrb[0].mxu0
    %v1441 = vpop.f32.mrb[0].mxu0
    %v1442 = vadd.f32 %v1355, %v1441
    %v1443 = vpop.f32.mrb[0].mxu0
    %1444 = vmatprep.mubr.bf16.mxu0 0
    %1445 = vmatmul.mubr.bf16.gmra.mrb[0].mxu0 %v1349
    %v1446 = vpop.f32.mrb[0].mxu0
    %v1447 = vadd.f32 %v1355, %v1446
    %v1448 = vpop.f32.mrb[0].mxu0
    %v1449 = vpop.f32.mrb[0].mxu0
    %v1450 = vadd.f32 %v1355, %v1449
    %v1451 = vpop.f32.mrb[0].mxu0
    %1452 = vmatprep.mubr.bf16.mxu0 0
    %1453 = vmatmul.mubr.bf16.gmra.mrb[0].mxu0 %v1350
    %v1454 = vpop.f32.mrb[0].mxu0
    %v1455 = vadd.f32 %v1355, %v1454
    %v1456 = vpop.f32.mrb[0].mxu0
    %v1457 = vpop.f32.mrb[0].mxu0
    %v1458 = vadd.f32 %v1355, %v1457
    %v1459 = vpop.f32.mrb[0].mxu0
    %1460 = vmatprep.mubr.bf16.mxu0 0
    %1461 = vmatmul.mubr.bf16.gmra.mrb[0].mxu0 %v1351
    %v1462 = vpop.f32.mrb[0].mxu0
    %v1463 = vadd.f32 %v1355, %v1462
    %v1464 = vpop.f32.mrb[0].mxu0
    %v1465 = vpop.f32.mrb[0].mxu0
    %v1466 = vadd.f32 %v1355, %v1465
    %v1467 = vpop.f32.mrb[0].mxu0
    %1468 = vdwg.mxu0
    %v1469 = vmax.f32 %v1439, 0.0
    %v1470 = vmax.f32 %v1442, 0.0
    %v1471 = vmax.f32 %v1447, 0.0
    %v1472 = vmax.f32 %v1450, 0.0
    %v1473 = vmax.f32 %v1455, 0.0
    %v1474 = vmax.f32 %v1458, 0.0
    %v1475 = vmax.f32 %v1463, 0.0
    %v1476 = vmax.f32 %v1466, 0.0
    %v1477 = vlaneseq
    %v1478 = vshrl.u32 %v1477, 7
    %v1479 = vsub.s32 6, %v1478
    %v1480 = vrot.slane %v57, %v1479
    %v1481 = vmul.f32 %v1469, %v1480
    %v1482 = vmul.f32 %v1470, %v1480
    %v1483 = vmul.f32 %v1471, %v1480
    %v1484 = vmul.f32 %v1472, %v1480
    %v1485 = vmul.f32 %v1473, %v1480
    %v1486 = vmul.f32 %v1474, %v1480
    %v1487 = vmul.f32 %v1475, %v1480
    %v1488 = vmul.f32 %v1476, %v1480
    %v1489 = vlaneseq
    %v1490 = vshrl.u32 %v1489, 7
    %v1491 = vsub.s32 7, %v1490
    %v1492 = vrot.slane %v57, %v1491
    %v1493 = vadd.f32 %v1481, %v1492
    %v1494 = vadd.f32 %v1482, %v1492
    %v1495 = vadd.f32 %v1483, %v1492
    %v1496 = vadd.f32 %v1484, %v1492
    %v1497 = vadd.f32 %v1485, %v1492
    %v1498 = vadd.f32 %v1486, %v1492
    %v1499 = vadd.f32 %v1487, %v1492
    %v1500 = vadd.f32 %v1488, %v1492
    %v1501 = vmax.f32 %v1493, 0.0
    %v1502 = vmax.f32 %v1494, 0.0
    %v1503 = vmax.f32 %v1495, 0.0
    %v1504 = vmax.f32 %v1496, 0.0
    %v1505 = vmax.f32 %v1497, 0.0
    %v1506 = vmax.f32 %v1498, 0.0
    %v1507 = vmax.f32 %v1499, 0.0
    %v1508 = vmax.f32 %v1500, 0.0
    %v1509 = vpack.c.bf16 %v1502, %v1501
    %v1510 = vpack.c.bf16 %v1504, %v1503
    %v1511 = vpack.c.bf16 %v1506, %v1505
    %v1512 = vpack.c.bf16 %v1508, %v1507
    %1513 = vst [vmem:[#allocation3] sm:$0xff] %v1509
    %1514 = vst [vmem:[#allocation3 + $0x8] sm:$0xff] %v1510
    %1515 = vst [vmem:[#allocation3 + $0x10] sm:$0xff] %v1511
    %1516 = vst [vmem:[#allocation3 + $0x18] sm:$0xff] %v1512
    %s1517 = sshll.u32 %s142, 4
    %1518 = dma.done %s147, %s1517
    %v1519 = vld [vmem:[%s146] sm:$0xff]
    %v1520 = vld [vmem:[%s146 + $0x8] sm:$0xff]
    %v1521 = vld [vmem:[%s146 + $0x10] sm:$0xff]
    %v1522 = vld [vmem:[%s146 + $0x18] sm:$0xff]
    %v1523 = vld [vmem:[#allocation2] sm:$0xff]
    %v1524 = vld [vmem:[#allocation2 + $0x8] sm:$0xff]
    %v1525 = vld [vmem:[#allocation2 + $0x10] sm:$0xff]
    %v1526 = vld [vmem:[#allocation2 + $0x18] sm:$0xff]
    %v1527 = vld [vmem:[#allocation2 + $0x20] sm:$0xff]
    %v1528 = vld [vmem:[#allocation2 + $0x28] sm:$0xff]
    %v1529 = vld [vmem:[#allocation2 + $0x30] sm:$0xff]
    %v1530 = vld [vmem:[#allocation2 + $0x38] sm:$0xff]
    %v1531 = vunpack.c.l.bf16 %v1527
    %v1532 = vunpack.c.h.bf16 %v1527
    %v1533 = vunpack.c.l.bf16 %v1528
    %v1534 = vunpack.c.h.bf16 %v1528
    %v1535 = vunpack.c.l.bf16 %v1529
    %v1536 = vunpack.c.h.bf16 %v1529
    %v1537 = vunpack.c.l.bf16 %v1530
    %v1538 = vunpack.c.h.bf16 %v1530
    %v1539 = vmul.f32 %v1145, %v1531
    %v1540 = vmul.f32 %v1145, %v1532
    %v1541 = vmul.f32 %v1145, %v1533
    %v1542 = vmul.f32 %v1145, %v1534
    %v1543 = vmul.f32 %v1145, %v1535
    %v1544 = vmul.f32 %v1145, %v1536
    %v1545 = vmul.f32 %v1145, %v1537
    %v1546 = vmul.f32 %v1145, %v1538
    %1547 = vmatprep.subr.bf16.mxu0 0
    %1548 = vmatpush1.bf16.msra.mxu0 %v1523
    %1549 = vmatprep.subr.bf16.mxu0 0
    %1550 = vmatpush1.bf16.msra.mxu0 %v1524
    %1551 = vmatprep.subr.bf16.mxu0 0
    %1552 = vmatpush1.bf16.msra.mxu0 %v1525
    %1553 = vmatprep.subr.bf16.mxu0 0
    %1554 = vmatpush1.bf16.msra.mxu0 %v1526
    %1555 = vmatprep.subr.bf16.mxu0 0
    %1556 = vmatpush1.bf16.msra.mxu0 %v1527
    %1557 = vmatprep.subr.bf16.mxu0 0
    %1558 = vmatpush1.bf16.msra.mxu0 %v1528
    %1559 = vmatprep.subr.bf16.mxu0 0
    %1560 = vmatpush1.bf16.msra.mxu0 %v1529
    %1561 = vmatprep.subr.bf16.mxu0 0
    %1562 = vmatpush1.bf16.msra.mxu0 %v1530
    %1563 = vmatprep.subr.bf16.mxu0 0
    %1564 = vmatpush1.bf16.msra.mxu0 0
    %1565 = vmatprep.subr.bf16.mxu0 0
    %1566 = vmatpush1.bf16.msra.mxu0 0
    %1567 = vmatprep.subr.bf16.mxu0 0
    %1568 = vmatpush1.bf16.msra.mxu0 0
    %1569 = vmatprep.subr.bf16.mxu0 0
    %1570 = vmatpush1.bf16.msra.mxu0 0
    %1571 = vmatprep.subr.bf16.mxu0 0
    %1572 = vmatpush1.bf16.msra.mxu0 0
    %1573 = vmatprep.subr.bf16.mxu0 0
    %1574 = vmatpush1.bf16.msra.mxu0 0
    %1575 = vmatprep.subr.bf16.mxu0 0
    %1576 = vmatpush1.bf16.msra.mxu0 0
    %1577 = vmatprep.subr.bf16.mxu0 0
    %1578 = vmatpush1.bf16.msra.mxu0 0
    %1579 = vmatprep.mubr.bf16.mxu0 0
    %1580 = vmatmul.mubr.bf16.gmra.mrb[0].mxu0 %v1519
    %v1581 = vpop.f32.mrb[0].mxu0
    %v1582 = vadd.f32 %v1539, %v1581
    %v1583 = vpop.f32.mrb[0].mxu0
    %v1584 = vpop.f32.mrb[0].mxu0
    %v1585 = vadd.f32 %v1540, %v1584
    %v1586 = vpop.f32.mrb[0].mxu0
    %1587 = vmatprep.mubr.bf16.mxu0 0
    %1588 = vmatmul.mubr.bf16.gmra.mrb[0].mxu0 %v1520
    %v1589 = vpop.f32.mrb[0].mxu0
    %v1590 = vadd.f32 %v1541, %v1589
    %v1591 = vpop.f32.mrb[0].mxu0
    %v1592 = vpop.f32.mrb[0].mxu0
    %v1593 = vadd.f32 %v1542, %v1592
    %v1594 = vpop.f32.mrb[0].mxu0
    %1595 = vmatprep.mubr.bf16.mxu0 0
    %1596 = vmatmul.mubr.bf16.gmra.mrb[0].mxu0 %v1521
    %v1597 = vpop.f32.mrb[0].mxu0
    %v1598 = vadd.f32 %v1543, %v1597
    %v1599 = vpop.f32.mrb[0].mxu0
    %v1600 = vpop.f32.mrb[0].mxu0
    %v1601 = vadd.f32 %v1544, %v1600
    %v1602 = vpop.f32.mrb[0].mxu0
    %1603 = vmatprep.mubr.bf16.mxu0 0
    %1604 = vmatmul.mubr.bf16.gmra.mrb[0].mxu0 %v1522
    %v1605 = vpop.f32.mrb[0].mxu0
    %v1606 = vadd.f32 %v1545, %v1605
    %v1607 = vpop.f32.mrb[0].mxu0
    %v1608 = vpop.f32.mrb[0].mxu0
    %v1609 = vadd.f32 %v1546, %v1608
    %v1610 = vpop.f32.mrb[0].mxu0
    %1611 = vdwg.mxu0
    %v1612 = vpack.c.bf16 %v1585, %v1582
    %v1613 = vpack.c.bf16 %v1593, %v1590
    %v1614 = vpack.c.bf16 %v1601, %v1598
    %v1615 = vpack.c.bf16 %v1609, %v1606
    %1616 = vmatprep.subr.bf16.mxu0 0
    %1617 = vmatpush1.bf16.msra.mxu0 %v1259
    %1618 = vmatprep.subr.bf16.mxu0 0
    %1619 = vmatpush1.bf16.msra.mxu0 %v1260
    %1620 = vmatprep.subr.bf16.mxu0 0
    %1621 = vmatpush1.bf16.msra.mxu0 %v1261
    %1622 = vmatprep.subr.bf16.mxu0 0
    %1623 = vmatpush1.bf16.msra.mxu0 %v1262
    %1624 = vmatprep.subr.bf16.mxu0 0
    %1625 = vmatpush1.bf16.msra.mxu0 %v1263
    %1626 = vmatprep.subr.bf16.mxu0 0
    %1627 = vmatpush1.bf16.msra.mxu0 %v1264
    %1628 = vmatprep.subr.bf16.mxu0 0
    %1629 = vmatpush1.bf16.msra.mxu0 %v1265
    %1630 = vmatprep.subr.bf16.mxu0 0
    %1631 = vmatpush1.bf16.msra.mxu0 %v1266
    %1632 = vmatprep.subr.bf16.mxu0 0
    %1633 = vmatpush1.bf16.msra.mxu0 0
    %1634 = vmatprep.subr.bf16.mxu0 0
    %1635 = vmatpush1.bf16.msra.mxu0 0
    %1636 = vmatprep.subr.bf16.mxu0 0
    %1637 = vmatpush1.bf16.msra.mxu0 0
    %1638 = vmatprep.subr.bf16.mxu0 0
    %1639 = vmatpush1.bf16.msra.mxu0 0
    %1640 = vmatprep.subr.bf16.mxu0 0
    %1641 = vmatpush1.bf16.msra.mxu0 0
    %1642 = vmatprep.subr.bf16.mxu0 0
    %1643 = vmatpush1.bf16.msra.mxu0 0
    %1644 = vmatprep.subr.bf16.mxu0 0
    %1645 = vmatpush1.bf16.msra.mxu0 0
    %1646 = vmatprep.subr.bf16.mxu0 0
    %1647 = vmatpush1.bf16.msra.mxu0 0
    %1648 = vmatprep.mubr.bf16.mxu0 0
    %1649 = vmatmul.mubr.bf16.gmra.mrb[0].mxu0 %v1612
    %v1650 = vpop.f32.mrb[0].mxu0
    %v1651 = vadd.f32 %v1226, %v1650
    %v1652 = vpop.f32.mrb[0].mxu0
    %v1653 = vpop.f32.mrb[0].mxu0
    %v1654 = vadd.f32 %v1226, %v1653
    %v1655 = vpop.f32.mrb[0].mxu0
    %1656 = vmatprep.mubr.bf16.mxu0 0
    %1657 = vmatmul.mubr.bf16.gmra.mrb[0].mxu0 %v1613
    %v1658 = vpop.f32.mrb[0].mxu0
    %v1659 = vadd.f32 %v1226, %v1658
    %v1660 = vpop.f32.mrb[0].mxu0
    %v1661 = vpop.f32.mrb[0].mxu0
    %v1662 = vadd.f32 %v1226, %v1661
    %v1663 = vpop.f32.mrb[0].mxu0
    %1664 = vmatprep.mubr.bf16.mxu0 0
    %1665 = vmatmul.mubr.bf16.gmra.mrb[0].mxu0 %v1614
    %v1666 = vpop.f32.mrb[0].mxu0
    %v1667 = vadd.f32 %v1226, %v1666
    %v1668 = vpop.f32.mrb[0].mxu0
    %v1669 = vpop.f32.mrb[0].mxu0
    %v1670 = vadd.f32 %v1226, %v1669
    %v1671 = vpop.f32.mrb[0].mxu0
    %1672 = vmatprep.mubr.bf16.mxu0 0
    %1673 = vmatmul.mubr.bf16.gmra.mrb[0].mxu0 %v1615
    %v1674 = vpop.f32.mrb[0].mxu0
    %v1675 = vadd.f32 %v1226, %v1674
    %v1676 = vpop.f32.mrb[0].mxu0
    %v1677 = vpop.f32.mrb[0].mxu0
    %v1678 = vadd.f32 %v1226, %v1677
    %v1679 = vpop.f32.mrb[0].mxu0
    %1680 = vdwg.mxu0
    %v1681 = vmax.f32 %v1651, 0.0
    %v1682 = vmax.f32 %v1654, 0.0
    %v1683 = vmax.f32 %v1659, 0.0
    %v1684 = vmax.f32 %v1662, 0.0
    %v1685 = vmax.f32 %v1667, 0.0
    %v1686 = vmax.f32 %v1670, 0.0
    %v1687 = vmax.f32 %v1675, 0.0
    %v1688 = vmax.f32 %v1678, 0.0
    %v1689 = vpack.c.bf16 %v1682, %v1681
    %v1690 = vpack.c.bf16 %v1684, %v1683
    %v1691 = vpack.c.bf16 %v1686, %v1685
    %v1692 = vpack.c.bf16 %v1688, %v1687
    %1693 = vmatprep.subr.bf16.mxu0 0
    %1694 = vmatpush1.bf16.msra.mxu0 %v1388
    %1695 = vmatprep.subr.bf16.mxu0 0
    %1696 = vmatpush1.bf16.msra.mxu0 %v1389
    %1697 = vmatprep.subr.bf16.mxu0 0
    %1698 = vmatpush1.bf16.msra.mxu0 %v1390
    %1699 = vmatprep.subr.bf16.mxu0 0
    %1700 = vmatpush1.bf16.msra.mxu0 %v1391
    %1701 = vmatprep.subr.bf16.mxu0 0
    %1702 = vmatpush1.bf16.msra.mxu0 %v1392
    %1703 = vmatprep.subr.bf16.mxu0 0
    %1704 = vmatpush1.bf16.msra.mxu0 %v1393
    %1705 = vmatprep.subr.bf16.mxu0 0
    %1706 = vmatpush1.bf16.msra.mxu0 %v1394
    %1707 = vmatprep.subr.bf16.mxu0 0
    %1708 = vmatpush1.bf16.msra.mxu0 %v1395
    %1709 = vmatprep.subr.bf16.mxu0 0
    %1710 = vmatpush1.bf16.msra.mxu0 0
    %1711 = vmatprep.subr.bf16.mxu0 0
    %1712 = vmatpush1.bf16.msra.mxu0 0
    %1713 = vmatprep.subr.bf16.mxu0 0
    %1714 = vmatpush1.bf16.msra.mxu0 0
    %1715 = vmatprep.subr.bf16.mxu0 0
    %1716 = vmatpush1.bf16.msra.mxu0 0
    %1717 = vmatprep.subr.bf16.mxu0 0
    %1718 = vmatpush1.bf16.msra.mxu0 0
    %1719 = vmatprep.subr.bf16.mxu0 0
    %1720 = vmatpush1.bf16.msra.mxu0 0
    %1721 = vmatprep.subr.bf16.mxu0 0
    %1722 = vmatpush1.bf16.msra.mxu0 0
    %1723 = vmatprep.subr.bf16.mxu0 0
    %1724 = vmatpush1.bf16.msra.mxu0 0
    %1725 = vmatprep.mubr.bf16.mxu0 0
    %1726 = vmatmul.mubr.bf16.gmra.mrb[0].mxu0 %v1689
    %v1727 = vpop.f32.mrb[0].mxu0
    %v1728 = vadd.f32 %v1355, %v1727
    %v1729 = vpop.f32.mrb[0].mxu0
    %v1730 = vpop.f32.mrb[0].mxu0
    %v1731 = vadd.f32 %v1355, %v1730
    %v1732 = vpop.f32.mrb[0].mxu0
    %1733 = vmatprep.mubr.bf16.mxu0 0
    %1734 = vmatmul.mubr.bf16.gmra.mrb[0].mxu0 %v1690
    %v1735 = vpop.f32.mrb[0].mxu0
    %v1736 = vadd.f32 %v1355, %v1735
    %v1737 = vpop.f32.mrb[0].mxu0
    %v1738 = vpop.f32.mrb[0].mxu0
    %v1739 = vadd.f32 %v1355, %v1738
    %v1740 = vpop.f32.mrb[0].mxu0
    %1741 = vmatprep.mubr.bf16.mxu0 0
    %1742 = vmatmul.mubr.bf16.gmra.mrb[0].mxu0 %v1691
    %v1743 = vpop.f32.mrb[0].mxu0
    %v1744 = vadd.f32 %v1355, %v1743
    %v1745 = vpop.f32.mrb[0].mxu0
    %v1746 = vpop.f32.mrb[0].mxu0
    %v1747 = vadd.f32 %v1355, %v1746
    %v1748 = vpop.f32.mrb[0].mxu0
    %1749 = vmatprep.mubr.bf16.mxu0 0
    %1750 = vmatmul.mubr.bf16.gmra.mrb[0].mxu0 %v1692
    %v1751 = vpop.f32.mrb[0].mxu0
    %v1752 = vadd.f32 %v1355, %v1751
    %v1753 = vpop.f32.mrb[0].mxu0
    %v1754 = vpop.f32.mrb[0].mxu0
    %v1755 = vadd.f32 %v1355, %v1754
    %v1756 = vpop.f32.mrb[0].mxu0
    %1757 = vdwg.mxu0
    %v1758 = vmax.f32 %v1728, 0.0
    %v1759 = vmax.f32 %v1731, 0.0
    %v1760 = vmax.f32 %v1736, 0.0
    %v1761 = vmax.f32 %v1739, 0.0
    %v1762 = vmax.f32 %v1744, 0.0
    %v1763 = vmax.f32 %v1747, 0.0
    %v1764 = vmax.f32 %v1752, 0.0
    %v1765 = vmax.f32 %v1755, 0.0
    %v1766 = vmul.f32 %v1758, %v1480
    %v1767 = vmul.f32 %v1759, %v1480
    %v1768 = vmul.f32 %v1760, %v1480
    %v1769 = vmul.f32 %v1761, %v1480
    %v1770 = vmul.f32 %v1762, %v1480
    %v1771 = vmul.f32 %v1763, %v1480
    %v1772 = vmul.f32 %v1764, %v1480
    %v1773 = vmul.f32 %v1765, %v1480
    %v1774 = vadd.f32 %v1766, %v1492
    %v1775 = vadd.f32 %v1767, %v1492
    %v1776 = vadd.f32 %v1768, %v1492
    %v1777 = vadd.f32 %v1769, %v1492
    %v1778 = vadd.f32 %v1770, %v1492
    %v1779 = vadd.f32 %v1771, %v1492
    %v1780 = vadd.f32 %v1772, %v1492
    %v1781 = vadd.f32 %v1773, %v1492
    %v1782 = vmax.f32 %v1774, 0.0
    %v1783 = vmax.f32 %v1775, 0.0
    %v1784 = vmax.f32 %v1776, 0.0
    %v1785 = vmax.f32 %v1777, 0.0
    %v1786 = vmax.f32 %v1778, 0.0
    %v1787 = vmax.f32 %v1779, 0.0
    %v1788 = vmax.f32 %v1780, 0.0
    %v1789 = vmax.f32 %v1781, 0.0
    %v1790 = vpack.c.bf16 %v1783, %v1782
    %v1791 = vpack.c.bf16 %v1785, %v1784
    %v1792 = vpack.c.bf16 %v1787, %v1786
    %v1793 = vpack.c.bf16 %v1789, %v1788
    %1794 = vst [vmem:[#allocation3 + $0x20] sm:$0xff] %v1790
    %1795 = vst [vmem:[#allocation3 + $0x28] sm:$0xff] %v1791
    %1796 = vst [vmem:[#allocation3 + $0x30] sm:$0xff] %v1792
    %1797 = vst [vmem:[#allocation3 + $0x38] sm:$0xff] %v1793
    %v1798 = vlaneseq
    %v1799 = vand.u32 %v1798, 127
    %v1800 = vld [vmem:[%s1] sm:$0xff]
    %v1801 = vld [vmem:[%s1 + $0x8] sm:$0xff]
    %1802 = vset.pattern.permute.xlu0 0
    %1803 = vperm.xlu0 %1802, %v1800
    %v1804 = vpop.permute.xlu0 %1803
    %1805 = vset.pattern.permute.xlu0 0
    %1806 = vperm.xlu0 %1805, %v1801
    %v1807 = vpop.permute.xlu0 %1806
    %vm1808 = vcmp.eq.s32.totalorder %v1799, %v1804
    %vm1809 = vcmp.eq.s32.totalorder %v1799, %v1807
    %v1810 = vsel %vm1808, 1, 0
    %v1811 = vsel %vm1809, 1, 0
    %v1812 = vcvt.s32.f32 %v1810
    %v1813 = vcvt.s32.f32 %v1811
    %v1814 = vpack.c.bf16 %v1813, %v1812
    %v1815 = vld [vmem:[#allocation3] sm:$0xff]
    %v1816 = vld [vmem:[#allocation3 + $0x8] sm:$0xff]
    %v1817 = vld [vmem:[#allocation3 + $0x10] sm:$0xff]
    %v1818 = vld [vmem:[#allocation3 + $0x18] sm:$0xff]
    %v1819 = vld [vmem:[#allocation3 + $0x20] sm:$0xff]
    %v1820 = vld [vmem:[#allocation3 + $0x28] sm:$0xff]
    %v1821 = vld [vmem:[#allocation3 + $0x30] sm:$0xff]
    %v1822 = vld [vmem:[#allocation3 + $0x38] sm:$0xff]
    %1823 = vmatprep.subr.bf16.mxu0 0
    %1824 = vmatpush1.bf16.msra.mxu0 %v1815
    %1825 = vmatprep.subr.bf16.mxu0 0
    %1826 = vmatpush1.bf16.msra.mxu0 %v1816
    %1827 = vmatprep.subr.bf16.mxu0 0
    %1828 = vmatpush1.bf16.msra.mxu0 %v1817
    %1829 = vmatprep.subr.bf16.mxu0 0
    %1830 = vmatpush1.bf16.msra.mxu0 %v1818
    %1831 = vmatprep.subr.bf16.mxu0 0
    %1832 = vmatpush1.bf16.msra.mxu0 %v1819
    %1833 = vmatprep.subr.bf16.mxu0 0
    %1834 = vmatpush1.bf16.msra.mxu0 %v1820
    %1835 = vmatprep.subr.bf16.mxu0 0
    %1836 = vmatpush1.bf16.msra.mxu0 %v1821
    %1837 = vmatprep.subr.bf16.mxu0 0
    %1838 = vmatpush1.bf16.msra.mxu0 %v1822
    %1839 = vmatprep.subr.bf16.mxu0 0
    %1840 = vmatpush1.bf16.msra.mxu0 0
    %1841 = vmatprep.subr.bf16.mxu0 0
    %1842 = vmatpush1.bf16.msra.mxu0 0
    %1843 = vmatprep.subr.bf16.mxu0 0
    %1844 = vmatpush1.bf16.msra.mxu0 0
    %1845 = vmatprep.subr.bf16.mxu0 0
    %1846 = vmatpush1.bf16.msra.mxu0 0
    %1847 = vmatprep.subr.bf16.mxu0 0
    %1848 = vmatpush1.bf16.msra.mxu0 0
    %1849 = vmatprep.subr.bf16.mxu0 0
    %1850 = vmatpush1.bf16.msra.mxu0 0
    %1851 = vmatprep.subr.bf16.mxu0 0
    %1852 = vmatpush1.bf16.msra.mxu0 0
    %1853 = vmatprep.subr.bf16.mxu0 0
    %1854 = vmatpush1.bf16.msra.mxu0 0
    %1855 = vmatprep.mubr.bf16.mxu0 0
    %1856 = vmatmul.mubr.bf16.gmra.mrb[0].mxu0 %v1814
    %v1857 = vpop.f32.mrb[0].mxu0
    %v1858 = vadd.f32 0.0, %v1857
    %v1859 = vpop.f32.mrb[0].mxu0
    %v1860 = vpop.f32.mrb[0].mxu0
    %v1861 = vadd.f32 0.0, %v1860
    %v1862 = vpop.f32.mrb[0].mxu0
    %1863 = vdwg.mxu0
    %v1864 = vld [vmem:[%s9] sm:$0xf]
    %v1865 = vld [vmem:[%s9 + $0x4] sm:$0xf]
    %v1866 = vld [vmem:[%s9 + $0x8] sm:$0xf]
    %v1867 = vld [vmem:[%s9 + $0xc] sm:$0xf]
    %v1868 = vld [vmem:[%s9 + $0x10] sm:$0xf]
    %v1869 = vld [vmem:[%s9 + $0x14] sm:$0xf]
    %v1870 = vld [vmem:[%s9 + $0x18] sm:$0xf]
    %v1871 = vld [vmem:[%s9 + $0x1c] sm:$0xf]
    %v1872 = vld [vmem:[%s9 + $0x20] sm:$0xf]
    %v1873 = vld [vmem:[%s9 + $0x24] sm:$0xf]
    %v1874 = vld [vmem:[%s9 + $0x28] sm:$0xf]
    %v1875 = vld [vmem:[%s9 + $0x2c] sm:$0xf]
    %v1876 = vld [vmem:[%s9 + $0x30] sm:$0xf]
    %v1877 = vld [vmem:[%s9 + $0x34] sm:$0xf]
    %v1878 = vld [vmem:[%s9 + $0x38] sm:$0xf]
    %v1879 = vld [vmem:[%s9 + $0x3c] sm:$0xf]
    %v1880 = vld [vmem:[%s10] sm:$0xf]
    %v1881 = vld [vmem:[%s10 + $0x4] sm:$0xf]
    %v1882 = vld [vmem:[%s10 + $0x8] sm:$0xf]
    %v1883 = vld [vmem:[%s10 + $0xc] sm:$0xf]
    %v1884 = vld [vmem:[%s10 + $0x10] sm:$0xf]
    %v1885 = vld [vmem:[%s10 + $0x14] sm:$0xf]
    %v1886 = vld [vmem:[%s10 + $0x18] sm:$0xf]
    %v1887 = vld [vmem:[%s10 + $0x1c] sm:$0xf]
    %v1888 = vld [vmem:[%s10 + $0x20] sm:$0xf]
    %v1889 = vld [vmem:[%s10 + $0x24] sm:$0xf]
    %v1890 = vld [vmem:[%s10 + $0x28] sm:$0xf]
    %v1891 = vld [vmem:[%s10 + $0x2c] sm:$0xf]
    %v1892 = vld [vmem:[%s10 + $0x30] sm:$0xf]
    %v1893 = vld [vmem:[%s10 + $0x34] sm:$0xf]
    %v1894 = vld [vmem:[%s10 + $0x38] sm:$0xf]
    %v1895 = vld [vmem:[%s10 + $0x3c] sm:$0xf]
    %v1896 = vld [vmem:[%s11] sm:$0xf]
    %v1897 = vld [vmem:[%s11 + $0x4] sm:$0xf]
    %v1898 = vld [vmem:[%s11 + $0x8] sm:$0xf]
    %v1899 = vld [vmem:[%s11 + $0xc] sm:$0xf]
    %v1900 = vld [vmem:[%s11 + $0x10] sm:$0xf]
    %v1901 = vld [vmem:[%s11 + $0x14] sm:$0xf]
    %v1902 = vld [vmem:[%s11 + $0x18] sm:$0xf]
    %v1903 = vld [vmem:[%s11 + $0x1c] sm:$0xf]
    %v1904 = vld [vmem:[%s11 + $0x20] sm:$0xf]
    %v1905 = vld [vmem:[%s11 + $0x24] sm:$0xf]
    %v1906 = vld [vmem:[%s11 + $0x28] sm:$0xf]
    %v1907 = vld [vmem:[%s11 + $0x2c] sm:$0xf]
    %v1908 = vld [vmem:[%s11 + $0x30] sm:$0xf]
    %v1909 = vld [vmem:[%s11 + $0x34] sm:$0xf]
    %v1910 = vld [vmem:[%s11 + $0x38] sm:$0xf]
    %v1911 = vld [vmem:[%s11 + $0x3c] sm:$0xf]
    %v1912 = vld [vmem:[%s12] sm:$0xf]
    %v1913 = vld [vmem:[%s12 + $0x4] sm:$0xf]
    %v1914 = vld [vmem:[%s12 + $0x8] sm:$0xf]
    %v1915 = vld [vmem:[%s12 + $0xc] sm:$0xf]
    %v1916 = vld [vmem:[%s12 + $0x10] sm:$0xf]
    %v1917 = vld [vmem:[%s12 + $0x14] sm:$0xf]
    %v1918 = vld [vmem:[%s12 + $0x18] sm:$0xf]
    %v1919 = vld [vmem:[%s12 + $0x1c] sm:$0xf]
    %v1920 = vld [vmem:[%s12 + $0x20] sm:$0xf]
    %v1921 = vld [vmem:[%s12 + $0x24] sm:$0xf]
    %v1922 = vld [vmem:[%s12 + $0x28] sm:$0xf]
    %v1923 = vld [vmem:[%s12 + $0x2c] sm:$0xf]
    %v1924 = vld [vmem:[%s12 + $0x30] sm:$0xf]
    %v1925 = vld [vmem:[%s12 + $0x34] sm:$0xf]
    %v1926 = vld [vmem:[%s12 + $0x38] sm:$0xf]
    %v1927 = vld [vmem:[%s12 + $0x3c] sm:$0xf]
    %v1928 = vpack.c.bf16 %v1861, %v1858
    %v1929 = vlaneseq
    %v1930 = vshrl.u32 %v1929, 7
    %v1931 = vsub.s32 0, %v1930
    %v1932 = vrot.slane %v58, %v1931
    %v1949 = vunpack.c.l.b16 %v1864
    %v1950 = vunpack.c.l.b16 %v1865
    %v1951 = vunpack.c.l.b16 %v1866
    %v1952 = vunpack.c.l.b16 %v1867
    %v1953 = vunpack.c.l.b16 %v1868
    %v1954 = vunpack.c.l.b16 %v1869
    %v1955 = vunpack.c.l.b16 %v1870
    %v1956 = vunpack.c.l.b16 %v1871
    %v1957 = vunpack.c.l.b16 %v1872
    %v1958 = vunpack.c.l.b16 %v1873
    %v1959 = vunpack.c.l.b16 %v1874
    %v1960 = vunpack.c.l.b16 %v1875
    %v1961 = vunpack.c.l.b16 %v1876
    %v1962 = vunpack.c.l.b16 %v1877
    %v1963 = vunpack.c.l.b16 %v1878
    %v1964 = vunpack.c.l.b16 %v1879
    %v1965 = vpack.c.b16 %v1950, %v1949
    %v1966 = vpack.c.b16 %v1952, %v1951
    %v1967 = vpack.c.b16 %v1954, %v1953
    %v1968 = vpack.c.b16 %v1956, %v1955
    %v1969 = vpack.c.b16 %v1958, %v1957
    %v1970 = vpack.c.b16 %v1960, %v1959
    %v1971 = vpack.c.b16 %v1962, %v1961
    %v1972 = vpack.c.b16 %v1964, %v1963
    %1981 = vmatprep.subr.bf16.mxu0 0
    %1982 = vmatpush1.bf16.msra.mxu0 %v1965
    %1983 = vmatprep.subr.bf16.mxu0 0
    %1984 = vmatpush1.bf16.msra.mxu0 %v1966
    %1985 = vmatprep.subr.bf16.mxu0 0
    %1986 = vmatpush1.bf16.msra.mxu0 %v1967
    %1987 = vmatprep.subr.bf16.mxu0 0
    %1988 = vmatpush1.bf16.msra.mxu0 %v1968
    %1989 = vmatprep.subr.bf16.mxu0 0
    %1990 = vmatpush1.bf16.msra.mxu0 %v1969
    %1991 = vmatprep.subr.bf16.mxu0 0
    %1992 = vmatpush1.bf16.msra.mxu0 %v1970
    %1993 = vmatprep.subr.bf16.mxu0 0
    %1994 = vmatpush1.bf16.msra.mxu0 %v1971
    %1995 = vmatprep.subr.bf16.mxu0 0
    %1996 = vmatpush1.bf16.msra.mxu0 %v1972
    %1997 = vmatprep.subr.bf16.mxu0 0
    %1998 = vmatpush1.bf16.msra.mxu0 0
    %1999 = vmatprep.subr.bf16.mxu0 0
    %2000 = vmatpush1.bf16.msra.mxu0 0
    %2001 = vmatprep.subr.bf16.mxu0 0
    %2002 = vmatpush1.bf16.msra.mxu0 0
    %2003 = vmatprep.subr.bf16.mxu0 0
    %2004 = vmatpush1.bf16.msra.mxu0 0
    %2005 = vmatprep.subr.bf16.mxu0 0
    %2006 = vmatpush1.bf16.msra.mxu0 0
    %2007 = vmatprep.subr.bf16.mxu0 0
    %2008 = vmatpush1.bf16.msra.mxu0 0
    %2009 = vmatprep.subr.bf16.mxu0 0
    %2010 = vmatpush1.bf16.msra.mxu0 0
    %2011 = vmatprep.subr.bf16.mxu0 0
    %2012 = vmatpush1.bf16.msra.mxu0 0
    %2013 = vmatprep.mubr.bf16.mxu0 0
    %2014 = vmatmul.mubr.bf16.gmra.mrb[0].mxu0 %v1928
    %v2015 = vpop.f32.mrb[0].mxu0
    %v2016 = vadd.f32 %v1932, %v2015
    %v2017 = vpop.f32.mrb[0].mxu0
    %v2018 = vpop.f32.mrb[0].mxu0
    %v2019 = vadd.f32 %v1932, %v2018
    %v2020 = vpop.f32.mrb[0].mxu0
    %2021 = vdwg.mxu0
    %v2022 = vmax.f32 %v2016, 0.0
    %v2023 = vmax.f32 %v2019, 0.0
    %v2024 = vpack.c.bf16 %v2022, %v2022
    %v2025 = vpack.c.bf16 %v2023, %v2023
    %v2042 = vunpack.c.l.b16 %v1896
    %v2043 = vunpack.c.l.b16 %v1897
    %v2044 = vunpack.c.l.b16 %v1898
    %v2045 = vunpack.c.l.b16 %v1899
    %v2046 = vunpack.c.l.b16 %v1900
    %v2047 = vunpack.c.l.b16 %v1901
    %v2048 = vunpack.c.l.b16 %v1902
    %v2049 = vunpack.c.l.b16 %v1903
    %v2050 = vunpack.c.l.b16 %v1904
    %v2051 = vunpack.c.l.b16 %v1905
    %v2052 = vunpack.c.l.b16 %v1906
    %v2053 = vunpack.c.l.b16 %v1907
    %v2054 = vunpack.c.l.b16 %v1908
    %v2055 = vunpack.c.l.b16 %v1909
    %v2056 = vunpack.c.l.b16 %v1910
    %v2057 = vunpack.c.l.b16 %v1911
    %v2058 = vpack.c.b16 %v2043, %v2042
    %v2059 = vpack.c.b16 %v2045, %v2044
    %v2060 = vpack.c.b16 %v2047, %v2046
    %v2061 = vpack.c.b16 %v2049, %v2048
    %v2062 = vpack.c.b16 %v2051, %v2050
    %v2063 = vpack.c.b16 %v2053, %v2052
    %v2064 = vpack.c.b16 %v2055, %v2054
    %v2065 = vpack.c.b16 %v2057, %v2056
    %2074 = vmatprep.subr.bf16.mxu0 0
    %2075 = vmatpush1.bf16.msra.mxu0 %v2058
    %2076 = vmatprep.subr.bf16.mxu0 0
    %2077 = vmatpush1.bf16.msra.mxu0 %v2059
    %2078 = vmatprep.subr.bf16.mxu0 0
    %2079 = vmatpush1.bf16.msra.mxu0 %v2060
    %2080 = vmatprep.subr.bf16.mxu0 0
    %2081 = vmatpush1.bf16.msra.mxu0 %v2061
    %2082 = vmatprep.subr.bf16.mxu0 0
    %2083 = vmatpush1.bf16.msra.mxu0 %v2062
    %2084 = vmatprep.subr.bf16.mxu0 0
    %2085 = vmatpush1.bf16.msra.mxu0 %v2063
    %2086 = vmatprep.subr.bf16.mxu0 0
    %2087 = vmatpush1.bf16.msra.mxu0 %v2064
    %2088 = vmatprep.subr.bf16.mxu0 0
    %2089 = vmatpush1.bf16.msra.mxu0 %v2065
    %2090 = vmatprep.subr.bf16.mxu0 0
    %2091 = vmatpush1.bf16.msra.mxu0 0
    %2092 = vmatprep.subr.bf16.mxu0 0
    %2093 = vmatpush1.bf16.msra.mxu0 0
    %2094 = vmatprep.subr.bf16.mxu0 0
    %2095 = vmatpush1.bf16.msra.mxu0 0
    %2096 = vmatprep.subr.bf16.mxu0 0
    %2097 = vmatpush1.bf16.msra.mxu0 0
    %2098 = vmatprep.subr.bf16.mxu0 0
    %2099 = vmatpush1.bf16.msra.mxu0 0
    %2100 = vmatprep.subr.bf16.mxu0 0
    %2101 = vmatpush1.bf16.msra.mxu0 0
    %2102 = vmatprep.subr.bf16.mxu0 0
    %2103 = vmatpush1.bf16.msra.mxu0 0
    %2104 = vmatprep.subr.bf16.mxu0 0
    %2105 = vmatpush1.bf16.msra.mxu0 0
    %2106 = vmatprep.mubr.bf16.mxu0 0
    %2107 = vmatmul.mubr.bf16.gmra.mrb[0].mxu0 %v2025
    %v2108 = vpop.f32.mrb[0].mxu0
    %v2109 = vadd.f32 0.0, %v2108
    %v2110 = vpop.f32.mrb[0].mxu0
    %v2111 = vpop.f32.mrb[0].mxu0
    %v2112 = vpop.f32.mrb[0].mxu0
    %2113 = vdwg.mxu0
    %v2130 = vunpack.c.l.b16 %v1880
    %v2131 = vunpack.c.l.b16 %v1881
    %v2132 = vunpack.c.l.b16 %v1882
    %v2133 = vunpack.c.l.b16 %v1883
    %v2134 = vunpack.c.l.b16 %v1884
    %v2135 = vunpack.c.l.b16 %v1885
    %v2136 = vunpack.c.l.b16 %v1886
    %v2137 = vunpack.c.l.b16 %v1887
    %v2138 = vunpack.c.l.b16 %v1888
    %v2139 = vunpack.c.l.b16 %v1889
    %v2140 = vunpack.c.l.b16 %v1890
    %v2141 = vunpack.c.l.b16 %v1891
    %v2142 = vunpack.c.l.b16 %v1892
    %v2143 = vunpack.c.l.b16 %v1893
    %v2144 = vunpack.c.l.b16 %v1894
    %v2145 = vunpack.c.l.b16 %v1895
    %v2146 = vpack.c.b16 %v2131, %v2130
    %v2147 = vpack.c.b16 %v2133, %v2132
    %v2148 = vpack.c.b16 %v2135, %v2134
    %v2149 = vpack.c.b16 %v2137, %v2136
    %v2150 = vpack.c.b16 %v2139, %v2138
    %v2151 = vpack.c.b16 %v2141, %v2140
    %v2152 = vpack.c.b16 %v2143, %v2142
    %v2153 = vpack.c.b16 %v2145, %v2144
    %2162 = vmatprep.subr.bf16.mxu0 0
    %2163 = vmatpush1.bf16.msra.mxu0 %v2146
    %2164 = vmatprep.subr.bf16.mxu0 0
    %2165 = vmatpush1.bf16.msra.mxu0 %v2147
    %2166 = vmatprep.subr.bf16.mxu0 0
    %2167 = vmatpush1.bf16.msra.mxu0 %v2148
    %2168 = vmatprep.subr.bf16.mxu0 0
    %2169 = vmatpush1.bf16.msra.mxu0 %v2149
    %2170 = vmatprep.subr.bf16.mxu0 0
    %2171 = vmatpush1.bf16.msra.mxu0 %v2150
    %2172 = vmatprep.subr.bf16.mxu0 0
    %2173 = vmatpush1.bf16.msra.mxu0 %v2151
    %2174 = vmatprep.subr.bf16.mxu0 0
    %2175 = vmatpush1.bf16.msra.mxu0 %v2152
    %2176 = vmatprep.subr.bf16.mxu0 0
    %2177 = vmatpush1.bf16.msra.mxu0 %v2153
    %2178 = vmatprep.subr.bf16.mxu0 0
    %2179 = vmatpush1.bf16.msra.mxu0 0
    %2180 = vmatprep.subr.bf16.mxu0 0
    %2181 = vmatpush1.bf16.msra.mxu0 0
    %2182 = vmatprep.subr.bf16.mxu0 0
    %2183 = vmatpush1.bf16.msra.mxu0 0
    %2184 = vmatprep.subr.bf16.mxu0 0
    %2185 = vmatpush1.bf16.msra.mxu0 0
    %2186 = vmatprep.subr.bf16.mxu0 0
    %2187 = vmatpush1.bf16.msra.mxu0 0
    %2188 = vmatprep.subr.bf16.mxu0 0
    %2189 = vmatpush1.bf16.msra.mxu0 0
    %2190 = vmatprep.subr.bf16.mxu0 0
    %2191 = vmatpush1.bf16.msra.mxu0 0
    %2192 = vmatprep.subr.bf16.mxu0 0
    %2193 = vmatpush1.bf16.msra.mxu0 0
    %2194 = vmatprep.mubr.bf16.mxu0 0
    %2195 = vmatmul.mubr.bf16.gmra.mrb[0].mxu0 %v2024
    %v2196 = vpop.f32.mrb[0].mxu0
    %v2197 = vadd.f32 %v2109, %v2196
    %v2198 = vpop.f32.mrb[0].mxu0
    %v2199 = vpop.f32.mrb[0].mxu0
    %v2200 = vpop.f32.mrb[0].mxu0
    %2201 = vdwg.mxu0
    %v2202 = vlaneseq
    %v2203 = vshrl.u32 %v2202, 7
    %v2204 = vsub.s32 1, %v2203
    %v2205 = vrot.slane %v58, %v2204
    %v2206 = vadd.f32 %v2197, %v2205
    %v2207 = vmax.f32 %v2206, 0.0
    %v2208 = vpack.c.bf16 %v2207, %v2207
    %v2209 = vlaneseq
    %v2210 = vshrl.u32 %v2209, 7
    %v2211 = vsub.s32 2, %v2210
    %v2212 = vrot.slane %v58, %v2211
    %v2229 = vunpack.c.l.b16 %v1912
    %v2230 = vunpack.c.l.b16 %v1913
    %v2231 = vunpack.c.l.b16 %v1914
    %v2232 = vunpack.c.l.b16 %v1915
    %v2233 = vunpack.c.l.b16 %v1916
    %v2234 = vunpack.c.l.b16 %v1917
    %v2235 = vunpack.c.l.b16 %v1918
    %v2236 = vunpack.c.l.b16 %v1919
    %v2237 = vunpack.c.l.b16 %v1920
    %v2238 = vunpack.c.l.b16 %v1921
    %v2239 = vunpack.c.l.b16 %v1922
    %v2240 = vunpack.c.l.b16 %v1923
    %v2241 = vunpack.c.l.b16 %v1924
    %v2242 = vunpack.c.l.b16 %v1925
    %v2243 = vunpack.c.l.b16 %v1926
    %v2244 = vunpack.c.l.b16 %v1927
    %v2245 = vpack.c.b16 %v2230, %v2229
    %v2246 = vpack.c.b16 %v2232, %v2231
    %v2247 = vpack.c.b16 %v2234, %v2233
    %v2248 = vpack.c.b16 %v2236, %v2235
    %v2249 = vpack.c.b16 %v2238, %v2237
    %v2250 = vpack.c.b16 %v2240, %v2239
    %v2251 = vpack.c.b16 %v2242, %v2241
    %v2252 = vpack.c.b16 %v2244, %v2243
    %2261 = vmatprep.subr.bf16.mxu0 0
    %2262 = vmatpush1.bf16.msra.mxu0 %v2245
    %2263 = vmatprep.subr.bf16.mxu0 0
    %2264 = vmatpush1.bf16.msra.mxu0 %v2246
    %2265 = vmatprep.subr.bf16.mxu0 0
    %2266 = vmatpush1.bf16.msra.mxu0 %v2247
    %2267 = vmatprep.subr.bf16.mxu0 0
    %2268 = vmatpush1.bf16.msra.mxu0 %v2248
    %2269 = vmatprep.subr.bf16.mxu0 0
    %2270 = vmatpush1.bf16.msra.mxu0 %v2249
    %2271 = vmatprep.subr.bf16.mxu0 0
    %2272 = vmatpush1.bf16.msra.mxu0 %v2250
    %2273 = vmatprep.subr.bf16.mxu0 0
    %2274 = vmatpush1.bf16.msra.mxu0 %v2251
    %2275 = vmatprep.subr.bf16.mxu0 0
    %2276 = vmatpush1.bf16.msra.mxu0 %v2252
    %2277 = vmatprep.subr.bf16.mxu0 0
    %2278 = vmatpush1.bf16.msra.mxu0 0
    %2279 = vmatprep.subr.bf16.mxu0 0
    %2280 = vmatpush1.bf16.msra.mxu0 0
    %2281 = vmatprep.subr.bf16.mxu0 0
    %2282 = vmatpush1.bf16.msra.mxu0 0
    %2283 = vmatprep.subr.bf16.mxu0 0
    %2284 = vmatpush1.bf16.msra.mxu0 0
    %2285 = vmatprep.subr.bf16.mxu0 0
    %2286 = vmatpush1.bf16.msra.mxu0 0
    %2287 = vmatprep.subr.bf16.mxu0 0
    %2288 = vmatpush1.bf16.msra.mxu0 0
    %2289 = vmatprep.subr.bf16.mxu0 0
    %2290 = vmatpush1.bf16.msra.mxu0 0
    %2291 = vmatprep.subr.bf16.mxu0 0
    %2292 = vmatpush1.bf16.msra.mxu0 0
    %2293 = vmatprep.mubr.bf16.mxu0 0
    %2294 = vmatmul.mubr.bf16.gmra.mrb[0].mxu0 %v2208
    %v2295 = vpop.f32.mrb[0].mxu0
    %v2296 = vadd.f32 %v2212, %v2295
    %v2297 = vpop.f32.mrb[0].mxu0
    %v2298 = vpop.f32.mrb[0].mxu0
    %v2299 = vpop.f32.mrb[0].mxu0
    %2300 = vdwg.mxu0
    %2301 = vst [vmem:[#allocation9] sm:$0xff] %v2296
    // Predicated region
    $region190: #{gin_forward.1} parent=1 // pred_check
      _
    $region191: #{gin_forward.1} parent=1 // pred_check_branch
      %2303 = sbr.rel (0) target = $region193
    $region192: #{gin_forward.1} parent=1 // pred_region
      %s2305 = ssub.s32 128, 128
      %2306 = vsyncadd [#allocation7], %s2305
      %s2308 = sshll.u32 [#allocation9], 4
      %s2309 = int_to_ptr.vmem [resolvable:$true] %s2308
      %2311 = dma.vmem_to_hbm [thread:$0]  %s2309, 128, %s13, [#allocation7]
    $region193: #{gin_forward.1} parent=1 // pred_fallthru
      _
    // Predicated region
    $region194: #{gin_forward.1} parent=1 // pred_check
      _
    $region195: #{gin_forward.1} parent=1 // pred_check_branch
      %2313 = sbr.rel (0) target = $region197
    $region196: #{gin_forward.1} parent=1 // pred_region
      %2314 = dma.done [#allocation7], 128
    $region197: #{gin_forward.1} parent=1 // pred_fallthru
      _
    %2315 = vsyncpa [#allocation7], 1
    %2316 = vsyncpa [#allocation8], 1
  %2317 = vsyncmov [#allocation5]
  %s2318 = vpop.sfrf %2317
  %p2319 = scmp.eq.s32.totalorder %s2318, 0
  %p2320 = pneg %p2319
  %2322 = shalt.err (%p2320)
  %s2323 = scalar_lea.sflag [#allocation5], 1
  %2324 = vsyncmov %s2323
  %s2325 = vpop.sfrf %2324
  %p2326 = scmp.eq.s32.totalorder %s2325, 0
  %p2327 = pneg %p2326
  %2329 = shalt.err (%p2327)

</llo_original>
